<compile_context>
chip_gen: v5e
topology: v5e:2x2
jax: 0.10.0
libtpu: 0.0.40
codegen_flags: <defaults>
</compile_context>

<pallas_src>
import functools

import numpy as np

import jax
import jax.numpy as jnp
from jax import lax
from jax.experimental import pallas as pl
from jax.experimental.pallas import tpu as pltpu


# ----------------------------- configuration -----------------------------
B = 2                 # batch
C = 8                 # MODEL.EXTRA_NECK.IN_CHANNELS
NUM_LEVELS = 3        # MODEL.EXTRA_NECK.NUM_LEVELS
REFINE_LEVEL = 1      # MODEL.EXTRA_NECK.REFINE_LEV
H, W = 16, 16         # spatial size at refine level
LEVEL_SIZES = [(32, 32), (16, 16), (8, 8)]
F_NAMES = ["p2", "p3", "p4"]
FLOW_PAD = 8          # flow (2ch) zero-padded to 8 sublanes for aligned concat


# ----------------------------- spec helpers -----------------------------
def _batch_spec(shape):
    nd = len(shape)
    return pl.BlockSpec((1,) + tuple(shape[1:]),
                        lambda b, nd=nd: (b,) + (0,) * (nd - 1))


def _const_spec(shape):
    nd = len(shape)
    return pl.BlockSpec(tuple(shape), lambda b, nd=nd: (0,) * nd)


# ----------------------------- host-side constant matrices -----------------------------
def _pool_select_matrix(Hs, Ws):
    """(Hs*Ws, (Hs//2)*(Ws//2)) 0/1 matrix selecting lane (2Y*Ws+2X) per window."""
    Ho, Wo = Hs // 2, Ws // 2
    m = np.zeros((Hs * Ws, Ho * Wo), np.float32)
    for y in range(Ho):
        for x in range(Wo):
            m[(2 * y) * Ws + 2 * x, y * Wo + x] = 1.0
    return jnp.asarray(m)


def _nearest_up_matrix(Hs, Ws, f):
    """(Hs*Ws, Hs*f*Ws*f) 0/1 nearest-neighbour upsample matrix."""
    Wo = Ws * f
    m = np.zeros((Hs * Ws, Hs * f * Wo), np.float32)
    for Y in range(Hs * f):
        for X in range(Wo):
            m[(Y // f) * Ws + (X // f), Y * Wo + X] = 1.0
    return jnp.asarray(m)


def _border_mask(Hh, Ww, Cc):
    """(9*Cc, Hh*Ww) zero-padding masks for the 9 rolled 3x3 conv taps."""
    rows = []
    for dy in (-1, 0, 1):
        for dx in (-1, 0, 1):
            ok = np.zeros((Hh, Ww), np.float32)
            y0, y1 = max(0, -dy), min(Hh, Hh - dy)
            x0, x1 = max(0, -dx), min(Ww, Ww - dx)
            ok[y0:y1, x0:x1] = 1.0
            rows.append(np.broadcast_to(ok.reshape(1, -1), (Cc, Hh * Ww)))
    return jnp.asarray(np.concatenate(rows, axis=0))


# ----------------------------- in-kernel helpers -----------------------------
def _shift_lanes(x, s, n):
    """out[:, j] = x[:, (j + s) % n]  (wrapped values are masked by callers)."""
    return x if s == 0 else pltpu.roll(x, (-s) % n, axis=1)


def _pool2x2_max(x, Ws):
    """2x2 max; the pooled value for window (Y,X) lands at lane (2Y*Ws+2X)."""
    n = x.shape[-1]
    return jnp.maximum(jnp.maximum(x, _shift_lanes(x, 1, n)),
                       jnp.maximum(_shift_lanes(x, Ws, n),
                                   _shift_lanes(x, Ws + 1, n)))


def _warp_matrix(flow_t, Hh, Ww):
    """Dense separable border-clamped bilinear warp matrix (HW_src, HW_dst).

    flow_t rows 0/1 are dx/dy in pixels.  warp = src(C,HW) @ Wfull.
    """
    HWl = Hh * Ww
    o = lax.broadcasted_iota(jnp.int32, (1, HWl), 1).astype(jnp.float32)
    oy = jnp.floor((o + 0.5) * (1.0 / Ww))
    ox = o - oy * Ww
    gx = jnp.clip(ox + flow_t[0:1, :], 0.0, float(Ww - 1))       # (1, HW)
    gy = jnp.clip(oy + flow_t[1:2, :], 0.0, float(Hh - 1))       # (1, HW)
    r = lax.broadcasted_iota(jnp.int32, (HWl, HWl), 0).astype(jnp.float32)
    iy = jnp.floor((r + 0.5) * (1.0 / Ww))
    ix = r - iy * Ww
    wy = jnp.maximum(1.0 - jnp.abs(gy - iy), 0.0)                # (HW, HW)
    wx = jnp.maximum(1.0 - jnp.abs(gx - ix), 0.0)                # (HW, HW)
    return wy * wx


# ----------------------------- the fused kernel -----------------------------
def _bfp_tcea_kernel(p2_ref, p3_ref, p4_ref, rp2_ref, rp3_ref, rp4_ref,
                     flow_ref,
                     pool_g_ref, up_g_ref, up_s_ref, pool_s_ref, mask_ref,
                     w_flow_ref, b_flow_ref, w_agg_ref, b_agg_ref,
                     w_ref_ref, b_ref_ref,
                     o2_ref, o3_ref, o4_ref, *, H, W, W0):
    f32 = jnp.float32
    bf16 = jnp.bfloat16
    HW = H * W

    x2, x3, x4 = p2_ref[0], p3_ref[0], p4_ref[0]        # (C,HW0) (C,HW) (C,HW2)
    r2, r3, r4 = rp2_ref[0], rp3_ref[0], rp4_ref[0]
    flow_p = flow_ref[0]                                 # (8, HW), rows 0/1 = dx/dy

    pool_g = pool_g_ref[...]                             # (HW0, HW)  0/1
    up_g = up_g_ref[...]                                 # (HW2, HW)  0/1

    # ---- gather: resize every level to the refine size, then average ----
    def gather_level(a2, a3, a4):
        g0 = jnp.dot(_pool2x2_max(a2, W0), pool_g, preferred_element_type=f32)
        g2 = jnp.dot(a4, up_g, preferred_element_type=f32)
        return (g0 + a3 + g2) * (1.0 / 3.0)              # (C, HW)

    bsf = gather_level(x2, x3, x4)
    ref_bsf = gather_level(r2, r3, r4)

    # ---- warp(ref_bsf, flow_init): one matmul against the dense warp matrix ----
    wm1 = _warp_matrix(flow_p, H, W).astype(bf16)
    warp1 = jnp.dot(ref_bsf.astype(bf16), wm1, preferred_element_type=f32)

    # ---- LiteFlowNetCorr stand-in: single 1x1 conv over concat -> flow residual
    # TODO(synk): LiteFlowNetCorr definition not provided; 1x1 refinement stand-in.
    cat_f = jnp.concatenate([bsf, warp1, flow_p], axis=0).astype(bf16)   # (2C+8,HW)
    flow_fine = (flow_p[0:2, :]
                 + jnp.dot(w_flow_ref[...], cat_f, preferred_element_type=f32)
                 + b_flow_ref[...])                      # (2, HW)

    # ---- warp(warp_bsf, flow_fine) ----
    wm2 = _warp_matrix(flow_fine, H, W).astype(bf16)
    warp2 = jnp.dot(warp1.astype(bf16), wm2, preferred_element_type=f32)

    # ---- ST_Aggregator stand-in: 1x1 temporal fusion over the T=2 stack + ReLU
    # TODO(synk): ST_Aggregator definition not provided; 1x1 fusion stand-in.
    cat_a = jnp.concatenate([bsf, warp2], axis=0).astype(bf16)           # (2C, HW)
    agg = jnp.maximum(
        jnp.dot(w_agg_ref[...], cat_a, preferred_element_type=f32)
        + b_agg_ref[...], 0.0)                           # (C, HW)

    # ---- refine = ConvModule(C, C, 3, padding=1): 9 rolled taps, const border
    #      mask, one K=9C matmul, bias + ReLU ----
    taps = jnp.concatenate(
        [_shift_lanes(agg, dy * W + dx, HW)
         for dy in (-1, 0, 1) for dx in (-1, 0, 1)], axis=0)             # (9C, HW)
    taps = (taps * mask_ref[...]).astype(bf16)
    bsf2 = jnp.maximum(
        jnp.dot(w_ref_ref[...], taps, preferred_element_type=f32)
        + b_ref_ref[...], 0.0)                           # (C, HW)

    # ---- scatter: resize back to every level + residual add ----
    o3_ref[0] = bsf2 + x3
    o2_ref[0] = jnp.dot(bsf2, up_s_ref[...], preferred_element_type=f32) + x2
    o4_ref[0] = (jnp.dot(_pool2x2_max(bsf2, W), pool_s_ref[...],
                         preferred_element_type=f32) + x4)


# ----------------------------- forward -----------------------------
def bfp_tcea_forward(params, inputs, ref_inputs, flow_init):
    names = list(inputs.keys())
    xs = [inputs[n] for n in names]
    rs = [ref_inputs[n] for n in names]
    assert len(xs) == NUM_LEVELS == 3 and REFINE_LEVEL == 1

    Bb, Cc, H0, W0 = xs[0].shape
    _, _, Hh, Ww = xs[1].shape
    _, _, H2, W2 = xs[2].shape
    assert (H0, W0) == (2 * Hh, 2 * Ww) and (Hh, Ww) == (2 * H2, 2 * W2)
    HW0, HW, HW2 = H0 * W0, Hh * Ww, H2 * W2

    # flatten NCHW -> lane-dense (B, C, H*W); pure reshapes, no transposes
    p2, p3, p4 = (x.reshape(Bb, Cc, -1) for x in xs)
    rp2, rp3, rp4 = (x.reshape(Bb, Cc, -1) for x in rs)
    flow_p = jnp.concatenate(
        [flow_init.reshape(Bb, 2, HW),
         jnp.zeros((Bb, FLOW_PAD - 2, HW), jnp.float32)], axis=1)   # (B, 8, HW)

    # structure constants (built at trace time, baked into the executable)
    pool_g = _pool_select_matrix(H0, W0)     # (HW0, HW)
    up_g = _nearest_up_matrix(H2, W2, 2)     # (HW2, HW)
    up_s = _nearest_up_matrix(Hh, Ww, 2)     # (HW, HW0)
    pool_s = _pool_select_matrix(Hh, Ww)     # (HW, HW2)
    mask9 = _border_mask(Hh, Ww, Cc)         # (9C, HW)

    # learned weights in kernel-friendly transposed layouts (bf16 MXU operands)
    bf16 = jnp.bfloat16
    w_flow = jnp.concatenate(
        [params["w_flow"].T, jnp.zeros((2, FLOW_PAD - 2), jnp.float32)],
        axis=1).astype(bf16)                              # (2, 2C+8)
    b_flow = params["b_flow"].reshape(2, 1)
    w_agg = params["w_agg"].T.astype(bf16)                # (C, 2C)
    b_agg = params["b_agg"].reshape(Cc, 1)
    w_ref = params["w_refine"].reshape(9 * Cc, Cc).T.astype(bf16)   # (C, 9C)
    b_ref = params["b_refine"].reshape(Cc, 1)

    kernel = functools.partial(_bfp_tcea_kernel, H=Hh, W=Ww, W0=W0)
    o2, o3, o4 = pl.pallas_call(
        kernel,
        grid=(Bb,),
        in_specs=[_batch_spec((Bb, Cc, HW0)), _batch_spec((Bb, Cc, HW)),
                  _batch_spec((Bb, Cc, HW2)),
                  _batch_spec((Bb, Cc, HW0)), _batch_spec((Bb, Cc, HW)),
                  _batch_spec((Bb, Cc, HW2)),
                  _batch_spec((Bb, FLOW_PAD, HW)),
                  _const_spec(pool_g.shape), _const_spec(up_g.shape),
                  _const_spec(up_s.shape), _const_spec(pool_s.shape),
                  _const_spec(mask9.shape),
                  _const_spec(w_flow.shape), _const_spec(b_flow.shape),
                  _const_spec(w_agg.shape), _const_spec(b_agg.shape),
                  _const_spec(w_ref.shape), _const_spec(b_ref.shape)],
        out_specs=(_batch_spec((Bb, Cc, HW0)), _batch_spec((Bb, Cc, HW)),
                   _batch_spec((Bb, Cc, HW2))),
        out_shape=(jax.ShapeDtypeStruct((Bb, Cc, HW0), jnp.float32),
                   jax.ShapeDtypeStruct((Bb, Cc, HW), jnp.float32),
                   jax.ShapeDtypeStruct((Bb, Cc, HW2), jnp.float32)),
        compiler_params=pltpu.CompilerParams(
            dimension_semantics=("parallel",),
            vmem_limit_bytes=32 * 1024 * 1024),
    )(p2, p3, p4, rp2, rp3, rp4, flow_p,
      pool_g, up_g, up_s, pool_s, mask9,
      w_flow, b_flow, w_agg, b_agg, w_ref, b_ref)

    return {names[0]: o2.reshape(xs[0].shape),
            names[1]: o3.reshape(xs[1].shape),
            names[2]: o4.reshape(xs[2].shape)}


# ----------------------------- parameters -----------------------------
def init_params(key):
    ks = jax.random.split(key, 3)
    s = 0.1
    return dict(
        # TODO(synk): LiteFlowNetCorr definition not provided; stand-in is a
        # single learned 1x1 flow refinement over concat(feat, warp_feat, flow).
        w_flow=s * jax.random.normal(ks[0], (2 * C + 2, 2), jnp.float32),
        b_flow=jnp.zeros((1, 2), jnp.float32),
        # TODO(synk): ST_Aggregator definition not provided; stand-in is a
        # learned 1x1 temporal-fusion conv over the T=2 stacked frames.
        w_agg=s * jax.random.normal(ks[1], (2 * C, C), jnp.float32),
        b_agg=jnp.zeros((1, C), jnp.float32),
        # refine = ConvModule(C, C, 3, padding=1): conv + bias + ReLU,
        # weight layout (kh, kw, cin, cout)
        w_refine=s * jax.random.normal(ks[2], (3, 3, C, C), jnp.float32),
        b_refine=jnp.zeros((C,), jnp.float32),
    )


# ----------------------------- main -----------------------------
if __name__ == "__main__":
    key = jax.random.PRNGKey(0)
    keys = jax.random.split(key, 2 + 2 * NUM_LEVELS)
    params = init_params(keys[0])

    inputs, ref_inputs = {}, {}
    for i, (name, (hh, ww)) in enumerate(zip(F_NAMES, LEVEL_SIZES)):
        inputs[name] = jax.random.normal(keys[1 + i], (B, C, hh, ww), jnp.float32)
        ref_inputs[name] = jax.random.normal(keys[1 + NUM_LEVELS + i],
                                             (B, C, hh, ww), jnp.float32)
    flow_init = 2.0 * jax.random.normal(keys[1 + 2 * NUM_LEVELS],
                                        (B, 2, H, W), jnp.float32)

    fwd = jax.jit(bfp_tcea_forward)
    outs = fwd(params, inputs, ref_inputs, flow_init)
    jax.block_until_ready(outs)

    for n in F_NAMES:
        assert outs[n].shape == inputs[n].shape, (n, outs[n].shape)
        assert outs[n].dtype == jnp.float32

    print("KERNEL_OK")
</pallas_src>

<mosaic_0001>
module attributes {stable_mosaic.version = 11 : i64} {
  func.func @_bfp_tcea_kernel(%arg0: i32, %arg1: memref<1x8x1024xf32, #tpu.memory_space<vmem>>, %arg2: memref<1x8x256xf32, #tpu.memory_space<vmem>>, %arg3: memref<1x8x64xf32, #tpu.memory_space<vmem>>, %arg4: memref<1x8x1024xf32, #tpu.memory_space<vmem>>, %arg5: memref<1x8x256xf32, #tpu.memory_space<vmem>>, %arg6: memref<1x8x64xf32, #tpu.memory_space<vmem>>, %arg7: memref<1x8x256xf32, #tpu.memory_space<vmem>>, %arg8: memref<1024x256xf32, #tpu.memory_space<vmem>>, %arg9: memref<64x256xf32, #tpu.memory_space<vmem>>, %arg10: memref<256x1024xf32, #tpu.memory_space<vmem>>, %arg11: memref<256x64xf32, #tpu.memory_space<vmem>>, %arg12: memref<72x256xf32, #tpu.memory_space<vmem>>, %arg13: memref<2x24xbf16, #tpu.memory_space<vmem>>, %arg14: memref<2x1xf32, #tpu.memory_space<vmem>>, %arg15: memref<8x16xbf16, #tpu.memory_space<vmem>>, %arg16: memref<8x1xf32, #tpu.memory_space<vmem>>, %arg17: memref<8x72xbf16, #tpu.memory_space<vmem>>, %arg18: memref<8x1xf32, #tpu.memory_space<vmem>>, %arg19: memref<1x8x1024xf32, #tpu.memory_space<vmem>>, %arg20: memref<1x8x256xf32, #tpu.memory_space<vmem>>, %arg21: memref<1x8x64xf32, #tpu.memory_space<vmem>>) attributes {dimension_semantics = [#tpu.dimension_semantics<parallel>], iteration_bounds = array<i64: 2>, scalar_prefetch = 0 : i64, scratch_operands = 0 : i64, tpu.core_type = #tpu.core_type<tc>, window_params = [{transform_indices = @transform_0, window_bounds = array<i64: 1, 8, 1024>}, {transform_indices = @transform_1, window_bounds = array<i64: 1, 8, 256>}, {transform_indices = @transform_2, window_bounds = array<i64: 1, 8, 64>}, {transform_indices = @transform_3, window_bounds = array<i64: 1, 8, 1024>}, {transform_indices = @transform_4, window_bounds = array<i64: 1, 8, 256>}, {transform_indices = @transform_5, window_bounds = array<i64: 1, 8, 64>}, {transform_indices = @transform_6, window_bounds = array<i64: 1, 8, 256>}, {pipeline_mode = #tpu.pipeline_mode<synchronous>, transform_indices = @transform_7, window_bounds = array<i64: 1024, 256>}, {pipeline_mode = #tpu.pipeline_mode<synchronous>, transform_indices = @transform_8, window_bounds = array<i64: 64, 256>}, {pipeline_mode = #tpu.pipeline_mode<synchronous>, transform_indices = @transform_9, window_bounds = array<i64: 256, 1024>}, {pipeline_mode = #tpu.pipeline_mode<synchronous>, transform_indices = @transform_10, window_bounds = array<i64: 256, 64>}, {pipeline_mode = #tpu.pipeline_mode<synchronous>, transform_indices = @transform_11, window_bounds = array<i64: 72, 256>}, {pipeline_mode = #tpu.pipeline_mode<synchronous>, transform_indices = @transform_12, window_bounds = array<i64: 2, 24>}, {pipeline_mode = #tpu.pipeline_mode<synchronous>, transform_indices = @transform_13, window_bounds = array<i64: 2, 1>}, {pipeline_mode = #tpu.pipeline_mode<synchronous>, transform_indices = @transform_14, window_bounds = array<i64: 8, 16>}, {pipeline_mode = #tpu.pipeline_mode<synchronous>, transform_indices = @transform_15, window_bounds = array<i64: 8, 1>}, {pipeline_mode = #tpu.pipeline_mode<synchronous>, transform_indices = @transform_16, window_bounds = array<i64: 8, 72>}, {pipeline_mode = #tpu.pipeline_mode<synchronous>, transform_indices = @transform_17, window_bounds = array<i64: 8, 1>}, {transform_indices = @transform_18, window_bounds = array<i64: 1, 8, 1024>}, {transform_indices = @transform_19, window_bounds = array<i64: 1, 8, 256>}, {transform_indices = @transform_20, window_bounds = array<i64: 1, 8, 64>}]} {
    %c0 = arith.constant 0 : index
    %c0_0 = arith.constant 0 : index
    %c0_1 = arith.constant 0 : index
    %0 = vector.load %arg1[%c0, %c0_0, %c0_1] : memref<1x8x1024xf32, #tpu.memory_space<vmem>>, vector<1x8x1024xf32>
    %1 = vector.shape_cast %0 : vector<1x8x1024xf32> to vector<8x1024xf32>
    %c0_2 = arith.constant 0 : index
    %c0_3 = arith.constant 0 : index
    %c0_4 = arith.constant 0 : index
    %2 = vector.load %arg2[%c0_2, %c0_3, %c0_4] : memref<1x8x256xf32, #tpu.memory_space<vmem>>, vector<1x8x256xf32>
    %3 = vector.shape_cast %2 : vector<1x8x256xf32> to vector<8x256xf32>
    %c0_5 = arith.constant 0 : index
    %c0_6 = arith.constant 0 : index
    %c0_7 = arith.constant 0 : index
    %4 = vector.load %arg3[%c0_5, %c0_6, %c0_7] : memref<1x8x64xf32, #tpu.memory_space<vmem>>, vector<1x8x64xf32>
    %5 = vector.shape_cast %4 : vector<1x8x64xf32> to vector<8x64xf32>
    %c0_8 = arith.constant 0 : index
    %c0_9 = arith.constant 0 : index
    %c0_10 = arith.constant 0 : index
    %6 = vector.load %arg4[%c0_8, %c0_9, %c0_10] : memref<1x8x1024xf32, #tpu.memory_space<vmem>>, vector<1x8x1024xf32>
    %7 = vector.shape_cast %6 : vector<1x8x1024xf32> to vector<8x1024xf32>
    %c0_11 = arith.constant 0 : index
    %c0_12 = arith.constant 0 : index
    %c0_13 = arith.constant 0 : index
    %8 = vector.load %arg5[%c0_11, %c0_12, %c0_13] : memref<1x8x256xf32, #tpu.memory_space<vmem>>, vector<1x8x256xf32>
    %9 = vector.shape_cast %8 : vector<1x8x256xf32> to vector<8x256xf32>
    %c0_14 = arith.constant 0 : index
    %c0_15 = arith.constant 0 : index
    %c0_16 = arith.constant 0 : index
    %10 = vector.load %arg6[%c0_14, %c0_15, %c0_16] : memref<1x8x64xf32, #tpu.memory_space<vmem>>, vector<1x8x64xf32>
    %11 = vector.shape_cast %10 : vector<1x8x64xf32> to vector<8x64xf32>
    %c0_17 = arith.constant 0 : index
    %c0_18 = arith.constant 0 : index
    %c0_19 = arith.constant 0 : index
    %12 = vector.load %arg7[%c0_17, %c0_18, %c0_19] : memref<1x8x256xf32, #tpu.memory_space<vmem>>, vector<1x8x256xf32>
    %13 = vector.shape_cast %12 : vector<1x8x256xf32> to vector<8x256xf32>
    %c0_20 = arith.constant 0 : index
    %c0_21 = arith.constant 0 : index
    %14 = vector.load %arg8[%c0_20, %c0_21] : memref<1024x256xf32, #tpu.memory_space<vmem>>, vector<1024x256xf32>
    %c0_22 = arith.constant 0 : index
    %c0_23 = arith.constant 0 : index
    %15 = vector.load %arg9[%c0_22, %c0_23] : memref<64x256xf32, #tpu.memory_space<vmem>>, vector<64x256xf32>
    %c1023_i32 = arith.constant 1023 : i32
    %16 = tpu.dynamic_rotate %1 by %c1023_i32 dim 1 : vector<8x1024xf32>, i32 -> vector<8x1024xf32>
    %17 = arith.maximumf %1, %16 : vector<8x1024xf32>
    %c992_i32 = arith.constant 992 : i32
    %18 = tpu.dynamic_rotate %1 by %c992_i32 dim 1 : vector<8x1024xf32>, i32 -> vector<8x1024xf32>
    %c991_i32 = arith.constant 991 : i32
    %19 = tpu.dynamic_rotate %1 by %c991_i32 dim 1 : vector<8x1024xf32>, i32 -> vector<8x1024xf32>
    %20 = arith.maximumf %18, %19 : vector<8x1024xf32>
    %21 = arith.maximumf %17, %20 : vector<8x1024xf32>
    %cst = arith.constant dense<0.000000e+00> : vector<8x256xf32>
    %22 = tpu.matmul %21, %14, %cst {dimension_numbers = #tpu.dot_dimension_numbers<[1], [0], [0], [1], [0, 0, 1, 1], [], []>} : vector<8x1024xf32>, vector<1024x256xf32>, vector<8x256xf32> -> vector<8x256xf32>
    %cst_24 = arith.constant dense<0.000000e+00> : vector<8x256xf32>
    %23 = tpu.matmul %5, %15, %cst_24 {dimension_numbers = #tpu.dot_dimension_numbers<[1], [0], [0], [1], [0, 0, 1, 1], [], []>} : vector<8x64xf32>, vector<64x256xf32>, vector<8x256xf32> -> vector<8x256xf32>
    %24 = arith.addf %22, %3 : vector<8x256xf32>
    %25 = arith.addf %24, %23 : vector<8x256xf32>
    %cst_25 = arith.constant 0.333333343 : f32
    %26 = vector.broadcast %cst_25 : f32 to vector<8x256xf32>
    %27 = arith.mulf %25, %26 : vector<8x256xf32>
    %c1023_i32_26 = arith.constant 1023 : i32
    %28 = tpu.dynamic_rotate %7 by %c1023_i32_26 dim 1 : vector<8x1024xf32>, i32 -> vector<8x1024xf32>
    %29 = arith.maximumf %7, %28 : vector<8x1024xf32>
    %c992_i32_27 = arith.constant 992 : i32
    %30 = tpu.dynamic_rotate %7 by %c992_i32_27 dim 1 : vector<8x1024xf32>, i32 -> vector<8x1024xf32>
    %c991_i32_28 = arith.constant 991 : i32
    %31 = tpu.dynamic_rotate %7 by %c991_i32_28 dim 1 : vector<8x1024xf32>, i32 -> vector<8x1024xf32>
    %32 = arith.maximumf %30, %31 : vector<8x1024xf32>
    %33 = arith.maximumf %29, %32 : vector<8x1024xf32>
    %cst_29 = arith.constant dense<0.000000e+00> : vector<8x256xf32>
    %34 = tpu.matmul %33, %14, %cst_29 {dimension_numbers = #tpu.dot_dimension_numbers<[1], [0], [0], [1], [0, 0, 1, 1], [], []>} : vector<8x1024xf32>, vector<1024x256xf32>, vector<8x256xf32> -> vector<8x256xf32>
    %cst_30 = arith.constant dense<0.000000e+00> : vector<8x256xf32>
    %35 = tpu.matmul %11, %15, %cst_30 {dimension_numbers = #tpu.dot_dimension_numbers<[1], [0], [0], [1], [0, 0, 1, 1], [], []>} : vector<8x64xf32>, vector<64x256xf32>, vector<8x256xf32> -> vector<8x256xf32>
    %36 = arith.addf %34, %9 : vector<8x256xf32>
    %37 = arith.addf %36, %35 : vector<8x256xf32>
    %cst_31 = arith.constant 0.333333343 : f32
    %38 = vector.broadcast %cst_31 : f32 to vector<8x256xf32>
    %39 = arith.mulf %37, %38 : vector<8x256xf32>
    %40 = tpu.iota {dimensions = array<i32: 1>} : vector<1x256xi32>
    %41 = arith.sitofp %40 : vector<1x256xi32> to vector<1x256xf32>
    %cst_32 = arith.constant 5.000000e-01 : f32
    %42 = vector.broadcast %cst_32 : f32 to vector<1x256xf32>
    %43 = arith.addf %41, %42 : vector<1x256xf32>
    %cst_33 = arith.constant 6.250000e-02 : f32
    %44 = vector.broadcast %cst_33 : f32 to vector<1x256xf32>
    %45 = arith.mulf %43, %44 : vector<1x256xf32>
    %46 = math.floor %45 : vector<1x256xf32>
    %cst_34 = arith.constant 1.600000e+01 : f32
    %47 = vector.broadcast %cst_34 : f32 to vector<1x256xf32>
    %48 = arith.mulf %46, %47 : vector<1x256xf32>
    %49 = arith.subf %41, %48 : vector<1x256xf32>
    %50 = vector.extract_strided_slice %13 {offsets = [0, 0], sizes = [1, 256], strides = [1, 1]} : vector<8x256xf32> to vector<1x256xf32>
    %51 = arith.addf %49, %50 : vector<1x256xf32>
    %cst_35 = arith.constant 0.000000e+00 : f32
    %cst_36 = arith.constant 1.500000e+01 : f32
    %52 = vector.broadcast %cst_35 : f32 to vector<1x256xf32>
    %53 = arith.maximumf %52, %51 : vector<1x256xf32>
    %54 = vector.broadcast %cst_36 : f32 to vector<1x256xf32>
    %55 = arith.minimumf %54, %53 : vector<1x256xf32>
    %56 = vector.extract_strided_slice %13 {offsets = [1, 0], sizes = [1, 256], strides = [1, 1]} : vector<8x256xf32> to vector<1x256xf32>
    %57 = arith.addf %46, %56 : vector<1x256xf32>
    %cst_37 = arith.constant 0.000000e+00 : f32
    %cst_38 = arith.constant 1.500000e+01 : f32
    %58 = vector.broadcast %cst_37 : f32 to vector<1x256xf32>
    %59 = arith.maximumf %58, %57 : vector<1x256xf32>
    %60 = vector.broadcast %cst_38 : f32 to vector<1x256xf32>
    %61 = arith.minimumf %60, %59 : vector<1x256xf32>
    %62 = tpu.iota {dimensions = array<i32: 0>} : vector<256x256xi32>
    %63 = arith.sitofp %62 : vector<256x256xi32> to vector<256x256xf32>
    %cst_39 = arith.constant 5.000000e-01 : f32
    %64 = vector.broadcast %cst_39 : f32 to vector<256x256xf32>
    %65 = arith.addf %63, %64 : vector<256x256xf32>
    %cst_40 = arith.constant 6.250000e-02 : f32
    %66 = vector.broadcast %cst_40 : f32 to vector<256x256xf32>
    %67 = arith.mulf %65, %66 : vector<256x256xf32>
    %68 = math.floor %67 : vector<256x256xf32>
    %cst_41 = arith.constant 1.600000e+01 : f32
    %69 = vector.broadcast %cst_41 : f32 to vector<256x256xf32>
    %70 = arith.mulf %68, %69 : vector<256x256xf32>
    %71 = arith.subf %63, %70 : vector<256x256xf32>
    %72 = vector.broadcast %61 : vector<1x256xf32> to vector<256x256xf32>
    %73 = arith.subf %72, %68 : vector<256x256xf32>
    %74 = math.absf %73 : vector<256x256xf32>
    %cst_42 = arith.constant 1.000000e+00 : f32
    %75 = vector.broadcast %cst_42 : f32 to vector<256x256xf32>
    %76 = arith.subf %75, %74 : vector<256x256xf32>
    %cst_43 = arith.constant 0.000000e+00 : f32
    %77 = vector.broadcast %cst_43 : f32 to vector<256x256xf32>
    %78 = arith.maximumf %76, %77 : vector<256x256xf32>
    %79 = vector.broadcast %55 : vector<1x256xf32> to vector<256x256xf32>
    %80 = arith.subf %79, %71 : vector<256x256xf32>
    %81 = math.absf %80 : vector<256x256xf32>
    %cst_44 = arith.constant 1.000000e+00 : f32
    %82 = vector.broadcast %cst_44 : f32 to vector<256x256xf32>
    %83 = arith.subf %82, %81 : vector<256x256xf32>
    %cst_45 = arith.constant 0.000000e+00 : f32
    %84 = vector.broadcast %cst_45 : f32 to vector<256x256xf32>
    %85 = arith.maximumf %83, %84 : vector<256x256xf32>
    %86 = arith.mulf %78, %85 : vector<256x256xf32>
    %87 = arith.truncf %86 : vector<256x256xf32> to vector<256x256xbf16>
    %88 = arith.truncf %39 : vector<8x256xf32> to vector<8x256xbf16>
    %cst_46 = arith.constant dense<0.000000e+00> : vector<8x256xf32>
    %89 = tpu.matmul %88, %87, %cst_46 {dimension_numbers = #tpu.dot_dimension_numbers<[1], [0], [0], [1], [0, 0, 1, 1], [], []>} : vector<8x256xbf16>, vector<256x256xbf16>, vector<8x256xf32> -> vector<8x256xf32>
    %90 = tpu.concatenate %27, %89, %13 in 0 : vector<8x256xf32>, vector<8x256xf32>, vector<8x256xf32> -> vector<24x256xf32>
    %91 = arith.truncf %90 : vector<24x256xf32> to vector<24x256xbf16>
    %92 = vector.extract_strided_slice %13 {offsets = [0, 0], sizes = [2, 256], strides = [1, 1]} : vector<8x256xf32> to vector<2x256xf32>
    %c0_47 = arith.constant 0 : index
    %c0_48 = arith.constant 0 : index
    %93 = vector.load %arg13[%c0_47, %c0_48] : memref<2x24xbf16, #tpu.memory_space<vmem>>, vector<2x24xbf16>
    %cst_49 = arith.constant dense<0.000000e+00> : vector<2x256xf32>
    %94 = tpu.matmul %93, %91, %cst_49 {dimension_numbers = #tpu.dot_dimension_numbers<[1], [0], [0], [1], [0, 0, 1, 1], [], []>} : vector<2x24xbf16>, vector<24x256xbf16>, vector<2x256xf32> -> vector<2x256xf32>
    %95 = arith.addf %92, %94 : vector<2x256xf32>
    %c0_50 = arith.constant 0 : index
    %c0_51 = arith.constant 0 : index
    %96 = vector.load %arg14[%c0_50, %c0_51] : memref<2x1xf32, #tpu.memory_space<vmem>>, vector<2x1xf32>
    %97 = vector.broadcast %96 : vector<2x1xf32> to vector<2x256xf32>
    %98 = arith.addf %95, %97 : vector<2x256xf32>
    %99 = tpu.iota {dimensions = array<i32: 1>} : vector<1x256xi32>
    %100 = arith.sitofp %99 : vector<1x256xi32> to vector<1x256xf32>
    %cst_52 = arith.constant 5.000000e-01 : f32
    %101 = vector.broadcast %cst_52 : f32 to vector<1x256xf32>
    %102 = arith.addf %100, %101 : vector<1x256xf32>
    %cst_53 = arith.constant 6.250000e-02 : f32
    %103 = vector.broadcast %cst_53 : f32 to vector<1x256xf32>
    %104 = arith.mulf %102, %103 : vector<1x256xf32>
    %105 = math.floor %104 : vector<1x256xf32>
    %cst_54 = arith.constant 1.600000e+01 : f32
    %106 = vector.broadcast %cst_54 : f32 to vector<1x256xf32>
    %107 = arith.mulf %105, %106 : vector<1x256xf32>
    %108 = arith.subf %100, %107 : vector<1x256xf32>
    %109 = vector.extract_strided_slice %98 {offsets = [0, 0], sizes = [1, 256], strides = [1, 1]} : vector<2x256xf32> to vector<1x256xf32>
    %110 = arith.addf %108, %109 : vector<1x256xf32>
    %cst_55 = arith.constant 0.000000e+00 : f32
    %cst_56 = arith.constant 1.500000e+01 : f32
    %111 = vector.broadcast %cst_55 : f32 to vector<1x256xf32>
    %112 = arith.maximumf %111, %110 : vector<1x256xf32>
    %113 = vector.broadcast %cst_56 : f32 to vector<1x256xf32>
    %114 = arith.minimumf %113, %112 : vector<1x256xf32>
    %115 = vector.extract_strided_slice %98 {offsets = [1, 0], sizes = [1, 256], strides = [1, 1]} : vector<2x256xf32> to vector<1x256xf32>
    %116 = arith.addf %105, %115 : vector<1x256xf32>
    %cst_57 = arith.constant 0.000000e+00 : f32
    %cst_58 = arith.constant 1.500000e+01 : f32
    %117 = vector.broadcast %cst_57 : f32 to vector<1x256xf32>
    %118 = arith.maximumf %117, %116 : vector<1x256xf32>
    %119 = vector.broadcast %cst_58 : f32 to vector<1x256xf32>
    %120 = arith.minimumf %119, %118 : vector<1x256xf32>
    %121 = tpu.iota {dimensions = array<i32: 0>} : vector<256x256xi32>
    %122 = arith.sitofp %121 : vector<256x256xi32> to vector<256x256xf32>
    %cst_59 = arith.constant 5.000000e-01 : f32
    %123 = vector.broadcast %cst_59 : f32 to vector<256x256xf32>
    %124 = arith.addf %122, %123 : vector<256x256xf32>
    %cst_60 = arith.constant 6.250000e-02 : f32
    %125 = vector.broadcast %cst_60 : f32 to vector<256x256xf32>
    %126 = arith.mulf %124, %125 : vector<256x256xf32>
    %127 = math.floor %126 : vector<256x256xf32>
    %cst_61 = arith.constant 1.600000e+01 : f32
    %128 = vector.broadcast %cst_61 : f32 to vector<256x256xf32>
    %129 = arith.mulf %127, %128 : vector<256x256xf32>
    %130 = arith.subf %122, %129 : vector<256x256xf32>
    %131 = vector.broadcast %120 : vector<1x256xf32> to vector<256x256xf32>
    %132 = arith.subf %131, %127 : vector<256x256xf32>
    %133 = math.absf %132 : vector<256x256xf32>
    %cst_62 = arith.constant 1.000000e+00 : f32
    %134 = vector.broadcast %cst_62 : f32 to vector<256x256xf32>
    %135 = arith.subf %134, %133 : vector<256x256xf32>
    %cst_63 = arith.constant 0.000000e+00 : f32
    %136 = vector.broadcast %cst_63 : f32 to vector<256x256xf32>
    %137 = arith.maximumf %135, %136 : vector<256x256xf32>
    %138 = vector.broadcast %114 : vector<1x256xf32> to vector<256x256xf32>
    %139 = arith.subf %138, %130 : vector<256x256xf32>
    %140 = math.absf %139 : vector<256x256xf32>
    %cst_64 = arith.constant 1.000000e+00 : f32
    %141 = vector.broadcast %cst_64 : f32 to vector<256x256xf32>
    %142 = arith.subf %141, %140 : vector<256x256xf32>
    %cst_65 = arith.constant 0.000000e+00 : f32
    %143 = vector.broadcast %cst_65 : f32 to vector<256x256xf32>
    %144 = arith.maximumf %142, %143 : vector<256x256xf32>
    %145 = arith.mulf %137, %144 : vector<256x256xf32>
    %146 = arith.truncf %145 : vector<256x256xf32> to vector<256x256xbf16>
    %147 = arith.truncf %89 : vector<8x256xf32> to vector<8x256xbf16>
    %cst_66 = arith.constant dense<0.000000e+00> : vector<8x256xf32>
    %148 = tpu.matmul %147, %146, %cst_66 {dimension_numbers = #tpu.dot_dimension_numbers<[1], [0], [0], [1], [0, 0, 1, 1], [], []>} : vector<8x256xbf16>, vector<256x256xbf16>, vector<8x256xf32> -> vector<8x256xf32>
    %149 = tpu.concatenate %27, %148 in 0 : vector<8x256xf32>, vector<8x256xf32> -> vector<16x256xf32>
    %150 = arith.truncf %149 : vector<16x256xf32> to vector<16x256xbf16>
    %c0_67 = arith.constant 0 : index
    %c0_68 = arith.constant 0 : index
    %151 = vector.load %arg15[%c0_67, %c0_68] : memref<8x16xbf16, #tpu.memory_space<vmem>>, vector<8x16xbf16>
    %cst_69 = arith.constant dense<0.000000e+00> : vector<8x256xf32>
    %152 = tpu.matmul %151, %150, %cst_69 {dimension_numbers = #tpu.dot_dimension_numbers<[1], [0], [0], [1], [0, 0, 1, 1], [], []>} : vector<8x16xbf16>, vector<16x256xbf16>, vector<8x256xf32> -> vector<8x256xf32>
    %c0_70 = arith.constant 0 : index
    %c0_71 = arith.constant 0 : index
    %153 = vector.load %arg16[%c0_70, %c0_71] : memref<8x1xf32, #tpu.memory_space<vmem>>, vector<8x1xf32>
    %154 = vector.broadcast %153 : vector<8x1xf32> to vector<8x256xf32>
    %155 = arith.addf %152, %154 : vector<8x256xf32>
    %cst_72 = arith.constant 0.000000e+00 : f32
    %156 = vector.broadcast %cst_72 : f32 to vector<8x256xf32>
    %157 = arith.maximumf %155, %156 : vector<8x256xf32>
    %c17_i32 = arith.constant 17 : i32
    %158 = tpu.dynamic_rotate %157 by %c17_i32 dim 1 : vector<8x256xf32>, i32 -> vector<8x256xf32>
    %c16_i32 = arith.constant 16 : i32
    %159 = tpu.dynamic_rotate %157 by %c16_i32 dim 1 : vector<8x256xf32>, i32 -> vector<8x256xf32>
    %c15_i32 = arith.constant 15 : i32
    %160 = tpu.dynamic_rotate %157 by %c15_i32 dim 1 : vector<8x256xf32>, i32 -> vector<8x256xf32>
    %c1_i32 = arith.constant 1 : i32
    %161 = tpu.dynamic_rotate %157 by %c1_i32 dim 1 : vector<8x256xf32>, i32 -> vector<8x256xf32>
    %c255_i32 = arith.constant 255 : i32
    %162 = tpu.dynamic_rotate %157 by %c255_i32 dim 1 : vector<8x256xf32>, i32 -> vector<8x256xf32>
    %c241_i32 = arith.constant 241 : i32
    %163 = tpu.dynamic_rotate %157 by %c241_i32 dim 1 : vector<8x256xf32>, i32 -> vector<8x256xf32>
    %c240_i32 = arith.constant 240 : i32
    %164 = tpu.dynamic_rotate %157 by %c240_i32 dim 1 : vector<8x256xf32>, i32 -> vector<8x256xf32>
    %c239_i32 = arith.constant 239 : i32
    %165 = tpu.dynamic_rotate %157 by %c239_i32 dim 1 : vector<8x256xf32>, i32 -> vector<8x256xf32>
    %166 = tpu.concatenate %158, %159, %160, %161, %157, %162, %163, %164, %165 in 0 : vector<8x256xf32>, vector<8x256xf32>, vector<8x256xf32>, vector<8x256xf32>, vector<8x256xf32>, vector<8x256xf32>, vector<8x256xf32>, vector<8x256xf32>, vector<8x256xf32> -> vector<72x256xf32>
    %c0_73 = arith.constant 0 : index
    %c0_74 = arith.constant 0 : index
    %167 = vector.load %arg12[%c0_73, %c0_74] : memref<72x256xf32, #tpu.memory_space<vmem>>, vector<72x256xf32>
    %168 = arith.mulf %166, %167 : vector<72x256xf32>
    %169 = arith.truncf %168 : vector<72x256xf32> to vector<72x256xbf16>
    %c0_75 = arith.constant 0 : index
    %c0_76 = arith.constant 0 : index
    %170 = vector.load %arg17[%c0_75, %c0_76] : memref<8x72xbf16, #tpu.memory_space<vmem>>, vector<8x72xbf16>
    %cst_77 = arith.constant dense<0.000000e+00> : vector<8x256xf32>
    %171 = tpu.matmul %170, %169, %cst_77 {dimension_numbers = #tpu.dot_dimension_numbers<[1], [0], [0], [1], [0, 0, 1, 1], [], []>} : vector<8x72xbf16>, vector<72x256xbf16>, vector<8x256xf32> -> vector<8x256xf32>
    %c0_78 = arith.constant 0 : index
    %c0_79 = arith.constant 0 : index
    %172 = vector.load %arg18[%c0_78, %c0_79] : memref<8x1xf32, #tpu.memory_space<vmem>>, vector<8x1xf32>
    %173 = vector.broadcast %172 : vector<8x1xf32> to vector<8x256xf32>
    %174 = arith.addf %171, %173 : vector<8x256xf32>
    %cst_80 = arith.constant 0.000000e+00 : f32
    %175 = vector.broadcast %cst_80 : f32 to vector<8x256xf32>
    %176 = arith.maximumf %174, %175 : vector<8x256xf32>
    %177 = arith.addf %176, %3 : vector<8x256xf32>
    %c0_81 = arith.constant 0 : index
    %c0_82 = arith.constant 0 : index
    %c0_83 = arith.constant 0 : index
    %178 = vector.load %arg20[%c0_81, %c0_82, %c0_83] : memref<1x8x256xf32, #tpu.memory_space<vmem>>, vector<1x8x256xf32>
    %179 = vector.shape_cast %178 : vector<1x8x256xf32> to vector<8x256xf32>
    %180 = vector.shape_cast %177 : vector<8x256xf32> to vector<1x8x256xf32>
    tpu.vector_store %arg20[%c0_81, %c0_82, %c0_83], %180 {strides = array<i32>} : memref<1x8x256xf32, #tpu.memory_space<vmem>>, vector<1x8x256xf32>,
    %c0_84 = arith.constant 0 : index
    %c0_85 = arith.constant 0 : index
    %181 = vector.load %arg10[%c0_84, %c0_85] : memref<256x1024xf32, #tpu.memory_space<vmem>>, vector<256x1024xf32>
    %cst_86 = arith.constant dense<0.000000e+00> : vector<8x1024xf32>
    %182 = tpu.matmul %176, %181, %cst_86 {dimension_numbers = #tpu.dot_dimension_numbers<[1], [0], [0], [1], [0, 0, 1, 1], [], []>} : vector<8x256xf32>, vector<256x1024xf32>, vector<8x1024xf32> -> vector<8x1024xf32>
    %183 = arith.addf %182, %1 : vector<8x1024xf32>
    %c0_87 = arith.constant 0 : index
    %c0_88 = arith.constant 0 : index
    %c0_89 = arith.constant 0 : index
    %184 = vector.load %arg19[%c0_87, %c0_88, %c0_89] : memref<1x8x1024xf32, #tpu.memory_space<vmem>>, vector<1x8x1024xf32>
    %185 = vector.shape_cast %184 : vector<1x8x1024xf32> to vector<8x1024xf32>
    %186 = vector.shape_cast %183 : vector<8x1024xf32> to vector<1x8x1024xf32>
    tpu.vector_store %arg19[%c0_87, %c0_88, %c0_89], %186 {strides = array<i32>} : memref<1x8x1024xf32, #tpu.memory_space<vmem>>, vector<1x8x1024xf32>,
    %c255_i32_90 = arith.constant 255 : i32
    %187 = tpu.dynamic_rotate %176 by %c255_i32_90 dim 1 : vector<8x256xf32>, i32 -> vector<8x256xf32>
    %188 = arith.maximumf %176, %187 : vector<8x256xf32>
    %c240_i32_91 = arith.constant 240 : i32
    %189 = tpu.dynamic_rotate %176 by %c240_i32_91 dim 1 : vector<8x256xf32>, i32 -> vector<8x256xf32>
    %c239_i32_92 = arith.constant 239 : i32
    %190 = tpu.dynamic_rotate %176 by %c239_i32_92 dim 1 : vector<8x256xf32>, i32 -> vector<8x256xf32>
    %191 = arith.maximumf %189, %190 : vector<8x256xf32>
    %192 = arith.maximumf %188, %191 : vector<8x256xf32>
    %c0_93 = arith.constant 0 : index
    %c0_94 = arith.constant 0 : index
    %193 = vector.load %arg11[%c0_93, %c0_94] : memref<256x64xf32, #tpu.memory_space<vmem>>, vector<256x64xf32>
    %cst_95 = arith.constant dense<0.000000e+00> : vector<8x64xf32>
    %194 = tpu.matmul %192, %193, %cst_95 {dimension_numbers = #tpu.dot_dimension_numbers<[1], [0], [0], [1], [0, 0, 1, 1], [], []>} : vector<8x256xf32>, vector<256x64xf32>, vector<8x64xf32> -> vector<8x64xf32>
    %195 = arith.addf %194, %5 : vector<8x64xf32>
    %c0_96 = arith.constant 0 : index
    %c0_97 = arith.constant 0 : index
    %c0_98 = arith.constant 0 : index
    %196 = vector.load %arg21[%c0_96, %c0_97, %c0_98] : memref<1x8x64xf32, #tpu.memory_space<vmem>>, vector<1x8x64xf32>
    %197 = vector.shape_cast %196 : vector<1x8x64xf32> to vector<8x64xf32>
    %198 = vector.shape_cast %195 : vector<8x64xf32> to vector<1x8x64xf32>
    tpu.vector_store %arg21[%c0_96, %c0_97, %c0_98], %198 {strides = array<i32>} : memref<1x8x64xf32, #tpu.memory_space<vmem>>, vector<1x8x64xf32>,
    return
  }
  func.func @transform_0(%arg0: i32) -> (i32, i32, i32) {
    %c0_i32 = arith.constant 0 : i32
    %c0_i32_0 = arith.constant 0 : i32
    %c0_i32_1 = arith.constant 0 : i32
    return %arg0, %c0_i32, %c0_i32_0 : i32, i32, i32
  }
  func.func @transform_1(%arg0: i32) -> (i32, i32, i32) {
    %c0_i32 = arith.constant 0 : i32
    %c0_i32_0 = arith.constant 0 : i32
    %c0_i32_1 = arith.constant 0 : i32
    return %arg0, %c0_i32, %c0_i32_0 : i32, i32, i32
  }
  func.func @transform_2(%arg0: i32) -> (i32, i32, i32) {
    %c0_i32 = arith.constant 0 : i32
    %c0_i32_0 = arith.constant 0 : i32
    %c0_i32_1 = arith.constant 0 : i32
    return %arg0, %c0_i32, %c0_i32_0 : i32, i32, i32
  }
  func.func @transform_3(%arg0: i32) -> (i32, i32, i32) {
    %c0_i32 = arith.constant 0 : i32
    %c0_i32_0 = arith.constant 0 : i32
    %c0_i32_1 = arith.constant 0 : i32
    return %arg0, %c0_i32, %c0_i32_0 : i32, i32, i32
  }
  func.func @transform_4(%arg0: i32) -> (i32, i32, i32) {
    %c0_i32 = arith.constant 0 : i32
    %c0_i32_0 = arith.constant 0 : i32
    %c0_i32_1 = arith.constant 0 : i32
    return %arg0, %c0_i32, %c0_i32_0 : i32, i32, i32
  }
  func.func @transform_5(%arg0: i32) -> (i32, i32, i32) {
    %c0_i32 = arith.constant 0 : i32
    %c0_i32_0 = arith.constant 0 : i32
    %c0_i32_1 = arith.constant 0 : i32
    return %arg0, %c0_i32, %c0_i32_0 : i32, i32, i32
  }
  func.func @transform_6(%arg0: i32) -> (i32, i32, i32) {
    %c0_i32 = arith.constant 0 : i32
    %c0_i32_0 = arith.constant 0 : i32
    %c0_i32_1 = arith.constant 0 : i32
    return %arg0, %c0_i32, %c0_i32_0 : i32, i32, i32
  }
  func.func @transform_7(%arg0: i32) -> (i32, i32) {
    %c0_i32 = arith.constant 0 : i32
    %c0_i32_0 = arith.constant 0 : i32
    %c0_i32_1 = arith.constant 0 : i32
    return %c0_i32, %c0_i32_0 : i32, i32
  }
  func.func @transform_8(%arg0: i32) -> (i32, i32) {
    %c0_i32 = arith.constant 0 : i32
    %c0_i32_0 = arith.constant 0 : i32
    %c0_i32_1 = arith.constant 0 : i32
    return %c0_i32, %c0_i32_0 : i32, i32
  }
  func.func @transform_9(%arg0: i32) -> (i32, i32) {
    %c0_i32 = arith.constant 0 : i32
    %c0_i32_0 = arith.constant 0 : i32
    %c0_i32_1 = arith.constant 0 : i32
    return %c0_i32, %c0_i32_0 : i32, i32
  }
  func.func @transform_10(%arg0: i32) -> (i32, i32) {
    %c0_i32 = arith.constant 0 : i32
    %c0_i32_0 = arith.constant 0 : i32
    %c0_i32_1 = arith.constant 0 : i32
    return %c0_i32, %c0_i32_0 : i32, i32
  }
  func.func @transform_11(%arg0: i32) -> (i32, i32) {
    %c0_i32 = arith.constant 0 : i32
    %c0_i32_0 = arith.constant 0 : i32
    %c0_i32_1 = arith.constant 0 : i32
    return %c0_i32, %c0_i32_0 : i32, i32
  }
  func.func @transform_12(%arg0: i32) -> (i32, i32) {
    %c0_i32 = arith.constant 0 : i32
    %c0_i32_0 = arith.constant 0 : i32
    %c0_i32_1 = arith.constant 0 : i32
    return %c0_i32, %c0_i32_0 : i32, i32
  }
  func.func @transform_13(%arg0: i32) -> (i32, i32) {
    %c0_i32 = arith.constant 0 : i32
    %c0_i32_0 = arith.constant 0 : i32
    %c0_i32_1 = arith.constant 0 : i32
    return %c0_i32, %c0_i32_0 : i32, i32
  }
  func.func @transform_14(%arg0: i32) -> (i32, i32) {
    %c0_i32 = arith.constant 0 : i32
    %c0_i32_0 = arith.constant 0 : i32
    %c0_i32_1 = arith.constant 0 : i32
    return %c0_i32, %c0_i32_0 : i32, i32
  }
  func.func @transform_15(%arg0: i32) -> (i32, i32) {
    %c0_i32 = arith.constant 0 : i32
    %c0_i32_0 = arith.constant 0 : i32
    %c0_i32_1 = arith.constant 0 : i32
    return %c0_i32, %c0_i32_0 : i32, i32
  }
  func.func @transform_16(%arg0: i32) -> (i32, i32) {
    %c0_i32 = arith.constant 0 : i32
    %c0_i32_0 = arith.constant 0 : i32
    %c0_i32_1 = arith.constant 0 : i32
    return %c0_i32, %c0_i32_0 : i32, i32
  }
  func.func @transform_17(%arg0: i32) -> (i32, i32) {
    %c0_i32 = arith.constant 0 : i32
    %c0_i32_0 = arith.constant 0 : i32
    %c0_i32_1 = arith.constant 0 : i32
    return %c0_i32, %c0_i32_0 : i32, i32
  }
  func.func @transform_18(%arg0: i32) -> (i32, i32, i32) {
    %c0_i32 = arith.constant 0 : i32
    %c0_i32_0 = arith.constant 0 : i32
    %c0_i32_1 = arith.constant 0 : i32
    return %arg0, %c0_i32, %c0_i32_0 : i32, i32, i32
  }
  func.func @transform_19(%arg0: i32) -> (i32, i32, i32) {
    %c0_i32 = arith.constant 0 : i32
    %c0_i32_0 = arith.constant 0 : i32
    %c0_i32_1 = arith.constant 0 : i32
    return %arg0, %c0_i32, %c0_i32_0 : i32, i32, i32
  }
  func.func @transform_20(%arg0: i32) -> (i32, i32, i32) {
    %c0_i32 = arith.constant 0 : i32
    %c0_i32_0 = arith.constant 0 : i32
    %c0_i32_1 = arith.constant 0 : i32
    return %arg0, %c0_i32, %c0_i32_0 : i32, i32, i32
  }
}

</mosaic_0001>

<llo_original>
// kernel: bfp_tcea_forward.1
$region0: #{bfp_tcea_forward.1}
  #allocation0 [shape = 'u32[]', space=smem, size = 0x4, offset = 0x4, fixed_abs, tag = 'smem constant byte address 0x4 - core index']
  #allocation1 [shape = 'u32[72,128]{1,0:T(1,128)}', space=vmem, size = 0x9000, scoped, tag = 'internal scratch']
  %s0 = inlined_call_operand.vmem [shape: f32[2,8,1024], index: 0, kind: input, shape index: {}]
  %s1 = inlined_call_operand.vmem [shape: f32[2,8,256], index: 1, kind: input, shape index: {}]
  %s2 = inlined_call_operand.vmem [shape: f32[2,8,64], index: 2, kind: input, shape index: {}]
  %s3 = inlined_call_operand.vmem [shape: f32[2,8,1024], index: 3, kind: input, shape index: {}]
  %s4 = inlined_call_operand.vmem [shape: f32[2,8,256], index: 4, kind: input, shape index: {}]
  %s5 = inlined_call_operand.vmem [shape: f32[2,8,64], index: 5, kind: input, shape index: {}]
  %s6 = inlined_call_operand.vmem [shape: f32[2,8,256], index: 6, kind: input, shape index: {}]
  %s7 = inlined_call_operand.hbm [shape: f32[1024,256], index: 7, kind: input, shape index: {}]
  %s8 = inlined_call_operand.vmem [shape: f32[64,256], index: 8, kind: input, shape index: {}]
  %s9 = inlined_call_operand.hbm [shape: f32[256,1024], index: 9, kind: input, shape index: {}]
  %s10 = inlined_call_operand.vmem [shape: f32[256,64], index: 10, kind: input, shape index: {}]
  %s11 = inlined_call_operand.vmem [shape: f32[72,256], index: 11, kind: input, shape index: {}]
  %s12 = inlined_call_operand.vmem [shape: bf16[2,24], index: 12, kind: input, shape index: {}]
  %s13 = inlined_call_operand.vmem [shape: f32[2,1], index: 13, kind: input, shape index: {}]
  %s14 = inlined_call_operand.vmem [shape: bf16[8,16], index: 14, kind: input, shape index: {}]
  %s15 = inlined_call_operand.vmem [shape: f32[8,1], index: 15, kind: input, shape index: {}]
  %s16 = inlined_call_operand.vmem [shape: bf16[8,72], index: 16, kind: input, shape index: {}]
  %s17 = inlined_call_operand.vmem [shape: f32[8,1], index: 17, kind: input, shape index: {}]
  %s18 = inlined_call_operand.vmem [shape: f32[2,8,1024], index: 18, kind: output, shape index: {0}]
  %s19 = inlined_call_operand.vmem [shape: f32[2,8,256], index: 19, kind: output, shape index: {1}]
  %s20 = inlined_call_operand.vmem [shape: f32[2,8,64], index: 20, kind: output, shape index: {2}]
  %21 = xla_tuple %s18, %s19, %s20
  %s22 = sld [smem:[#allocation0]]
  $region129: #{bfp_tcea_forward.1} parent=0
    _
  %s24 = ssub.s32 1, %s22
  %s25 = scalar_select 0, %s24, %s22
  $region1: #{bfp_tcea_forward.1} parent=0
    #allocation2 [shape = 'u8[1048576]{0}', space=vmem, size = 0x100000, scoped, tag = 'input window, operand 7, single buffered']
    #allocation3 [shape = 's32[2]{0}', space=sflag, size = 0x8, scoped, tag = 'scoped memory for bfp_tcea_forward.1']
    #allocation4 [shape = 'u8[1048576]{0}', space=vmem, size = 0x100000, scoped, tag = 'input window, operand 9, single buffered']
    #allocation5 [shape = 's32[1]{0}', space=sflag, size = 0x4, scoped, tag = 'scoped memory for bfp_tcea_forward.1']
    %26 = vsyncpa [#allocation3], 0
    %27 = vsyncpa [#allocation5], 0
    loop: start=0, step=1, limit=4
    $region2: #{bfp_tcea_forward.1} parent=1 // loop_pre_header
      _
    $region3: #{bfp_tcea_forward.1} parent=1 // loop_header
      %s29 = sphi 0, %s33
      %p30 = scmp.ge.s32.totalorder %s29, 4
      %s39 = sphi 0, %s41
      %s42 = sphi 0, %s39
      %s43 = sphi 0, %s42
      %s59 = sphi 0, %s43
      %s65 = sphi 0, %s67
      %s68 = sphi 0, %s65
      %s69 = sphi 0, %s68
      %s85 = sphi 0, %s69
      %s91 = sphi 0, %s93
      %s94 = sphi 0, %s91
      %s95 = sphi 0, %s94
      %s111 = sphi 0, %s95
      %s117 = sphi 0, %s119
      %s120 = sphi 0, %s117
      %s121 = sphi 0, %s120
      %s137 = sphi 0, %s121
      %s143 = sphi 0, %s145
      %s146 = sphi 0, %s143
      %s147 = sphi 0, %s146
      %s163 = sphi 0, %s147
      %s169 = sphi 0, %s171
      %s172 = sphi 0, %s169
      %s173 = sphi 0, %s172
      %s189 = sphi 0, %s173
      %s195 = sphi 0, %s197
      %s198 = sphi 0, %s195
      %s199 = sphi 0, %s198
      %s215 = sphi 0, %s199
      %s219 = sphi 0, %s219
      %s221 = sphi 0, %s219
      %s222 = sphi 0, %s221
      %s236 = sphi 0, %s222
      %s240 = sphi 0, %s240
      %s242 = sphi 0, %s240
      %s243 = sphi 0, %s242
      %s257 = sphi 0, %s243
      %s261 = sphi 0, %s261
      %s263 = sphi 0, %s261
      %s264 = sphi 0, %s263
      %s278 = sphi 0, %s264
      %s282 = sphi 0, %s282
      %s284 = sphi 0, %s282
      %s285 = sphi 0, %s284
      %s299 = sphi 0, %s285
      %s303 = sphi 0, %s303
      %s305 = sphi 0, %s303
      %s306 = sphi 0, %s305
      %s320 = sphi 0, %s306
      %s324 = sphi 0, %s324
      %s326 = sphi 0, %s324
      %s327 = sphi 0, %s326
      %s341 = sphi 0, %s327
      %s345 = sphi 0, %s345
      %s347 = sphi 0, %s345
      %s348 = sphi 0, %s347
      %s362 = sphi 0, %s348
      %s366 = sphi 0, %s366
      %s368 = sphi 0, %s366
      %s369 = sphi 0, %s368
      %s383 = sphi 0, %s369
      %s387 = sphi 0, %s387
      %s389 = sphi 0, %s387
      %s390 = sphi 0, %s389
      %s404 = sphi 0, %s390
      %s408 = sphi 0, %s408
      %s410 = sphi 0, %s408
      %s411 = sphi 0, %s410
      %s425 = sphi 0, %s411
      %s429 = sphi 0, %s429
      %s431 = sphi 0, %s429
      %s432 = sphi 0, %s431
      %s446 = sphi 0, %s432
      %s452 = sphi 0, %s454
      %s455 = sphi 0, %s452
      %s456 = sphi 0, %s455
      %s472 = sphi 0, %s456
      %s478 = sphi 0, %s480
      %s481 = sphi 0, %s478
      %s482 = sphi 0, %s481
      %s498 = sphi 0, %s482
      %s504 = sphi 0, %s506
      %s507 = sphi 0, %s504
      %s508 = sphi 0, %s507
      %s524 = sphi 0, %s508
    $region4: #{bfp_tcea_forward.1} parent=1 // loop_header_branch
      %32 = sbr.rel (%p30) target = $region8
    $region5: #{bfp_tcea_forward.1} parent=1 // loop_body
      %s34 = ssub.s32 %s29, 1
      %s35 = ssub.s32 %s29, 2
      %s36 = sadd.s32 %s29, 1
      %s37 = ssub.s32 %s29, %s36
      %p38 = scmp.eq.s32.totalorder %s37, 0
      %s40 = sadd.s32 %s39, 1
      %s41 = scalar_select %p38, %s39, %s40
      %p44 = pneg %p38
      %p45 = scmp.eq.s32.totalorder %s29, 1
      %p46 = por %p44, %p45
      %p47 = scmp.ne.s32.totalorder %s39, %s42
      %p48 = scmp.eq.s32.totalorder %s29, 0
      %p49 = por %p47, %p48
      %p50 = scmp.ne.s32.totalorder %s39, %s42
      %p51 = scmp.eq.s32.totalorder %s34, 1
      %p52 = por %p50, %p51
      %p53 = scmp.ne.s32.totalorder %s42, %s43
      %p54 = scmp.eq.s32.totalorder %s34, 0
      %p55 = por %p53, %p54
      %p56 = scmp.ne.s32.totalorder %s42, %s43
      %p57 = scmp.eq.s32.totalorder %s35, 1
      %p58 = por %p56, %p57
      %p60 = scmp.ne.s32.totalorder %s43, %s59
      %p61 = scmp.eq.s32.totalorder %s35, 0
      %p62 = por %p60, %p61
      %s63 = ssub.s32 %s29, %s36
      %p64 = scmp.eq.s32.totalorder %s63, 0
      %s66 = sadd.s32 %s65, 1
      %s67 = scalar_select %p64, %s65, %s66
      %p70 = pneg %p64
      %p71 = scmp.eq.s32.totalorder %s29, 1
      %p72 = por %p70, %p71
      %p73 = scmp.ne.s32.totalorder %s65, %s68
      %p74 = scmp.eq.s32.totalorder %s29, 0
      %p75 = por %p73, %p74
      %p76 = scmp.ne.s32.totalorder %s65, %s68
      %p77 = scmp.eq.s32.totalorder %s34, 1
      %p78 = por %p76, %p77
      %p79 = scmp.ne.s32.totalorder %s68, %s69
      %p80 = scmp.eq.s32.totalorder %s34, 0
      %p81 = por %p79, %p80
      %p82 = scmp.ne.s32.totalorder %s68, %s69
      %p83 = scmp.eq.s32.totalorder %s35, 1
      %p84 = por %p82, %p83
      %p86 = scmp.ne.s32.totalorder %s69, %s85
      %p87 = scmp.eq.s32.totalorder %s35, 0
      %p88 = por %p86, %p87
      %s89 = ssub.s32 %s29, %s36
      %p90 = scmp.eq.s32.totalorder %s89, 0
      %s92 = sadd.s32 %s91, 1
      %s93 = scalar_select %p90, %s91, %s92
      %p96 = pneg %p90
      %p97 = scmp.eq.s32.totalorder %s29, 1
      %p98 = por %p96, %p97
      %p99 = scmp.ne.s32.totalorder %s91, %s94
      %p100 = scmp.eq.s32.totalorder %s29, 0
      %p101 = por %p99, %p100
      %p102 = scmp.ne.s32.totalorder %s91, %s94
      %p103 = scmp.eq.s32.totalorder %s34, 1
      %p104 = por %p102, %p103
      %p105 = scmp.ne.s32.totalorder %s94, %s95
      %p106 = scmp.eq.s32.totalorder %s34, 0
      %p107 = por %p105, %p106
      %p108 = scmp.ne.s32.totalorder %s94, %s95
      %p109 = scmp.eq.s32.totalorder %s35, 1
      %p110 = por %p108, %p109
      %p112 = scmp.ne.s32.totalorder %s95, %s111
      %p113 = scmp.eq.s32.totalorder %s35, 0
      %p114 = por %p112, %p113
      %s115 = ssub.s32 %s29, %s36
      %p116 = scmp.eq.s32.totalorder %s115, 0
      %s118 = sadd.s32 %s117, 1
      %s119 = scalar_select %p116, %s117, %s118
      %p122 = pneg %p116
      %p123 = scmp.eq.s32.totalorder %s29, 1
      %p124 = por %p122, %p123
      %p125 = scmp.ne.s32.totalorder %s117, %s120
      %p126 = scmp.eq.s32.totalorder %s29, 0
      %p127 = por %p125, %p126
      %p128 = scmp.ne.s32.totalorder %s117, %s120
      %p129 = scmp.eq.s32.totalorder %s34, 1
      %p130 = por %p128, %p129
      %p131 = scmp.ne.s32.totalorder %s120, %s121
      %p132 = scmp.eq.s32.totalorder %s34, 0
      %p133 = por %p131, %p132
      %p134 = scmp.ne.s32.totalorder %s120, %s121
      %p135 = scmp.eq.s32.totalorder %s35, 1
      %p136 = por %p134, %p135
      %p138 = scmp.ne.s32.totalorder %s121, %s137
      %p139 = scmp.eq.s32.totalorder %s35, 0
      %p140 = por %p138, %p139
      %s141 = ssub.s32 %s29, %s36
      %p142 = scmp.eq.s32.totalorder %s141, 0
      %s144 = sadd.s32 %s143, 1
      %s145 = scalar_select %p142, %s143, %s144
      %p148 = pneg %p142
      %p149 = scmp.eq.s32.totalorder %s29, 1
      %p150 = por %p148, %p149
      %p151 = scmp.ne.s32.totalorder %s143, %s146
      %p152 = scmp.eq.s32.totalorder %s29, 0
      %p153 = por %p151, %p152
      %p154 = scmp.ne.s32.totalorder %s143, %s146
      %p155 = scmp.eq.s32.totalorder %s34, 1
      %p156 = por %p154, %p155
      %p157 = scmp.ne.s32.totalorder %s146, %s147
      %p158 = scmp.eq.s32.totalorder %s34, 0
      %p159 = por %p157, %p158
      %p160 = scmp.ne.s32.totalorder %s146, %s147
      %p161 = scmp.eq.s32.totalorder %s35, 1
      %p162 = por %p160, %p161
      %p164 = scmp.ne.s32.totalorder %s147, %s163
      %p165 = scmp.eq.s32.totalorder %s35, 0
      %p166 = por %p164, %p165
      %s167 = ssub.s32 %s29, %s36
      %p168 = scmp.eq.s32.totalorder %s167, 0
      %s170 = sadd.s32 %s169, 1
      %s171 = scalar_select %p168, %s169, %s170
      %p174 = pneg %p168
      %p175 = scmp.eq.s32.totalorder %s29, 1
      %p176 = por %p174, %p175
      %p177 = scmp.ne.s32.totalorder %s169, %s172
      %p178 = scmp.eq.s32.totalorder %s29, 0
      %p179 = por %p177, %p178
      %p180 = scmp.ne.s32.totalorder %s169, %s172
      %p181 = scmp.eq.s32.totalorder %s34, 1
      %p182 = por %p180, %p181
      %p183 = scmp.ne.s32.totalorder %s172, %s173
      %p184 = scmp.eq.s32.totalorder %s34, 0
      %p185 = por %p183, %p184
      %p186 = scmp.ne.s32.totalorder %s172, %s173
      %p187 = scmp.eq.s32.totalorder %s35, 1
      %p188 = por %p186, %p187
      %p190 = scmp.ne.s32.totalorder %s173, %s189
      %p191 = scmp.eq.s32.totalorder %s35, 0
      %p192 = por %p190, %p191
      %s193 = ssub.s32 %s29, %s36
      %p194 = scmp.eq.s32.totalorder %s193, 0
      %s196 = sadd.s32 %s195, 1
      %s197 = scalar_select %p194, %s195, %s196
      %p200 = pneg %p194
      %p201 = scmp.eq.s32.totalorder %s29, 1
      %p202 = por %p200, %p201
      %p203 = scmp.ne.s32.totalorder %s195, %s198
      %p204 = scmp.eq.s32.totalorder %s29, 0
      %p205 = por %p203, %p204
      %p206 = scmp.ne.s32.totalorder %s195, %s198
      %p207 = scmp.eq.s32.totalorder %s34, 1
      %p208 = por %p206, %p207
      %p209 = scmp.ne.s32.totalorder %s198, %s199
      %p210 = scmp.eq.s32.totalorder %s34, 0
      %p211 = por %p209, %p210
      %p212 = scmp.ne.s32.totalorder %s198, %s199
      %p213 = scmp.eq.s32.totalorder %s35, 1
      %p214 = por %p212, %p213
      %p216 = scmp.ne.s32.totalorder %s199, %s215
      %p217 = scmp.eq.s32.totalorder %s35, 0
      %p218 = por %p216, %p217
      %s220 = sadd.s32 %s219, 1
      %p223 = scmp.eq.s32.totalorder %s29, 1
      %p224 = scmp.ne.s32.totalorder %s219, %s221
      %p225 = scmp.eq.s32.totalorder %s29, 0
      %p226 = por %p224, %p225
      %p227 = scmp.ne.s32.totalorder %s219, %s221
      %p228 = scmp.eq.s32.totalorder %s34, 1
      %p229 = por %p227, %p228
      %p230 = scmp.ne.s32.totalorder %s221, %s222
      %p231 = scmp.eq.s32.totalorder %s34, 0
      %p232 = por %p230, %p231
      %p233 = scmp.ne.s32.totalorder %s221, %s222
      %p234 = scmp.eq.s32.totalorder %s35, 1
      %p235 = por %p233, %p234
      %p237 = scmp.ne.s32.totalorder %s222, %s236
      %p238 = scmp.eq.s32.totalorder %s35, 0
      %p239 = por %p237, %p238
      %s241 = sadd.s32 %s240, 1
      %p244 = scmp.eq.s32.totalorder %s29, 1
      %p245 = scmp.ne.s32.totalorder %s240, %s242
      %p246 = scmp.eq.s32.totalorder %s29, 0
      %p247 = por %p245, %p246
      %p248 = scmp.ne.s32.totalorder %s240, %s242
      %p249 = scmp.eq.s32.totalorder %s34, 1
      %p250 = por %p248, %p249
      %p251 = scmp.ne.s32.totalorder %s242, %s243
      %p252 = scmp.eq.s32.totalorder %s34, 0
      %p253 = por %p251, %p252
      %p254 = scmp.ne.s32.totalorder %s242, %s243
      %p255 = scmp.eq.s32.totalorder %s35, 1
      %p256 = por %p254, %p255
      %p258 = scmp.ne.s32.totalorder %s243, %s257
      %p259 = scmp.eq.s32.totalorder %s35, 0
      %p260 = por %p258, %p259
      %s262 = sadd.s32 %s261, 1
      %p265 = scmp.eq.s32.totalorder %s29, 1
      %p266 = scmp.ne.s32.totalorder %s261, %s263
      %p267 = scmp.eq.s32.totalorder %s29, 0
      %p268 = por %p266, %p267
      %p269 = scmp.ne.s32.totalorder %s261, %s263
      %p270 = scmp.eq.s32.totalorder %s34, 1
      %p271 = por %p269, %p270
      %p272 = scmp.ne.s32.totalorder %s263, %s264
      %p273 = scmp.eq.s32.totalorder %s34, 0
      %p274 = por %p272, %p273
      %p275 = scmp.ne.s32.totalorder %s263, %s264
      %p276 = scmp.eq.s32.totalorder %s35, 1
      %p277 = por %p275, %p276
      %p279 = scmp.ne.s32.totalorder %s264, %s278
      %p280 = scmp.eq.s32.totalorder %s35, 0
      %p281 = por %p279, %p280
      %s283 = sadd.s32 %s282, 1
      %p286 = scmp.eq.s32.totalorder %s29, 1
      %p287 = scmp.ne.s32.totalorder %s282, %s284
      %p288 = scmp.eq.s32.totalorder %s29, 0
      %p289 = por %p287, %p288
      %p290 = scmp.ne.s32.totalorder %s282, %s284
      %p291 = scmp.eq.s32.totalorder %s34, 1
      %p292 = por %p290, %p291
      %p293 = scmp.ne.s32.totalorder %s284, %s285
      %p294 = scmp.eq.s32.totalorder %s34, 0
      %p295 = por %p293, %p294
      %p296 = scmp.ne.s32.totalorder %s284, %s285
      %p297 = scmp.eq.s32.totalorder %s35, 1
      %p298 = por %p296, %p297
      %p300 = scmp.ne.s32.totalorder %s285, %s299
      %p301 = scmp.eq.s32.totalorder %s35, 0
      %p302 = por %p300, %p301
      %s304 = sadd.s32 %s303, 1
      %p307 = scmp.eq.s32.totalorder %s29, 1
      %p308 = scmp.ne.s32.totalorder %s303, %s305
      %p309 = scmp.eq.s32.totalorder %s29, 0
      %p310 = por %p308, %p309
      %p311 = scmp.ne.s32.totalorder %s303, %s305
      %p312 = scmp.eq.s32.totalorder %s34, 1
      %p313 = por %p311, %p312
      %p314 = scmp.ne.s32.totalorder %s305, %s306
      %p315 = scmp.eq.s32.totalorder %s34, 0
      %p316 = por %p314, %p315
      %p317 = scmp.ne.s32.totalorder %s305, %s306
      %p318 = scmp.eq.s32.totalorder %s35, 1
      %p319 = por %p317, %p318
      %p321 = scmp.ne.s32.totalorder %s306, %s320
      %p322 = scmp.eq.s32.totalorder %s35, 0
      %p323 = por %p321, %p322
      %s325 = sadd.s32 %s324, 1
      %p328 = scmp.eq.s32.totalorder %s29, 1
      %p329 = scmp.ne.s32.totalorder %s324, %s326
      %p330 = scmp.eq.s32.totalorder %s29, 0
      %p331 = por %p329, %p330
      %p332 = scmp.ne.s32.totalorder %s324, %s326
      %p333 = scmp.eq.s32.totalorder %s34, 1
      %p334 = por %p332, %p333
      %p335 = scmp.ne.s32.totalorder %s326, %s327
      %p336 = scmp.eq.s32.totalorder %s34, 0
      %p337 = por %p335, %p336
      %p338 = scmp.ne.s32.totalorder %s326, %s327
      %p339 = scmp.eq.s32.totalorder %s35, 1
      %p340 = por %p338, %p339
      %p342 = scmp.ne.s32.totalorder %s327, %s341
      %p343 = scmp.eq.s32.totalorder %s35, 0
      %p344 = por %p342, %p343
      %s346 = sadd.s32 %s345, 1
      %p349 = scmp.eq.s32.totalorder %s29, 1
      %p350 = scmp.ne.s32.totalorder %s345, %s347
      %p351 = scmp.eq.s32.totalorder %s29, 0
      %p352 = por %p350, %p351
      %p353 = scmp.ne.s32.totalorder %s345, %s347
      %p354 = scmp.eq.s32.totalorder %s34, 1
      %p355 = por %p353, %p354
      %p356 = scmp.ne.s32.totalorder %s347, %s348
      %p357 = scmp.eq.s32.totalorder %s34, 0
      %p358 = por %p356, %p357
      %p359 = scmp.ne.s32.totalorder %s347, %s348
      %p360 = scmp.eq.s32.totalorder %s35, 1
      %p361 = por %p359, %p360
      %p363 = scmp.ne.s32.totalorder %s348, %s362
      %p364 = scmp.eq.s32.totalorder %s35, 0
      %p365 = por %p363, %p364
      %s367 = sadd.s32 %s366, 1
      %p370 = scmp.eq.s32.totalorder %s29, 1
      %p371 = scmp.ne.s32.totalorder %s366, %s368
      %p372 = scmp.eq.s32.totalorder %s29, 0
      %p373 = por %p371, %p372
      %p374 = scmp.ne.s32.totalorder %s366, %s368
      %p375 = scmp.eq.s32.totalorder %s34, 1
      %p376 = por %p374, %p375
      %p377 = scmp.ne.s32.totalorder %s368, %s369
      %p378 = scmp.eq.s32.totalorder %s34, 0
      %p379 = por %p377, %p378
      %p380 = scmp.ne.s32.totalorder %s368, %s369
      %p381 = scmp.eq.s32.totalorder %s35, 1
      %p382 = por %p380, %p381
      %p384 = scmp.ne.s32.totalorder %s369, %s383
      %p385 = scmp.eq.s32.totalorder %s35, 0
      %p386 = por %p384, %p385
      %s388 = sadd.s32 %s387, 1
      %p391 = scmp.eq.s32.totalorder %s29, 1
      %p392 = scmp.ne.s32.totalorder %s387, %s389
      %p393 = scmp.eq.s32.totalorder %s29, 0
      %p394 = por %p392, %p393
      %p395 = scmp.ne.s32.totalorder %s387, %s389
      %p396 = scmp.eq.s32.totalorder %s34, 1
      %p397 = por %p395, %p396
      %p398 = scmp.ne.s32.totalorder %s389, %s390
      %p399 = scmp.eq.s32.totalorder %s34, 0
      %p400 = por %p398, %p399
      %p401 = scmp.ne.s32.totalorder %s389, %s390
      %p402 = scmp.eq.s32.totalorder %s35, 1
      %p403 = por %p401, %p402
      %p405 = scmp.ne.s32.totalorder %s390, %s404
      %p406 = scmp.eq.s32.totalorder %s35, 0
      %p407 = por %p405, %p406
      %s409 = sadd.s32 %s408, 1
      %p412 = scmp.eq.s32.totalorder %s29, 1
      %p413 = scmp.ne.s32.totalorder %s408, %s410
      %p414 = scmp.eq.s32.totalorder %s29, 0
      %p415 = por %p413, %p414
      %p416 = scmp.ne.s32.totalorder %s408, %s410
      %p417 = scmp.eq.s32.totalorder %s34, 1
      %p418 = por %p416, %p417
      %p419 = scmp.ne.s32.totalorder %s410, %s411
      %p420 = scmp.eq.s32.totalorder %s34, 0
      %p421 = por %p419, %p420
      %p422 = scmp.ne.s32.totalorder %s410, %s411
      %p423 = scmp.eq.s32.totalorder %s35, 1
      %p424 = por %p422, %p423
      %p426 = scmp.ne.s32.totalorder %s411, %s425
      %p427 = scmp.eq.s32.totalorder %s35, 0
      %p428 = por %p426, %p427
      %s430 = sadd.s32 %s429, 1
      %p433 = scmp.eq.s32.totalorder %s29, 1
      %p434 = scmp.ne.s32.totalorder %s429, %s431
      %p435 = scmp.eq.s32.totalorder %s29, 0
      %p436 = por %p434, %p435
      %p437 = scmp.ne.s32.totalorder %s429, %s431
      %p438 = scmp.eq.s32.totalorder %s34, 1
      %p439 = por %p437, %p438
      %p440 = scmp.ne.s32.totalorder %s431, %s432
      %p441 = scmp.eq.s32.totalorder %s34, 0
      %p442 = por %p440, %p441
      %p443 = scmp.ne.s32.totalorder %s431, %s432
      %p444 = scmp.eq.s32.totalorder %s35, 1
      %p445 = por %p443, %p444
      %p447 = scmp.ne.s32.totalorder %s432, %s446
      %p448 = scmp.eq.s32.totalorder %s35, 0
      %p449 = por %p447, %p448
      %s450 = ssub.s32 %s29, %s36
      %p451 = scmp.eq.s32.totalorder %s450, 0
      %s453 = sadd.s32 %s452, 1
      %s454 = scalar_select %p451, %s452, %s453
      %p457 = pneg %p451
      %p458 = scmp.eq.s32.totalorder %s29, 1
      %p459 = por %p457, %p458
      %p460 = scmp.ne.s32.totalorder %s452, %s455
      %p461 = scmp.eq.s32.totalorder %s29, 0
      %p462 = por %p460, %p461
      %p463 = scmp.ne.s32.totalorder %s452, %s455
      %p464 = scmp.eq.s32.totalorder %s34, 1
      %p465 = por %p463, %p464
      %p466 = scmp.ne.s32.totalorder %s455, %s456
      %p467 = scmp.eq.s32.totalorder %s34, 0
      %p468 = por %p466, %p467
      %p469 = scmp.ne.s32.totalorder %s455, %s456
      %p470 = scmp.eq.s32.totalorder %s35, 1
      %p471 = por %p469, %p470
      %p473 = scmp.ne.s32.totalorder %s456, %s472
      %p474 = scmp.eq.s32.totalorder %s35, 0
      %p475 = por %p473, %p474
      %s476 = ssub.s32 %s29, %s36
      %p477 = scmp.eq.s32.totalorder %s476, 0
      %s479 = sadd.s32 %s478, 1
      %s480 = scalar_select %p477, %s478, %s479
      %p483 = pneg %p477
      %p484 = scmp.eq.s32.totalorder %s29, 1
      %p485 = por %p483, %p484
      %p486 = scmp.ne.s32.totalorder %s478, %s481
      %p487 = scmp.eq.s32.totalorder %s29, 0
      %p488 = por %p486, %p487
      %p489 = scmp.ne.s32.totalorder %s478, %s481
      %p490 = scmp.eq.s32.totalorder %s34, 1
      %p491 = por %p489, %p490
      %p492 = scmp.ne.s32.totalorder %s481, %s482
      %p493 = scmp.eq.s32.totalorder %s34, 0
      %p494 = por %p492, %p493
      %p495 = scmp.ne.s32.totalorder %s481, %s482
      %p496 = scmp.eq.s32.totalorder %s35, 1
      %p497 = por %p495, %p496
      %p499 = scmp.ne.s32.totalorder %s482, %s498
      %p500 = scmp.eq.s32.totalorder %s35, 0
      %p501 = por %p499, %p500
      %s502 = ssub.s32 %s29, %s36
      %p503 = scmp.eq.s32.totalorder %s502, 0
      %s505 = sadd.s32 %s504, 1
      %s506 = scalar_select %p503, %s504, %s505
      %p509 = pneg %p503
      %p510 = scmp.eq.s32.totalorder %s29, 1
      %p511 = por %p509, %p510
      %p512 = scmp.ne.s32.totalorder %s504, %s507
      %p513 = scmp.eq.s32.totalorder %s29, 0
      %p514 = por %p512, %p513
      %p515 = scmp.ne.s32.totalorder %s504, %s507
      %p516 = scmp.eq.s32.totalorder %s34, 1
      %p517 = por %p515, %p516
      %p518 = scmp.ne.s32.totalorder %s507, %s508
      %p519 = scmp.eq.s32.totalorder %s34, 0
      %p520 = por %p518, %p519
      %p521 = scmp.ne.s32.totalorder %s507, %s508
      %p522 = scmp.eq.s32.totalorder %s35, 1
      %p523 = por %p521, %p522
      %p525 = scmp.ne.s32.totalorder %s508, %s524
      %p526 = scmp.eq.s32.totalorder %s35, 0
      %p527 = por %p525, %p526
      %p528 = scmp.le.s32.totalorder 1, %s29
      %p529 = scmp.lt.s32.totalorder %s29, 3
      %p530 = pnand %p528, %p529
      %p531 = pneg %p530
      // Predicated region
      $region9: #{bfp_tcea_forward.1} parent=5 // pred_check
        _
      $region10: #{bfp_tcea_forward.1} parent=5 // pred_check_branch
        %533 = sbr.rel (%p530) target = $region12
      $region11: #{bfp_tcea_forward.1} parent=5 // pred_region
        %s534 = ssub.s32 %s29, 1
        // Predicated region
        $region13: #{bfp_tcea_forward.1} parent=11 // pred_check
          %p535 = pneg %p232
        $region14: #{bfp_tcea_forward.1} parent=11 // pred_check_branch
          %537 = sbr.rel (%p535) target = $region16
        $region15: #{bfp_tcea_forward.1} parent=11 // pred_region
          %539 = vsyncadd [#allocation3], 0
          %s540 = sshll.u32 %s7, 4
          %s541 = int_to_ptr.hbm [resolvable:$true] %s540
          %s542 = sshll.u32 [#allocation2], 4
          %s543 = int_to_ptr.vmem [resolvable:$true] %s542
          %548 = dma.hbm_to_vmem [thread:$0]  %s541, 32768, %s543, [#allocation3], 256, 256, 16
        $region16: #{bfp_tcea_forward.1} parent=11 // pred_fallthru
          _
        // Predicated region
        $region17: #{bfp_tcea_forward.1} parent=11 // pred_check
          %p549 = pneg %p253
        $region18: #{bfp_tcea_forward.1} parent=11 // pred_check_branch
          %551 = sbr.rel (%p549) target = $region20
        $region19: #{bfp_tcea_forward.1} parent=11 // pred_region
          _
        $region20: #{bfp_tcea_forward.1} parent=11 // pred_fallthru
          _
        // Predicated region
        $region21: #{bfp_tcea_forward.1} parent=11 // pred_check
          %p552 = pneg %p274
        $region22: #{bfp_tcea_forward.1} parent=11 // pred_check_branch
          %554 = sbr.rel (%p552) target = $region24
        $region23: #{bfp_tcea_forward.1} parent=11 // pred_region
          %556 = vsyncadd [#allocation5], 0
          %s557 = sshll.u32 %s9, 4
          %s558 = int_to_ptr.hbm [resolvable:$true] %s557
          %s559 = sshll.u32 [#allocation4], 4
          %s560 = int_to_ptr.vmem [resolvable:$true] %s559
          %565 = dma.hbm_to_vmem [thread:$0]  %s558, 32768, %s560, [#allocation5], 1024, 1024, 64
        $region24: #{bfp_tcea_forward.1} parent=11 // pred_fallthru
          _
        // Predicated region
        $region25: #{bfp_tcea_forward.1} parent=11 // pred_check
          %p566 = pneg %p295
        $region26: #{bfp_tcea_forward.1} parent=11 // pred_check_branch
          %568 = sbr.rel (%p566) target = $region28
        $region27: #{bfp_tcea_forward.1} parent=11 // pred_region
          _
        $region28: #{bfp_tcea_forward.1} parent=11 // pred_fallthru
          _
        // Predicated region
        $region29: #{bfp_tcea_forward.1} parent=11 // pred_check
          %p569 = pneg %p316
        $region30: #{bfp_tcea_forward.1} parent=11 // pred_check_branch
          %571 = sbr.rel (%p569) target = $region32
        $region31: #{bfp_tcea_forward.1} parent=11 // pred_region
          _
        $region32: #{bfp_tcea_forward.1} parent=11 // pred_fallthru
          _
        // Predicated region
        $region33: #{bfp_tcea_forward.1} parent=11 // pred_check
          %p572 = pneg %p337
        $region34: #{bfp_tcea_forward.1} parent=11 // pred_check_branch
          %574 = sbr.rel (%p572) target = $region36
        $region35: #{bfp_tcea_forward.1} parent=11 // pred_region
          _
        $region36: #{bfp_tcea_forward.1} parent=11 // pred_fallthru
          _
        // Predicated region
        $region37: #{bfp_tcea_forward.1} parent=11 // pred_check
          %p575 = pneg %p358
        $region38: #{bfp_tcea_forward.1} parent=11 // pred_check_branch
          %577 = sbr.rel (%p575) target = $region40
        $region39: #{bfp_tcea_forward.1} parent=11 // pred_region
          _
        $region40: #{bfp_tcea_forward.1} parent=11 // pred_fallthru
          _
        // Predicated region
        $region41: #{bfp_tcea_forward.1} parent=11 // pred_check
          %p578 = pneg %p379
        $region42: #{bfp_tcea_forward.1} parent=11 // pred_check_branch
          %580 = sbr.rel (%p578) target = $region44
        $region43: #{bfp_tcea_forward.1} parent=11 // pred_region
          _
        $region44: #{bfp_tcea_forward.1} parent=11 // pred_fallthru
          _
        // Predicated region
        $region45: #{bfp_tcea_forward.1} parent=11 // pred_check
          %p581 = pneg %p400
        $region46: #{bfp_tcea_forward.1} parent=11 // pred_check_branch
          %583 = sbr.rel (%p581) target = $region48
        $region47: #{bfp_tcea_forward.1} parent=11 // pred_region
          _
        $region48: #{bfp_tcea_forward.1} parent=11 // pred_fallthru
          _
        // Predicated region
        $region49: #{bfp_tcea_forward.1} parent=11 // pred_check
          %p584 = pneg %p421
        $region50: #{bfp_tcea_forward.1} parent=11 // pred_check_branch
          %586 = sbr.rel (%p584) target = $region52
        $region51: #{bfp_tcea_forward.1} parent=11 // pred_region
          _
        $region52: #{bfp_tcea_forward.1} parent=11 // pred_fallthru
          _
        // Predicated region
        $region53: #{bfp_tcea_forward.1} parent=11 // pred_check
          %p587 = pneg %p442
        $region54: #{bfp_tcea_forward.1} parent=11 // pred_check_branch
          %589 = sbr.rel (%p587) target = $region56
        $region55: #{bfp_tcea_forward.1} parent=11 // pred_region
          _
        $region56: #{bfp_tcea_forward.1} parent=11 // pred_fallthru
          _
      $region12: #{bfp_tcea_forward.1} parent=5 // pred_fallthru
        _
      %p590 = scmp.lt.s32.totalorder %s29, 2
      // Predicated region
      $region57: #{bfp_tcea_forward.1} parent=5 // pred_check
        %p591 = pneg %p590
      $region58: #{bfp_tcea_forward.1} parent=5 // pred_check_branch
        %593 = sbr.rel (%p591) target = $region60
      $region59: #{bfp_tcea_forward.1} parent=5 // pred_region
        // Predicated region
        $region61: #{bfp_tcea_forward.1} parent=59 // pred_check
          %p594 = pneg %p49
        $region62: #{bfp_tcea_forward.1} parent=59 // pred_check_branch
          %596 = sbr.rel (%p594) target = $region64
        $region63: #{bfp_tcea_forward.1} parent=59 // pred_region
          %p597 = scmp.lt.s32.totalorder %s29, 1
          %s598 = scalar_select %p597, %s29, 1
          %s599 = smul.addr %s598, 8
          %s600 = smul.addr %s599, 8
          %s601 = scalar_lea.vmem %s0, %s600
        $region64: #{bfp_tcea_forward.1} parent=59 // pred_fallthru
          _
        // Predicated region
        $region65: #{bfp_tcea_forward.1} parent=59 // pred_check
          %p602 = pneg %p75
        $region66: #{bfp_tcea_forward.1} parent=59 // pred_check_branch
          %604 = sbr.rel (%p602) target = $region68
        $region67: #{bfp_tcea_forward.1} parent=59 // pred_region
          %p605 = scmp.lt.s32.totalorder %s29, 1
          %s606 = scalar_select %p605, %s29, 1
          %s607 = smul.addr %s606, 2
          %s608 = smul.addr %s607, 8
          %s609 = scalar_lea.vmem %s1, %s608
        $region68: #{bfp_tcea_forward.1} parent=59 // pred_fallthru
          _
        // Predicated region
        $region69: #{bfp_tcea_forward.1} parent=59 // pred_check
          %p610 = pneg %p101
        $region70: #{bfp_tcea_forward.1} parent=59 // pred_check_branch
          %612 = sbr.rel (%p610) target = $region72
        $region71: #{bfp_tcea_forward.1} parent=59 // pred_region
          %p613 = scmp.lt.s32.totalorder %s29, 1
          %s614 = scalar_select %p613, %s29, 1
          %s615 = smul.addr %s614, 8
          %s616 = scalar_lea.vmem %s2, %s615
        $region72: #{bfp_tcea_forward.1} parent=59 // pred_fallthru
          _
        // Predicated region
        $region73: #{bfp_tcea_forward.1} parent=59 // pred_check
          %p617 = pneg %p127
        $region74: #{bfp_tcea_forward.1} parent=59 // pred_check_branch
          %619 = sbr.rel (%p617) target = $region76
        $region75: #{bfp_tcea_forward.1} parent=59 // pred_region
          %p620 = scmp.lt.s32.totalorder %s29, 1
          %s621 = scalar_select %p620, %s29, 1
          %s622 = smul.addr %s621, 8
          %s623 = smul.addr %s622, 8
          %s624 = scalar_lea.vmem %s3, %s623
        $region76: #{bfp_tcea_forward.1} parent=59 // pred_fallthru
          _
        // Predicated region
        $region77: #{bfp_tcea_forward.1} parent=59 // pred_check
          %p625 = pneg %p153
        $region78: #{bfp_tcea_forward.1} parent=59 // pred_check_branch
          %627 = sbr.rel (%p625) target = $region80
        $region79: #{bfp_tcea_forward.1} parent=59 // pred_region
          %p628 = scmp.lt.s32.totalorder %s29, 1
          %s629 = scalar_select %p628, %s29, 1
          %s630 = smul.addr %s629, 2
          %s631 = smul.addr %s630, 8
          %s632 = scalar_lea.vmem %s4, %s631
        $region80: #{bfp_tcea_forward.1} parent=59 // pred_fallthru
          _
        // Predicated region
        $region81: #{bfp_tcea_forward.1} parent=59 // pred_check
          %p633 = pneg %p179
        $region82: #{bfp_tcea_forward.1} parent=59 // pred_check_branch
          %635 = sbr.rel (%p633) target = $region84
        $region83: #{bfp_tcea_forward.1} parent=59 // pred_region
          %p636 = scmp.lt.s32.totalorder %s29, 1
          %s637 = scalar_select %p636, %s29, 1
          %s638 = smul.addr %s637, 8
          %s639 = scalar_lea.vmem %s5, %s638
        $region84: #{bfp_tcea_forward.1} parent=59 // pred_fallthru
          _
        // Predicated region
        $region85: #{bfp_tcea_forward.1} parent=59 // pred_check
          %p640 = pneg %p205
        $region86: #{bfp_tcea_forward.1} parent=59 // pred_check_branch
          %642 = sbr.rel (%p640) target = $region88
        $region87: #{bfp_tcea_forward.1} parent=59 // pred_region
          %p643 = scmp.lt.s32.totalorder %s29, 1
          %s644 = scalar_select %p643, %s29, 1
          %s645 = smul.addr %s644, 2
          %s646 = smul.addr %s645, 8
          %s647 = scalar_lea.vmem %s6, %s646
        $region88: #{bfp_tcea_forward.1} parent=59 // pred_fallthru
          _
      $region60: #{bfp_tcea_forward.1} parent=5 // pred_fallthru
        _
      %p648 = scmp.le.s32.totalorder 1, %s29
      %p649 = scmp.lt.s32.totalorder %s29, 3
      %p650 = pnand %p648, %p649
      %p651 = pneg %p650
      // Predicated region
      $region89: #{bfp_tcea_forward.1} parent=5 // pred_check
        _
      $region90: #{bfp_tcea_forward.1} parent=5 // pred_check_branch
        %653 = sbr.rel (%p650) target = $region92
      $region91: #{bfp_tcea_forward.1} parent=5 // pred_region
        %s654 = ssub.s32 %s29, 1
        // Predicated region
        $region93: #{bfp_tcea_forward.1} parent=91 // pred_check
          %p655 = pneg %p232
        $region94: #{bfp_tcea_forward.1} parent=91 // pred_check_branch
          %657 = sbr.rel (%p655) target = $region96
        $region95: #{bfp_tcea_forward.1} parent=91 // pred_region
          %659 = dma.done [#allocation3], 32768
        $region96: #{bfp_tcea_forward.1} parent=91 // pred_fallthru
          _
        // Predicated region
        $region97: #{bfp_tcea_forward.1} parent=91 // pred_check
          %p660 = pneg %p274
        $region98: #{bfp_tcea_forward.1} parent=91 // pred_check_branch
          %662 = sbr.rel (%p660) target = $region100
        $region99: #{bfp_tcea_forward.1} parent=91 // pred_region
          %664 = dma.done [#allocation5], 32768
        $region100: #{bfp_tcea_forward.1} parent=91 // pred_fallthru
          _
        %p665 = scmp.lt.s32.totalorder %s34, 1
        %s666 = scalar_select %p665, %s34, 1
        %s667 = smul.addr %s666, 8
        %s668 = smul.addr %s667, 8
        %s669 = scalar_lea.vmem %s0, %s668
        %p670 = pneg %p55
        %p671 = pneg %p52
        %p672 = scmp.lt.s32.totalorder %s34, 1
        %s673 = scalar_select %p672, %s34, 1
        %s674 = smul.addr %s673, 2
        %s675 = smul.addr %s674, 8
        %s676 = scalar_lea.vmem %s1, %s675
        %p677 = pneg %p81
        %p678 = pneg %p78
        %p679 = scmp.lt.s32.totalorder %s34, 1
        %s680 = scalar_select %p679, %s34, 1
        %s681 = smul.addr %s680, 8
        %s682 = scalar_lea.vmem %s2, %s681
        %p683 = pneg %p107
        %p684 = pneg %p104
        %p685 = scmp.lt.s32.totalorder %s34, 1
        %s686 = scalar_select %p685, %s34, 1
        %s687 = smul.addr %s686, 8
        %s688 = smul.addr %s687, 8
        %s689 = scalar_lea.vmem %s3, %s688
        %p690 = pneg %p133
        %p691 = pneg %p130
        %p692 = scmp.lt.s32.totalorder %s34, 1
        %s693 = scalar_select %p692, %s34, 1
        %s694 = smul.addr %s693, 2
        %s695 = smul.addr %s694, 8
        %s696 = scalar_lea.vmem %s4, %s695
        %p697 = pneg %p159
        %p698 = pneg %p156
        %p699 = scmp.lt.s32.totalorder %s34, 1
        %s700 = scalar_select %p699, %s34, 1
        %s701 = smul.addr %s700, 8
        %s702 = scalar_lea.vmem %s5, %s701
        %p703 = pneg %p185
        %p704 = pneg %p182
        %p705 = scmp.lt.s32.totalorder %s34, 1
        %s706 = scalar_select %p705, %s34, 1
        %s707 = smul.addr %s706, 2
        %s708 = smul.addr %s707, 8
        %s709 = scalar_lea.vmem %s6, %s708
        %p710 = pneg %p211
        %p711 = pneg %p208
        %p712 = pneg %p232
        %p713 = pneg %p229
        %p714 = pneg %p253
        %p715 = pneg %p250
        %p716 = pneg %p274
        %p717 = pneg %p271
        %p718 = pneg %p295
        %p719 = pneg %p292
        %p720 = pneg %p316
        %p721 = pneg %p313
        %p722 = pneg %p337
        %p723 = pneg %p334
        %p724 = pneg %p358
        %p725 = pneg %p355
        %p726 = pneg %p379
        %p727 = pneg %p376
        %p728 = pneg %p400
        %p729 = pneg %p397
        %p730 = pneg %p421
        %p731 = pneg %p418
        %p732 = pneg %p442
        %p733 = pneg %p439
        %p734 = pneg %p468
        %p735 = pneg %p465
        %p736 = scmp.lt.s32.totalorder %s34, 1
        %s737 = scalar_select %p736, %s34, 1
        %s738 = smul.addr %s737, 8
        %s739 = smul.addr %s738, 8
        %s740 = scalar_lea.vmem %s18, %s739
        %p741 = pneg %p494
        %p742 = pneg %p491
        %p743 = scmp.lt.s32.totalorder %s34, 1
        %s744 = scalar_select %p743, %s34, 1
        %s745 = smul.addr %s744, 2
        %s746 = smul.addr %s745, 8
        %s747 = scalar_lea.vmem %s19, %s746
        %p748 = pneg %p520
        %p749 = pneg %p517
        %p750 = scmp.lt.s32.totalorder %s34, 1
        %s751 = scalar_select %p750, %s34, 1
        %s752 = smul.addr %s751, 8
        %s753 = scalar_lea.vmem %s20, %s752
        %p754 = scmp.lt.s32.totalorder %s34, 1
        %s755 = scalar_select %p754, %s34, 1
        %s756 = smul.addr %s755, 8
        %s757 = smul.addr %s756, 8
        %s758 = scalar_lea.vmem %s0, %s757
        %p759 = scmp.lt.s32.totalorder %s34, 1
        %s760 = scalar_select %p759, %s34, 1
        %s761 = smul.addr %s760, 2
        %s762 = smul.addr %s761, 8
        %s763 = scalar_lea.vmem %s1, %s762
        %p764 = scmp.lt.s32.totalorder %s34, 1
        %s765 = scalar_select %p764, %s34, 1
        %s766 = smul.addr %s765, 8
        %s767 = scalar_lea.vmem %s2, %s766
        %p768 = scmp.lt.s32.totalorder %s34, 1
        %s769 = scalar_select %p768, %s34, 1
        %s770 = smul.addr %s769, 8
        %s771 = smul.addr %s770, 8
        %s772 = scalar_lea.vmem %s3, %s771
        %p773 = scmp.lt.s32.totalorder %s34, 1
        %s774 = scalar_select %p773, %s34, 1
        %s775 = smul.addr %s774, 2
        %s776 = smul.addr %s775, 8
        %s777 = scalar_lea.vmem %s4, %s776
        %p778 = scmp.lt.s32.totalorder %s34, 1
        %s779 = scalar_select %p778, %s34, 1
        %s780 = smul.addr %s779, 8
        %s781 = scalar_lea.vmem %s5, %s780
        %p782 = scmp.lt.s32.totalorder %s34, 1
        %s783 = scalar_select %p782, %s34, 1
        %s784 = smul.addr %s783, 2
        %s785 = smul.addr %s784, 8
        %s786 = scalar_lea.vmem %s6, %s785
        %p787 = scmp.lt.s32.totalorder %s34, 1
        %s788 = scalar_select %p787, %s34, 1
        %s789 = smul.addr %s788, 8
        %s790 = smul.addr %s789, 8
        %s791 = scalar_lea.vmem %s18, %s790
        %p792 = scmp.lt.s32.totalorder %s34, 1
        %s793 = scalar_select %p792, %s34, 1
        %s794 = smul.addr %s793, 2
        %s795 = smul.addr %s794, 8
        %s796 = scalar_lea.vmem %s19, %s795
        %p797 = scmp.lt.s32.totalorder %s34, 1
        %s798 = scalar_select %p797, %s34, 1
        %s799 = smul.addr %s798, 8
        %s800 = scalar_lea.vmem %s20, %s799
        %v802 = vld [vmem:[%s758] sm:$0xff]
        %v803 = vld [vmem:[%s758 + $0x8] sm:$0xff]
        %v804 = vld [vmem:[%s758 + $0x10] sm:$0xff]
        %v805 = vld [vmem:[%s758 + $0x18] sm:$0xff]
        %v806 = vld [vmem:[%s758 + $0x20] sm:$0xff]
        %v807 = vld [vmem:[%s758 + $0x28] sm:$0xff]
        %v808 = vld [vmem:[%s758 + $0x30] sm:$0xff]
        %v809 = vld [vmem:[%s758 + $0x38] sm:$0xff]
        %v810 = vld [vmem:[%s763] sm:$0xff]
        %v811 = vld [vmem:[%s763 + $0x8] sm:$0xff]
        %v812 = vld [vmem:[%s767] sm:$0xff]
        %v813 = vld [vmem:[%s772] sm:$0xff]
        %v814 = vld [vmem:[%s772 + $0x8] sm:$0xff]
        %v815 = vld [vmem:[%s772 + $0x10] sm:$0xff]
        %v816 = vld [vmem:[%s772 + $0x18] sm:$0xff]
        %v817 = vld [vmem:[%s772 + $0x20] sm:$0xff]
        %v818 = vld [vmem:[%s772 + $0x28] sm:$0xff]
        %v819 = vld [vmem:[%s772 + $0x30] sm:$0xff]
        %v820 = vld [vmem:[%s772 + $0x38] sm:$0xff]
        %v821 = vld [vmem:[%s777] sm:$0xff]
        %v822 = vld [vmem:[%s777 + $0x8] sm:$0xff]
        %v823 = vld [vmem:[%s781] sm:$0xff]
        %v824 = vld [vmem:[%s786] sm:$0xff]
        %v825 = vld [vmem:[%s786 + $0x8] sm:$0xff]
        %v826 = vld [vmem:[#allocation2] sm:$0xff]
        %v827 = vld [vmem:[#allocation2 + $0x8] sm:$0xff]
        %v828 = vld [vmem:[#allocation2 + $0x10] sm:$0xff]
        %v829 = vld [vmem:[#allocation2 + $0x18] sm:$0xff]
        %v830 = vld [vmem:[#allocation2 + $0x20] sm:$0xff]
        %v831 = vld [vmem:[#allocation2 + $0x28] sm:$0xff]
        %v832 = vld [vmem:[#allocation2 + $0x30] sm:$0xff]
        %v833 = vld [vmem:[#allocation2 + $0x38] sm:$0xff]
        %v834 = vld [vmem:[#allocation2 + $0x40] sm:$0xff]
        %v835 = vld [vmem:[#allocation2 + $0x48] sm:$0xff]
        %v836 = vld [vmem:[#allocation2 + $0x50] sm:$0xff]
        %v837 = vld [vmem:[#allocation2 + $0x58] sm:$0xff]
        %v838 = vld [vmem:[#allocation2 + $0x60] sm:$0xff]
        %v839 = vld [vmem:[#allocation2 + $0x68] sm:$0xff]
        %v840 = vld [vmem:[#allocation2 + $0x70] sm:$0xff]
        %v841 = vld [vmem:[#allocation2 + $0x78] sm:$0xff]
        %v842 = vld [vmem:[#allocation2 + $0x80] sm:$0xff]
        %v843 = vld [vmem:[#allocation2 + $0x88] sm:$0xff]
        %v844 = vld [vmem:[#allocation2 + $0x90] sm:$0xff]
        %v845 = vld [vmem:[#allocation2 + $0x98] sm:$0xff]
        %v846 = vld [vmem:[#allocation2 + $0xa0] sm:$0xff]
        %v847 = vld [vmem:[#allocation2 + $0xa8] sm:$0xff]
        %v848 = vld [vmem:[#allocation2 + $0xb0] sm:$0xff]
        %v849 = vld [vmem:[#allocation2 + $0xb8] sm:$0xff]
        %v850 = vld [vmem:[#allocation2 + $0xc0] sm:$0xff]
        %v851 = vld [vmem:[#allocation2 + $0xc8] sm:$0xff]
        %v852 = vld [vmem:[#allocation2 + $0xd0] sm:$0xff]
        %v853 = vld [vmem:[#allocation2 + $0xd8] sm:$0xff]
        %v854 = vld [vmem:[#allocation2 + $0xe0] sm:$0xff]
        %v855 = vld [vmem:[#allocation2 + $0xe8] sm:$0xff]
        %v856 = vld [vmem:[#allocation2 + $0xf0] sm:$0xff]
        %v857 = vld [vmem:[#allocation2 + $0xf8] sm:$0xff]
        %v858 = vld [vmem:[#allocation2 + $0x100] sm:$0xff]
        %v859 = vld [vmem:[#allocation2 + $0x108] sm:$0xff]
        %v860 = vld [vmem:[#allocation2 + $0x110] sm:$0xff]
        %v861 = vld [vmem:[#allocation2 + $0x118] sm:$0xff]
        %v862 = vld [vmem:[#allocation2 + $0x120] sm:$0xff]
        %v863 = vld [vmem:[#allocation2 + $0x128] sm:$0xff]
        %v864 = vld [vmem:[#allocation2 + $0x130] sm:$0xff]
        %v865 = vld [vmem:[#allocation2 + $0x138] sm:$0xff]
        %v866 = vld [vmem:[#allocation2 + $0x140] sm:$0xff]
        %v867 = vld [vmem:[#allocation2 + $0x148] sm:$0xff]
        %v868 = vld [vmem:[#allocation2 + $0x150] sm:$0xff]
        %v869 = vld [vmem:[#allocation2 + $0x158] sm:$0xff]
        %v870 = vld [vmem:[#allocation2 + $0x160] sm:$0xff]
        %v871 = vld [vmem:[#allocation2 + $0x168] sm:$0xff]
        %v872 = vld [vmem:[#allocation2 + $0x170] sm:$0xff]
        %v873 = vld [vmem:[#allocation2 + $0x178] sm:$0xff]
        %v874 = vld [vmem:[#allocation2 + $0x180] sm:$0xff]
        %v875 = vld [vmem:[#allocation2 + $0x188] sm:$0xff]
        %v876 = vld [vmem:[#allocation2 + $0x190] sm:$0xff]
        %v877 = vld [vmem:[#allocation2 + $0x198] sm:$0xff]
        %v878 = vld [vmem:[#allocation2 + $0x1a0] sm:$0xff]
        %v879 = vld [vmem:[#allocation2 + $0x1a8] sm:$0xff]
        %v880 = vld [vmem:[#allocation2 + $0x1b0] sm:$0xff]
        %v881 = vld [vmem:[#allocation2 + $0x1b8] sm:$0xff]
        %v882 = vld [vmem:[#allocation2 + $0x1c0] sm:$0xff]
        %v883 = vld [vmem:[#allocation2 + $0x1c8] sm:$0xff]
        %v884 = vld [vmem:[#allocation2 + $0x1d0] sm:$0xff]
        %v885 = vld [vmem:[#allocation2 + $0x1d8] sm:$0xff]
        %v886 = vld [vmem:[#allocation2 + $0x1e0] sm:$0xff]
        %v887 = vld [vmem:[#allocation2 + $0x1e8] sm:$0xff]
        %v888 = vld [vmem:[#allocation2 + $0x1f0] sm:$0xff]
        %v889 = vld [vmem:[#allocation2 + $0x1f8] sm:$0xff]
        %v890 = vld [vmem:[#allocation2 + $0x200] sm:$0xff]
        %v891 = vld [vmem:[#allocation2 + $0x208] sm:$0xff]
        %v892 = vld [vmem:[#allocation2 + $0x210] sm:$0xff]
        %v893 = vld [vmem:[#allocation2 + $0x218] sm:$0xff]
        %v894 = vld [vmem:[#allocation2 + $0x220] sm:$0xff]
        %v895 = vld [vmem:[#allocation2 + $0x228] sm:$0xff]
        %v896 = vld [vmem:[#allocation2 + $0x230] sm:$0xff]
        %v897 = vld [vmem:[#allocation2 + $0x238] sm:$0xff]
        %v898 = vld [vmem:[#allocation2 + $0x240] sm:$0xff]
        %v899 = vld [vmem:[#allocation2 + $0x248] sm:$0xff]
        %v900 = vld [vmem:[#allocation2 + $0x250] sm:$0xff]
        %v901 = vld [vmem:[#allocation2 + $0x258] sm:$0xff]
        %v902 = vld [vmem:[#allocation2 + $0x260] sm:$0xff]
        %v903 = vld [vmem:[#allocation2 + $0x268] sm:$0xff]
        %v904 = vld [vmem:[#allocation2 + $0x270] sm:$0xff]
        %v905 = vld [vmem:[#allocation2 + $0x278] sm:$0xff]
        %v906 = vld [vmem:[#allocation2 + $0x280] sm:$0xff]
        %v907 = vld [vmem:[#allocation2 + $0x288] sm:$0xff]
        %v908 = vld [vmem:[#allocation2 + $0x290] sm:$0xff]
        %v909 = vld [vmem:[#allocation2 + $0x298] sm:$0xff]
        %v910 = vld [vmem:[#allocation2 + $0x2a0] sm:$0xff]
        %v911 = vld [vmem:[#allocation2 + $0x2a8] sm:$0xff]
        %v912 = vld [vmem:[#allocation2 + $0x2b0] sm:$0xff]
        %v913 = vld [vmem:[#allocation2 + $0x2b8] sm:$0xff]
        %v914 = vld [vmem:[#allocation2 + $0x2c0] sm:$0xff]
        %v915 = vld [vmem:[#allocation2 + $0x2c8] sm:$0xff]
        %v916 = vld [vmem:[#allocation2 + $0x2d0] sm:$0xff]
        %v917 = vld [vmem:[#allocation2 + $0x2d8] sm:$0xff]
        %v918 = vld [vmem:[#allocation2 + $0x2e0] sm:$0xff]
        %v919 = vld [vmem:[#allocation2 + $0x2e8] sm:$0xff]
        %v920 = vld [vmem:[#allocation2 + $0x2f0] sm:$0xff]
        %v921 = vld [vmem:[#allocation2 + $0x2f8] sm:$0xff]
        %v922 = vld [vmem:[#allocation2 + $0x300] sm:$0xff]
        %v923 = vld [vmem:[#allocation2 + $0x308] sm:$0xff]
        %v924 = vld [vmem:[#allocation2 + $0x310] sm:$0xff]
        %v925 = vld [vmem:[#allocation2 + $0x318] sm:$0xff]
        %v926 = vld [vmem:[#allocation2 + $0x320] sm:$0xff]
        %v927 = vld [vmem:[#allocation2 + $0x328] sm:$0xff]
        %v928 = vld [vmem:[#allocation2 + $0x330] sm:$0xff]
        %v929 = vld [vmem:[#allocation2 + $0x338] sm:$0xff]
        %v930 = vld [vmem:[#allocation2 + $0x340] sm:$0xff]
        %v931 = vld [vmem:[#allocation2 + $0x348] sm:$0xff]
        %v932 = vld [vmem:[#allocation2 + $0x350] sm:$0xff]
        %v933 = vld [vmem:[#allocation2 + $0x358] sm:$0xff]
        %v934 = vld [vmem:[#allocation2 + $0x360] sm:$0xff]
        %v935 = vld [vmem:[#allocation2 + $0x368] sm:$0xff]
        %v936 = vld [vmem:[#allocation2 + $0x370] sm:$0xff]
        %v937 = vld [vmem:[#allocation2 + $0x378] sm:$0xff]
        %v938 = vld [vmem:[#allocation2 + $0x380] sm:$0xff]
        %v939 = vld [vmem:[#allocation2 + $0x388] sm:$0xff]
        %v940 = vld [vmem:[#allocation2 + $0x390] sm:$0xff]
        %v941 = vld [vmem:[#allocation2 + $0x398] sm:$0xff]
        %v942 = vld [vmem:[#allocation2 + $0x3a0] sm:$0xff]
        %v943 = vld [vmem:[#allocation2 + $0x3a8] sm:$0xff]
        %v944 = vld [vmem:[#allocation2 + $0x3b0] sm:$0xff]
        %v945 = vld [vmem:[#allocation2 + $0x3b8] sm:$0xff]
        %v946 = vld [vmem:[#allocation2 + $0x3c0] sm:$0xff]
        %v947 = vld [vmem:[#allocation2 + $0x3c8] sm:$0xff]
        %v948 = vld [vmem:[#allocation2 + $0x3d0] sm:$0xff]
        %v949 = vld [vmem:[#allocation2 + $0x3d8] sm:$0xff]
        %v950 = vld [vmem:[#allocation2 + $0x3e0] sm:$0xff]
        %v951 = vld [vmem:[#allocation2 + $0x3e8] sm:$0xff]
        %v952 = vld [vmem:[#allocation2 + $0x3f0] sm:$0xff]
        %v953 = vld [vmem:[#allocation2 + $0x3f8] sm:$0xff]
        %v954 = vld [vmem:[#allocation2 + $0x400] sm:$0xff]
        %v955 = vld [vmem:[#allocation2 + $0x408] sm:$0xff]
        %v956 = vld [vmem:[#allocation2 + $0x410] sm:$0xff]
        %v957 = vld [vmem:[#allocation2 + $0x418] sm:$0xff]
        %v958 = vld [vmem:[#allocation2 + $0x420] sm:$0xff]
        %v959 = vld [vmem:[#allocation2 + $0x428] sm:$0xff]
        %v960 = vld [vmem:[#allocation2 + $0x430] sm:$0xff]
        %v961 = vld [vmem:[#allocation2 + $0x438] sm:$0xff]
        %v962 = vld [vmem:[#allocation2 + $0x440] sm:$0xff]
        %v963 = vld [vmem:[#allocation2 + $0x448] sm:$0xff]
        %v964 = vld [vmem:[#allocation2 + $0x450] sm:$0xff]
        %v965 = vld [vmem:[#allocation2 + $0x458] sm:$0xff]
        %v966 = vld [vmem:[#allocation2 + $0x460] sm:$0xff]
        %v967 = vld [vmem:[#allocation2 + $0x468] sm:$0xff]
        %v968 = vld [vmem:[#allocation2 + $0x470] sm:$0xff]
        %v969 = vld [vmem:[#allocation2 + $0x478] sm:$0xff]
        %v970 = vld [vmem:[#allocation2 + $0x480] sm:$0xff]
        %v971 = vld [vmem:[#allocation2 + $0x488] sm:$0xff]
        %v972 = vld [vmem:[#allocation2 + $0x490] sm:$0xff]
        %v973 = vld [vmem:[#allocation2 + $0x498] sm:$0xff]
        %v974 = vld [vmem:[#allocation2 + $0x4a0] sm:$0xff]
        %v975 = vld [vmem:[#allocation2 + $0x4a8] sm:$0xff]
        %v976 = vld [vmem:[#allocation2 + $0x4b0] sm:$0xff]
        %v977 = vld [vmem:[#allocation2 + $0x4b8] sm:$0xff]
        %v978 = vld [vmem:[#allocation2 + $0x4c0] sm:$0xff]
        %v979 = vld [vmem:[#allocation2 + $0x4c8] sm:$0xff]
        %v980 = vld [vmem:[#allocation2 + $0x4d0] sm:$0xff]
        %v981 = vld [vmem:[#allocation2 + $0x4d8] sm:$0xff]
        %v982 = vld [vmem:[#allocation2 + $0x4e0] sm:$0xff]
        %v983 = vld [vmem:[#allocation2 + $0x4e8] sm:$0xff]
        %v984 = vld [vmem:[#allocation2 + $0x4f0] sm:$0xff]
        %v985 = vld [vmem:[#allocation2 + $0x4f8] sm:$0xff]
        %v986 = vld [vmem:[#allocation2 + $0x500] sm:$0xff]
        %v987 = vld [vmem:[#allocation2 + $0x508] sm:$0xff]
        %v988 = vld [vmem:[#allocation2 + $0x510] sm:$0xff]
        %v989 = vld [vmem:[#allocation2 + $0x518] sm:$0xff]
        %v990 = vld [vmem:[#allocation2 + $0x520] sm:$0xff]
        %v991 = vld [vmem:[#allocation2 + $0x528] sm:$0xff]
        %v992 = vld [vmem:[#allocation2 + $0x530] sm:$0xff]
        %v993 = vld [vmem:[#allocation2 + $0x538] sm:$0xff]
        %v994 = vld [vmem:[#allocation2 + $0x540] sm:$0xff]
        %v995 = vld [vmem:[#allocation2 + $0x548] sm:$0xff]
        %v996 = vld [vmem:[#allocation2 + $0x550] sm:$0xff]
        %v997 = vld [vmem:[#allocation2 + $0x558] sm:$0xff]
        %v998 = vld [vmem:[#allocation2 + $0x560] sm:$0xff]
        %v999 = vld [vmem:[#allocation2 + $0x568] sm:$0xff]
        %v1000 = vld [vmem:[#allocation2 + $0x570] sm:$0xff]
        %v1001 = vld [vmem:[#allocation2 + $0x578] sm:$0xff]
        %v1002 = vld [vmem:[#allocation2 + $0x580] sm:$0xff]
        %v1003 = vld [vmem:[#allocation2 + $0x588] sm:$0xff]
        %v1004 = vld [vmem:[#allocation2 + $0x590] sm:$0xff]
        %v1005 = vld [vmem:[#allocation2 + $0x598] sm:$0xff]
        %v1006 = vld [vmem:[#allocation2 + $0x5a0] sm:$0xff]
        %v1007 = vld [vmem:[#allocation2 + $0x5a8] sm:$0xff]
        %v1008 = vld [vmem:[#allocation2 + $0x5b0] sm:$0xff]
        %v1009 = vld [vmem:[#allocation2 + $0x5b8] sm:$0xff]
        %v1010 = vld [vmem:[#allocation2 + $0x5c0] sm:$0xff]
        %v1011 = vld [vmem:[#allocation2 + $0x5c8] sm:$0xff]
        %v1012 = vld [vmem:[#allocation2 + $0x5d0] sm:$0xff]
        %v1013 = vld [vmem:[#allocation2 + $0x5d8] sm:$0xff]
        %v1014 = vld [vmem:[#allocation2 + $0x5e0] sm:$0xff]
        %v1015 = vld [vmem:[#allocation2 + $0x5e8] sm:$0xff]
        %v1016 = vld [vmem:[#allocation2 + $0x5f0] sm:$0xff]
        %v1017 = vld [vmem:[#allocation2 + $0x5f8] sm:$0xff]
        %v1018 = vld [vmem:[#allocation2 + $0x600] sm:$0xff]
        %v1019 = vld [vmem:[#allocation2 + $0x608] sm:$0xff]
        %v1020 = vld [vmem:[#allocation2 + $0x610] sm:$0xff]
        %v1021 = vld [vmem:[#allocation2 + $0x618] sm:$0xff]
        %v1022 = vld [vmem:[#allocation2 + $0x620] sm:$0xff]
        %v1023 = vld [vmem:[#allocation2 + $0x628] sm:$0xff]
        %v1024 = vld [vmem:[#allocation2 + $0x630] sm:$0xff]
        %v1025 = vld [vmem:[#allocation2 + $0x638] sm:$0xff]
        %v1026 = vld [vmem:[#allocation2 + $0x640] sm:$0xff]
        %v1027 = vld [vmem:[#allocation2 + $0x648] sm:$0xff]
        %v1028 = vld [vmem:[#allocation2 + $0x650] sm:$0xff]
        %v1029 = vld [vmem:[#allocation2 + $0x658] sm:$0xff]
        %v1030 = vld [vmem:[#allocation2 + $0x660] sm:$0xff]
        %v1031 = vld [vmem:[#allocation2 + $0x668] sm:$0xff]
        %v1032 = vld [vmem:[#allocation2 + $0x670] sm:$0xff]
        %v1033 = vld [vmem:[#allocation2 + $0x678] sm:$0xff]
        %v1034 = vld [vmem:[#allocation2 + $0x680] sm:$0xff]
        %v1035 = vld [vmem:[#allocation2 + $0x688] sm:$0xff]
        %v1036 = vld [vmem:[#allocation2 + $0x690] sm:$0xff]
        %v1037 = vld [vmem:[#allocation2 + $0x698] sm:$0xff]
        %v1038 = vld [vmem:[#allocation2 + $0x6a0] sm:$0xff]
        %v1039 = vld [vmem:[#allocation2 + $0x6a8] sm:$0xff]
        %v1040 = vld [vmem:[#allocation2 + $0x6b0] sm:$0xff]
        %v1041 = vld [vmem:[#allocation2 + $0x6b8] sm:$0xff]
        %v1042 = vld [vmem:[#allocation2 + $0x6c0] sm:$0xff]
        %v1043 = vld [vmem:[#allocation2 + $0x6c8] sm:$0xff]
        %v1044 = vld [vmem:[#allocation2 + $0x6d0] sm:$0xff]
        %v1045 = vld [vmem:[#allocation2 + $0x6d8] sm:$0xff]
        %v1046 = vld [vmem:[#allocation2 + $0x6e0] sm:$0xff]
        %v1047 = vld [vmem:[#allocation2 + $0x6e8] sm:$0xff]
        %v1048 = vld [vmem:[#allocation2 + $0x6f0] sm:$0xff]
        %v1049 = vld [vmem:[#allocation2 + $0x6f8] sm:$0xff]
        %v1050 = vld [vmem:[#allocation2 + $0x700] sm:$0xff]
        %v1051 = vld [vmem:[#allocation2 + $0x708] sm:$0xff]
        %v1052 = vld [vmem:[#allocation2 + $0x710] sm:$0xff]
        %v1053 = vld [vmem:[#allocation2 + $0x718] sm:$0xff]
        %v1054 = vld [vmem:[#allocation2 + $0x720] sm:$0xff]
        %v1055 = vld [vmem:[#allocation2 + $0x728] sm:$0xff]
        %v1056 = vld [vmem:[#allocation2 + $0x730] sm:$0xff]
        %v1057 = vld [vmem:[#allocation2 + $0x738] sm:$0xff]
        %v1058 = vld [vmem:[#allocation2 + $0x740] sm:$0xff]
        %v1059 = vld [vmem:[#allocation2 + $0x748] sm:$0xff]
        %v1060 = vld [vmem:[#allocation2 + $0x750] sm:$0xff]
        %v1061 = vld [vmem:[#allocation2 + $0x758] sm:$0xff]
        %v1062 = vld [vmem:[#allocation2 + $0x760] sm:$0xff]
        %v1063 = vld [vmem:[#allocation2 + $0x768] sm:$0xff]
        %v1064 = vld [vmem:[#allocation2 + $0x770] sm:$0xff]
        %v1065 = vld [vmem:[#allocation2 + $0x778] sm:$0xff]
        %v1066 = vld [vmem:[#allocation2 + $0x780] sm:$0xff]
        %v1067 = vld [vmem:[#allocation2 + $0x788] sm:$0xff]
        %v1068 = vld [vmem:[#allocation2 + $0x790] sm:$0xff]
        %v1069 = vld [vmem:[#allocation2 + $0x798] sm:$0xff]
        %v1070 = vld [vmem:[#allocation2 + $0x7a0] sm:$0xff]
        %v1071 = vld [vmem:[#allocation2 + $0x7a8] sm:$0xff]
        %v1072 = vld [vmem:[#allocation2 + $0x7b0] sm:$0xff]
        %v1073 = vld [vmem:[#allocation2 + $0x7b8] sm:$0xff]
        %v1074 = vld [vmem:[#allocation2 + $0x7c0] sm:$0xff]
        %v1075 = vld [vmem:[#allocation2 + $0x7c8] sm:$0xff]
        %v1076 = vld [vmem:[#allocation2 + $0x7d0] sm:$0xff]
        %v1077 = vld [vmem:[#allocation2 + $0x7d8] sm:$0xff]
        %v1078 = vld [vmem:[#allocation2 + $0x7e0] sm:$0xff]
        %v1079 = vld [vmem:[#allocation2 + $0x7e8] sm:$0xff]
        %v1080 = vld [vmem:[#allocation2 + $0x7f0] sm:$0xff]
        %v1081 = vld [vmem:[#allocation2 + $0x7f8] sm:$0xff]
        %v1082 = vld [vmem:[%s8] sm:$0xff]
        %v1083 = vld [vmem:[%s8 + $0x8] sm:$0xff]
        %v1084 = vld [vmem:[%s8 + $0x10] sm:$0xff]
        %v1085 = vld [vmem:[%s8 + $0x18] sm:$0xff]
        %v1086 = vld [vmem:[%s8 + $0x20] sm:$0xff]
        %v1087 = vld [vmem:[%s8 + $0x28] sm:$0xff]
        %v1088 = vld [vmem:[%s8 + $0x30] sm:$0xff]
        %v1089 = vld [vmem:[%s8 + $0x38] sm:$0xff]
        %v1090 = vld [vmem:[%s8 + $0x40] sm:$0xff]
        %v1091 = vld [vmem:[%s8 + $0x48] sm:$0xff]
        %v1092 = vld [vmem:[%s8 + $0x50] sm:$0xff]
        %v1093 = vld [vmem:[%s8 + $0x58] sm:$0xff]
        %v1094 = vld [vmem:[%s8 + $0x60] sm:$0xff]
        %v1095 = vld [vmem:[%s8 + $0x68] sm:$0xff]
        %v1096 = vld [vmem:[%s8 + $0x70] sm:$0xff]
        %v1097 = vld [vmem:[%s8 + $0x78] sm:$0xff]
        %1098 = vrot.lane.b32.xlu0 %v802, 127
        %v1099 = vpop.permute.xlu0 %1098
        %1100 = vrot.lane.b32.xlu0 %v803, 127
        %v1101 = vpop.permute.xlu0 %1100
        %1102 = vrot.lane.b32.xlu0 %v804, 127
        %v1103 = vpop.permute.xlu0 %1102
        %1104 = vrot.lane.b32.xlu0 %v805, 127
        %v1105 = vpop.permute.xlu0 %1104
        %1106 = vrot.lane.b32.xlu0 %v806, 127
        %v1107 = vpop.permute.xlu0 %1106
        %1108 = vrot.lane.b32.xlu0 %v807, 127
        %v1109 = vpop.permute.xlu0 %1108
        %1110 = vrot.lane.b32.xlu0 %v808, 127
        %v1111 = vpop.permute.xlu0 %1110
        %1112 = vrot.lane.b32.xlu0 %v809, 127
        %v1113 = vpop.permute.xlu0 %1112
        %v1114 = vlaneseq
        %v1115 = vand.u32 %v1114, 127
        %vm1116 = vcmp.lt.s32.totalorder %v1115, 127
        %v1117 = vsel %vm1116, %v1111, %v1113
        %v1118 = vsel %vm1116, %v1109, %v1111
        %v1119 = vsel %vm1116, %v1107, %v1109
        %v1120 = vsel %vm1116, %v1105, %v1107
        %v1121 = vsel %vm1116, %v1103, %v1105
        %v1122 = vsel %vm1116, %v1101, %v1103
        %v1123 = vsel %vm1116, %v1099, %v1101
        %v1124 = vsel %vm1116, %v1113, %v1099
        %v1125 = vmax.f32 %v802, %v1123
        %v1126 = vmax.f32 %v803, %v1122
        %v1127 = vmax.f32 %v804, %v1121
        %v1128 = vmax.f32 %v805, %v1120
        %v1129 = vmax.f32 %v806, %v1119
        %v1130 = vmax.f32 %v807, %v1118
        %v1131 = vmax.f32 %v808, %v1117
        %v1132 = vmax.f32 %v809, %v1124
        %1133 = vrot.lane.b32.xlu0 %v802, 96
        %v1134 = vpop.permute.xlu0 %1133
        %1135 = vrot.lane.b32.xlu0 %v803, 96
        %v1136 = vpop.permute.xlu0 %1135
        %1137 = vrot.lane.b32.xlu0 %v804, 96
        %v1138 = vpop.permute.xlu0 %1137
        %1139 = vrot.lane.b32.xlu0 %v805, 96
        %v1140 = vpop.permute.xlu0 %1139
        %1141 = vrot.lane.b32.xlu0 %v806, 96
        %v1142 = vpop.permute.xlu0 %1141
        %1143 = vrot.lane.b32.xlu0 %v807, 96
        %v1144 = vpop.permute.xlu0 %1143
        %1145 = vrot.lane.b32.xlu0 %v808, 96
        %v1146 = vpop.permute.xlu0 %1145
        %1147 = vrot.lane.b32.xlu0 %v809, 96
        %v1148 = vpop.permute.xlu0 %1147
        %vm1149 = vcmp.lt.s32.totalorder %v1115, 96
        %v1150 = vsel %vm1149, %v1146, %v1148
        %v1151 = vsel %vm1149, %v1144, %v1146
        %v1152 = vsel %vm1149, %v1142, %v1144
        %v1153 = vsel %vm1149, %v1140, %v1142
        %v1154 = vsel %vm1149, %v1138, %v1140
        %v1155 = vsel %vm1149, %v1136, %v1138
        %v1156 = vsel %vm1149, %v1134, %v1136
        %v1157 = vsel %vm1149, %v1148, %v1134
        %1158 = vrot.lane.b32.xlu0 %v802, 95
        %v1159 = vpop.permute.xlu0 %1158
        %1160 = vrot.lane.b32.xlu0 %v803, 95
        %v1161 = vpop.permute.xlu0 %1160
        %1162 = vrot.lane.b32.xlu0 %v804, 95
        %v1163 = vpop.permute.xlu0 %1162
        %1164 = vrot.lane.b32.xlu0 %v805, 95
        %v1165 = vpop.permute.xlu0 %1164
        %1166 = vrot.lane.b32.xlu0 %v806, 95
        %v1167 = vpop.permute.xlu0 %1166
        %1168 = vrot.lane.b32.xlu0 %v807, 95
        %v1169 = vpop.permute.xlu0 %1168
        %1170 = vrot.lane.b32.xlu0 %v808, 95
        %v1171 = vpop.permute.xlu0 %1170
        %1172 = vrot.lane.b32.xlu0 %v809, 95
        %v1173 = vpop.permute.xlu0 %1172
        %vm1174 = vcmp.lt.s32.totalorder %v1115, 95
        %v1175 = vsel %vm1174, %v1171, %v1173
        %v1176 = vsel %vm1174, %v1169, %v1171
        %v1177 = vsel %vm1174, %v1167, %v1169
        %v1178 = vsel %vm1174, %v1165, %v1167
        %v1179 = vsel %vm1174, %v1163, %v1165
        %v1180 = vsel %vm1174, %v1161, %v1163
        %v1181 = vsel %vm1174, %v1159, %v1161
        %v1182 = vsel %vm1174, %v1173, %v1159
        %v1183 = vmax.f32 %v1156, %v1181
        %v1184 = vmax.f32 %v1155, %v1180
        %v1185 = vmax.f32 %v1154, %v1179
        %v1186 = vmax.f32 %v1153, %v1178
        %v1187 = vmax.f32 %v1152, %v1177
        %v1188 = vmax.f32 %v1151, %v1176
        %v1189 = vmax.f32 %v1150, %v1175
        %v1190 = vmax.f32 %v1157, %v1182
        %v1191 = vmax.f32 %v1125, %v1183
        %v1192 = vmax.f32 %v1126, %v1184
        %v1193 = vmax.f32 %v1127, %v1185
        %v1194 = vmax.f32 %v1128, %v1186
        %v1195 = vmax.f32 %v1129, %v1187
        %v1196 = vmax.f32 %v1130, %v1188
        %v1197 = vmax.f32 %v1131, %v1189
        %v1198 = vmax.f32 %v1132, %v1190
        %vm1199 = vcmask 523264
        %v1201 = vsel %vm1199, %v812, 0
        %1203 = vmatpush.msra.mxu0 0.0
        %1204 = vmatpush.msra.mxu0 0.0
        %1205 = vmatpush.msra.mxu0 0.0
        %1206 = vmatpush.msra.mxu0 0.0
        %1207 = vmatpush.msra.mxu0 0.0
        %1208 = vmatpush.msra.mxu0 0.0
        %1209 = vmatpush.msra.mxu0 0.0
        %1210 = vmatpush.msra.mxu0 0.0
        %1211 = vmatpush.msra.mxu0 %v1096
        %1212 = vmatpush.msra.mxu0 %v1094
        %1213 = vmatpush.msra.mxu0 %v1092
        %1214 = vmatpush.msra.mxu0 %v1090
        %1215 = vmatpush.msra.mxu0 %v1088
        %1216 = vmatpush.msra.mxu0 %v1086
        %1217 = vmatpush.msra.mxu0 %v1084
        %1218 = vmatpush.msra.mxu0 %v1082
        %1219 = vmatmul.f32.gmra.mxu0 %v1201
        %v1220 = vpop.f32.mrf.mxu0
        %v1221 = vadd.f32 0.0, %v1220
        %1222 = vdwg.mxu0
        %1223 = vmatpush.msra.mxu0 0.0
        %1224 = vmatpush.msra.mxu0 0.0
        %1225 = vmatpush.msra.mxu0 0.0
        %1226 = vmatpush.msra.mxu0 0.0
        %1227 = vmatpush.msra.mxu0 0.0
        %1228 = vmatpush.msra.mxu0 0.0
        %1229 = vmatpush.msra.mxu0 0.0
        %1230 = vmatpush.msra.mxu0 0.0
        %1231 = vmatpush.msra.mxu0 %v1097
        %1232 = vmatpush.msra.mxu0 %v1095
        %1233 = vmatpush.msra.mxu0 %v1093
        %1234 = vmatpush.msra.mxu0 %v1091
        %1235 = vmatpush.msra.mxu0 %v1089
        %1236 = vmatpush.msra.mxu0 %v1087
        %1237 = vmatpush.msra.mxu0 %v1085
        %1238 = vmatpush.msra.mxu0 %v1083
        %1239 = vmatmul.f32.gmra.mxu0 %v1201
        %v1240 = vpop.f32.mrf.mxu0
        %v1241 = vadd.f32 0.0, %v1240
        %1242 = vdwg.mxu0
        %1243 = vmatpush.msra.mxu0 %v856
        %1244 = vmatpush.msra.mxu0 %v854
        %1245 = vmatpush.msra.mxu0 %v852
        %1246 = vmatpush.msra.mxu0 %v850
        %1247 = vmatpush.msra.mxu0 %v848
        %1248 = vmatpush.msra.mxu0 %v846
        %1249 = vmatpush.msra.mxu0 %v844
        %1250 = vmatpush.msra.mxu0 %v842
        %1251 = vmatpush.msra.mxu0 %v840
        %1252 = vmatpush.msra.mxu0 %v838
        %1253 = vmatpush.msra.mxu0 %v836
        %1254 = vmatpush.msra.mxu0 %v834
        %1255 = vmatpush.msra.mxu0 %v832
        %1256 = vmatpush.msra.mxu0 %v830
        %1257 = vmatpush.msra.mxu0 %v828
        %1258 = vmatpush.msra.mxu0 %v826
        %1259 = vmatmul.f32.gmra.mxu0 %v1191
        %v1260 = vpop.f32.mrf.mxu0
        %v1261 = vadd.f32 %v810, %v1260
        %1262 = vdwg.mxu0
        %1263 = vmatpush.msra.mxu0 %v888
        %1264 = vmatpush.msra.mxu0 %v886
        %1265 = vmatpush.msra.mxu0 %v884
        %1266 = vmatpush.msra.mxu0 %v882
        %1267 = vmatpush.msra.mxu0 %v880
        %1268 = vmatpush.msra.mxu0 %v878
        %1269 = vmatpush.msra.mxu0 %v876
        %1270 = vmatpush.msra.mxu0 %v874
        %1271 = vmatpush.msra.mxu0 %v872
        %1272 = vmatpush.msra.mxu0 %v870
        %1273 = vmatpush.msra.mxu0 %v868
        %1274 = vmatpush.msra.mxu0 %v866
        %1275 = vmatpush.msra.mxu0 %v864
        %1276 = vmatpush.msra.mxu0 %v862
        %1277 = vmatpush.msra.mxu0 %v860
        %1278 = vmatpush.msra.mxu0 %v858
        %1279 = vmatmul.f32.gmra.mxu0 %v1192
        %v1280 = vpop.f32.mrf.mxu0
        %v1281 = vadd.f32 %v1261, %v1280
        %1282 = vdwg.mxu0
        %1283 = vmatpush.msra.mxu0 %v920
        %1284 = vmatpush.msra.mxu0 %v918
        %1285 = vmatpush.msra.mxu0 %v916
        %1286 = vmatpush.msra.mxu0 %v914
        %1287 = vmatpush.msra.mxu0 %v912
        %1288 = vmatpush.msra.mxu0 %v910
        %1289 = vmatpush.msra.mxu0 %v908
        %1290 = vmatpush.msra.mxu0 %v906
        %1291 = vmatpush.msra.mxu0 %v904
        %1292 = vmatpush.msra.mxu0 %v902
        %1293 = vmatpush.msra.mxu0 %v900
        %1294 = vmatpush.msra.mxu0 %v898
        %1295 = vmatpush.msra.mxu0 %v896
        %1296 = vmatpush.msra.mxu0 %v894
        %1297 = vmatpush.msra.mxu0 %v892
        %1298 = vmatpush.msra.mxu0 %v890
        %1299 = vmatmul.f32.gmra.mxu0 %v1193
        %v1300 = vpop.f32.mrf.mxu0
        %v1301 = vadd.f32 %v1281, %v1300
        %1302 = vdwg.mxu0
        %1303 = vmatpush.msra.mxu0 %v952
        %1304 = vmatpush.msra.mxu0 %v950
        %1305 = vmatpush.msra.mxu0 %v948
        %1306 = vmatpush.msra.mxu0 %v946
        %1307 = vmatpush.msra.mxu0 %v944
        %1308 = vmatpush.msra.mxu0 %v942
        %1309 = vmatpush.msra.mxu0 %v940
        %1310 = vmatpush.msra.mxu0 %v938
        %1311 = vmatpush.msra.mxu0 %v936
        %1312 = vmatpush.msra.mxu0 %v934
        %1313 = vmatpush.msra.mxu0 %v932
        %1314 = vmatpush.msra.mxu0 %v930
        %1315 = vmatpush.msra.mxu0 %v928
        %1316 = vmatpush.msra.mxu0 %v926
        %1317 = vmatpush.msra.mxu0 %v924
        %1318 = vmatpush.msra.mxu0 %v922
        %1319 = vmatmul.f32.gmra.mxu0 %v1194
        %v1320 = vpop.f32.mrf.mxu0
        %v1321 = vadd.f32 %v1301, %v1320
        %1322 = vdwg.mxu0
        %1323 = vmatpush.msra.mxu0 %v984
        %1324 = vmatpush.msra.mxu0 %v982
        %1325 = vmatpush.msra.mxu0 %v980
        %1326 = vmatpush.msra.mxu0 %v978
        %1327 = vmatpush.msra.mxu0 %v976
        %1328 = vmatpush.msra.mxu0 %v974
        %1329 = vmatpush.msra.mxu0 %v972
        %1330 = vmatpush.msra.mxu0 %v970
        %1331 = vmatpush.msra.mxu0 %v968
        %1332 = vmatpush.msra.mxu0 %v966
        %1333 = vmatpush.msra.mxu0 %v964
        %1334 = vmatpush.msra.mxu0 %v962
        %1335 = vmatpush.msra.mxu0 %v960
        %1336 = vmatpush.msra.mxu0 %v958
        %1337 = vmatpush.msra.mxu0 %v956
        %1338 = vmatpush.msra.mxu0 %v954
        %1339 = vmatmul.f32.gmra.mxu0 %v1195
        %v1340 = vpop.f32.mrf.mxu0
        %v1341 = vadd.f32 %v1321, %v1340
        %1342 = vdwg.mxu0
        %1343 = vmatpush.msra.mxu0 %v1016
        %1344 = vmatpush.msra.mxu0 %v1014
        %1345 = vmatpush.msra.mxu0 %v1012
        %1346 = vmatpush.msra.mxu0 %v1010
        %1347 = vmatpush.msra.mxu0 %v1008
        %1348 = vmatpush.msra.mxu0 %v1006
        %1349 = vmatpush.msra.mxu0 %v1004
        %1350 = vmatpush.msra.mxu0 %v1002
        %1351 = vmatpush.msra.mxu0 %v1000
        %1352 = vmatpush.msra.mxu0 %v998
        %1353 = vmatpush.msra.mxu0 %v996
        %1354 = vmatpush.msra.mxu0 %v994
        %1355 = vmatpush.msra.mxu0 %v992
        %1356 = vmatpush.msra.mxu0 %v990
        %1357 = vmatpush.msra.mxu0 %v988
        %1358 = vmatpush.msra.mxu0 %v986
        %1359 = vmatmul.f32.gmra.mxu0 %v1196
        %v1360 = vpop.f32.mrf.mxu0
        %v1361 = vadd.f32 %v1341, %v1360
        %1362 = vdwg.mxu0
        %1363 = vmatpush.msra.mxu0 %v1048
        %1364 = vmatpush.msra.mxu0 %v1046
        %1365 = vmatpush.msra.mxu0 %v1044
        %1366 = vmatpush.msra.mxu0 %v1042
        %1367 = vmatpush.msra.mxu0 %v1040
        %1368 = vmatpush.msra.mxu0 %v1038
        %1369 = vmatpush.msra.mxu0 %v1036
        %1370 = vmatpush.msra.mxu0 %v1034
        %1371 = vmatpush.msra.mxu0 %v1032
        %1372 = vmatpush.msra.mxu0 %v1030
        %1373 = vmatpush.msra.mxu0 %v1028
        %1374 = vmatpush.msra.mxu0 %v1026
        %1375 = vmatpush.msra.mxu0 %v1024
        %1376 = vmatpush.msra.mxu0 %v1022
        %1377 = vmatpush.msra.mxu0 %v1020
        %1378 = vmatpush.msra.mxu0 %v1018
        %1379 = vmatmul.f32.gmra.mxu0 %v1197
        %v1380 = vpop.f32.mrf.mxu0
        %v1381 = vadd.f32 %v1361, %v1380
        %1382 = vdwg.mxu0
        %1383 = vmatpush.msra.mxu0 %v1080
        %1384 = vmatpush.msra.mxu0 %v1078
        %1385 = vmatpush.msra.mxu0 %v1076
        %1386 = vmatpush.msra.mxu0 %v1074
        %1387 = vmatpush.msra.mxu0 %v1072
        %1388 = vmatpush.msra.mxu0 %v1070
        %1389 = vmatpush.msra.mxu0 %v1068
        %1390 = vmatpush.msra.mxu0 %v1066
        %1391 = vmatpush.msra.mxu0 %v1064
        %1392 = vmatpush.msra.mxu0 %v1062
        %1393 = vmatpush.msra.mxu0 %v1060
        %1394 = vmatpush.msra.mxu0 %v1058
        %1395 = vmatpush.msra.mxu0 %v1056
        %1396 = vmatpush.msra.mxu0 %v1054
        %1397 = vmatpush.msra.mxu0 %v1052
        %1398 = vmatpush.msra.mxu0 %v1050
        %1399 = vmatmul.f32.gmra.mxu0 %v1198
        %v1400 = vpop.f32.mrf.mxu0
        %v1401 = vadd.f32 %v1381, %v1400
        %1402 = vdwg.mxu0
        %1403 = vmatpush.msra.mxu0 %v857
        %1404 = vmatpush.msra.mxu0 %v855
        %1405 = vmatpush.msra.mxu0 %v853
        %1406 = vmatpush.msra.mxu0 %v851
        %1407 = vmatpush.msra.mxu0 %v849
        %1408 = vmatpush.msra.mxu0 %v847
        %1409 = vmatpush.msra.mxu0 %v845
        %1410 = vmatpush.msra.mxu0 %v843
        %1411 = vmatpush.msra.mxu0 %v841
        %1412 = vmatpush.msra.mxu0 %v839
        %1413 = vmatpush.msra.mxu0 %v837
        %1414 = vmatpush.msra.mxu0 %v835
        %1415 = vmatpush.msra.mxu0 %v833
        %1416 = vmatpush.msra.mxu0 %v831
        %1417 = vmatpush.msra.mxu0 %v829
        %1418 = vmatpush.msra.mxu0 %v827
        %1419 = vmatmul.f32.gmra.mxu0 %v1191
        %v1420 = vpop.f32.mrf.mxu0
        %v1421 = vadd.f32 %v811, %v1420
        %1422 = vdwg.mxu0
        %1423 = vmatpush.msra.mxu0 %v889
        %1424 = vmatpush.msra.mxu0 %v887
        %1425 = vmatpush.msra.mxu0 %v885
        %1426 = vmatpush.msra.mxu0 %v883
        %1427 = vmatpush.msra.mxu0 %v881
        %1428 = vmatpush.msra.mxu0 %v879
        %1429 = vmatpush.msra.mxu0 %v877
        %1430 = vmatpush.msra.mxu0 %v875
        %1431 = vmatpush.msra.mxu0 %v873
        %1432 = vmatpush.msra.mxu0 %v871
        %1433 = vmatpush.msra.mxu0 %v869
        %1434 = vmatpush.msra.mxu0 %v867
        %1435 = vmatpush.msra.mxu0 %v865
        %1436 = vmatpush.msra.mxu0 %v863
        %1437 = vmatpush.msra.mxu0 %v861
        %1438 = vmatpush.msra.mxu0 %v859
        %1439 = vmatmul.f32.gmra.mxu0 %v1192
        %v1440 = vpop.f32.mrf.mxu0
        %v1441 = vadd.f32 %v1421, %v1440
        %1442 = vdwg.mxu0
        %1443 = vmatpush.msra.mxu0 %v921
        %1444 = vmatpush.msra.mxu0 %v919
        %1445 = vmatpush.msra.mxu0 %v917
        %1446 = vmatpush.msra.mxu0 %v915
        %1447 = vmatpush.msra.mxu0 %v913
        %1448 = vmatpush.msra.mxu0 %v911
        %1449 = vmatpush.msra.mxu0 %v909
        %1450 = vmatpush.msra.mxu0 %v907
        %1451 = vmatpush.msra.mxu0 %v905
        %1452 = vmatpush.msra.mxu0 %v903
        %1453 = vmatpush.msra.mxu0 %v901
        %1454 = vmatpush.msra.mxu0 %v899
        %1455 = vmatpush.msra.mxu0 %v897
        %1456 = vmatpush.msra.mxu0 %v895
        %1457 = vmatpush.msra.mxu0 %v893
        %1458 = vmatpush.msra.mxu0 %v891
        %1459 = vmatmul.f32.gmra.mxu0 %v1193
        %v1460 = vpop.f32.mrf.mxu0
        %v1461 = vadd.f32 %v1441, %v1460
        %1462 = vdwg.mxu0
        %1463 = vmatpush.msra.mxu0 %v953
        %1464 = vmatpush.msra.mxu0 %v951
        %1465 = vmatpush.msra.mxu0 %v949
        %1466 = vmatpush.msra.mxu0 %v947
        %1467 = vmatpush.msra.mxu0 %v945
        %1468 = vmatpush.msra.mxu0 %v943
        %1469 = vmatpush.msra.mxu0 %v941
        %1470 = vmatpush.msra.mxu0 %v939
        %1471 = vmatpush.msra.mxu0 %v937
        %1472 = vmatpush.msra.mxu0 %v935
        %1473 = vmatpush.msra.mxu0 %v933
        %1474 = vmatpush.msra.mxu0 %v931
        %1475 = vmatpush.msra.mxu0 %v929
        %1476 = vmatpush.msra.mxu0 %v927
        %1477 = vmatpush.msra.mxu0 %v925
        %1478 = vmatpush.msra.mxu0 %v923
        %1479 = vmatmul.f32.gmra.mxu0 %v1194
        %v1480 = vpop.f32.mrf.mxu0
        %v1481 = vadd.f32 %v1461, %v1480
        %1482 = vdwg.mxu0
        %1483 = vmatpush.msra.mxu0 %v985
        %1484 = vmatpush.msra.mxu0 %v983
        %1485 = vmatpush.msra.mxu0 %v981
        %1486 = vmatpush.msra.mxu0 %v979
        %1487 = vmatpush.msra.mxu0 %v977
        %1488 = vmatpush.msra.mxu0 %v975
        %1489 = vmatpush.msra.mxu0 %v973
        %1490 = vmatpush.msra.mxu0 %v971
        %1491 = vmatpush.msra.mxu0 %v969
        %1492 = vmatpush.msra.mxu0 %v967
        %1493 = vmatpush.msra.mxu0 %v965
        %1494 = vmatpush.msra.mxu0 %v963
        %1495 = vmatpush.msra.mxu0 %v961
        %1496 = vmatpush.msra.mxu0 %v959
        %1497 = vmatpush.msra.mxu0 %v957
        %1498 = vmatpush.msra.mxu0 %v955
        %1499 = vmatmul.f32.gmra.mxu0 %v1195
        %v1500 = vpop.f32.mrf.mxu0
        %v1501 = vadd.f32 %v1481, %v1500
        %1502 = vdwg.mxu0
        %1503 = vmatpush.msra.mxu0 %v1017
        %1504 = vmatpush.msra.mxu0 %v1015
        %1505 = vmatpush.msra.mxu0 %v1013
        %1506 = vmatpush.msra.mxu0 %v1011
        %1507 = vmatpush.msra.mxu0 %v1009
        %1508 = vmatpush.msra.mxu0 %v1007
        %1509 = vmatpush.msra.mxu0 %v1005
        %1510 = vmatpush.msra.mxu0 %v1003
        %1511 = vmatpush.msra.mxu0 %v1001
        %1512 = vmatpush.msra.mxu0 %v999
        %1513 = vmatpush.msra.mxu0 %v997
        %1514 = vmatpush.msra.mxu0 %v995
        %1515 = vmatpush.msra.mxu0 %v993
        %1516 = vmatpush.msra.mxu0 %v991
        %1517 = vmatpush.msra.mxu0 %v989
        %1518 = vmatpush.msra.mxu0 %v987
        %1519 = vmatmul.f32.gmra.mxu0 %v1196
        %v1520 = vpop.f32.mrf.mxu0
        %v1521 = vadd.f32 %v1501, %v1520
        %1522 = vdwg.mxu0
        %1523 = vmatpush.msra.mxu0 %v1049
        %1524 = vmatpush.msra.mxu0 %v1047
        %1525 = vmatpush.msra.mxu0 %v1045
        %1526 = vmatpush.msra.mxu0 %v1043
        %1527 = vmatpush.msra.mxu0 %v1041
        %1528 = vmatpush.msra.mxu0 %v1039
        %1529 = vmatpush.msra.mxu0 %v1037
        %1530 = vmatpush.msra.mxu0 %v1035
        %1531 = vmatpush.msra.mxu0 %v1033
        %1532 = vmatpush.msra.mxu0 %v1031
        %1533 = vmatpush.msra.mxu0 %v1029
        %1534 = vmatpush.msra.mxu0 %v1027
        %1535 = vmatpush.msra.mxu0 %v1025
        %1536 = vmatpush.msra.mxu0 %v1023
        %1537 = vmatpush.msra.mxu0 %v1021
        %1538 = vmatpush.msra.mxu0 %v1019
        %1539 = vmatmul.f32.gmra.mxu0 %v1197
        %v1540 = vpop.f32.mrf.mxu0
        %v1541 = vadd.f32 %v1521, %v1540
        %1542 = vdwg.mxu0
        %1543 = vmatpush.msra.mxu0 %v1081
        %1544 = vmatpush.msra.mxu0 %v1079
        %1545 = vmatpush.msra.mxu0 %v1077
        %1546 = vmatpush.msra.mxu0 %v1075
        %1547 = vmatpush.msra.mxu0 %v1073
        %1548 = vmatpush.msra.mxu0 %v1071
        %1549 = vmatpush.msra.mxu0 %v1069
        %1550 = vmatpush.msra.mxu0 %v1067
        %1551 = vmatpush.msra.mxu0 %v1065
        %1552 = vmatpush.msra.mxu0 %v1063
        %1553 = vmatpush.msra.mxu0 %v1061
        %1554 = vmatpush.msra.mxu0 %v1059
        %1555 = vmatpush.msra.mxu0 %v1057
        %1556 = vmatpush.msra.mxu0 %v1055
        %1557 = vmatpush.msra.mxu0 %v1053
        %1558 = vmatpush.msra.mxu0 %v1051
        %1559 = vmatmul.f32.gmra.mxu0 %v1198
        %v1560 = vpop.f32.mrf.mxu0
        %v1561 = vadd.f32 %v1541, %v1560
        %1562 = vdwg.mxu0
        %v1563 = vadd.f32 %v1401, %v1221
        %v1564 = vadd.f32 %v1561, %v1241
        %v1565 = vmul.f32 %v1563, 0.33333334
        %v1566 = vmul.f32 %v1564, 0.33333334
        %1567 = vrot.lane.b32.xlu0 %v813, 127
        %v1568 = vpop.permute.xlu0 %1567
        %1569 = vrot.lane.b32.xlu0 %v814, 127
        %v1570 = vpop.permute.xlu0 %1569
        %1571 = vrot.lane.b32.xlu0 %v815, 127
        %v1572 = vpop.permute.xlu0 %1571
        %1573 = vrot.lane.b32.xlu0 %v816, 127
        %v1574 = vpop.permute.xlu0 %1573
        %1575 = vrot.lane.b32.xlu0 %v817, 127
        %v1576 = vpop.permute.xlu0 %1575
        %1577 = vrot.lane.b32.xlu0 %v818, 127
        %v1578 = vpop.permute.xlu0 %1577
        %1579 = vrot.lane.b32.xlu0 %v819, 127
        %v1580 = vpop.permute.xlu0 %1579
        %1581 = vrot.lane.b32.xlu0 %v820, 127
        %v1582 = vpop.permute.xlu0 %1581
        %v1583 = vsel %vm1116, %v1580, %v1582
        %v1584 = vsel %vm1116, %v1578, %v1580
        %v1585 = vsel %vm1116, %v1576, %v1578
        %v1586 = vsel %vm1116, %v1574, %v1576
        %v1587 = vsel %vm1116, %v1572, %v1574
        %v1588 = vsel %vm1116, %v1570, %v1572
        %v1589 = vsel %vm1116, %v1568, %v1570
        %v1590 = vsel %vm1116, %v1582, %v1568
        %v1591 = vmax.f32 %v813, %v1589
        %v1592 = vmax.f32 %v814, %v1588
        %v1593 = vmax.f32 %v815, %v1587
        %v1594 = vmax.f32 %v816, %v1586
        %v1595 = vmax.f32 %v817, %v1585
        %v1596 = vmax.f32 %v818, %v1584
        %v1597 = vmax.f32 %v819, %v1583
        %v1598 = vmax.f32 %v820, %v1590
        %1599 = vrot.lane.b32.xlu0 %v813, 96
        %v1600 = vpop.permute.xlu0 %1599
        %1601 = vrot.lane.b32.xlu0 %v814, 96
        %v1602 = vpop.permute.xlu0 %1601
        %1603 = vrot.lane.b32.xlu0 %v815, 96
        %v1604 = vpop.permute.xlu0 %1603
        %1605 = vrot.lane.b32.xlu0 %v816, 96
        %v1606 = vpop.permute.xlu0 %1605
        %1607 = vrot.lane.b32.xlu0 %v817, 96
        %v1608 = vpop.permute.xlu0 %1607
        %1609 = vrot.lane.b32.xlu0 %v818, 96
        %v1610 = vpop.permute.xlu0 %1609
        %1611 = vrot.lane.b32.xlu0 %v819, 96
        %v1612 = vpop.permute.xlu0 %1611
        %1613 = vrot.lane.b32.xlu0 %v820, 96
        %v1614 = vpop.permute.xlu0 %1613
        %v1615 = vsel %vm1149, %v1612, %v1614
        %v1616 = vsel %vm1149, %v1610, %v1612
        %v1617 = vsel %vm1149, %v1608, %v1610
        %v1618 = vsel %vm1149, %v1606, %v1608
        %v1619 = vsel %vm1149, %v1604, %v1606
        %v1620 = vsel %vm1149, %v1602, %v1604
        %v1621 = vsel %vm1149, %v1600, %v1602
        %v1622 = vsel %vm1149, %v1614, %v1600
        %1623 = vrot.lane.b32.xlu0 %v813, 95
        %v1624 = vpop.permute.xlu0 %1623
        %1625 = vrot.lane.b32.xlu0 %v814, 95
        %v1626 = vpop.permute.xlu0 %1625
        %1627 = vrot.lane.b32.xlu0 %v815, 95
        %v1628 = vpop.permute.xlu0 %1627
        %1629 = vrot.lane.b32.xlu0 %v816, 95
        %v1630 = vpop.permute.xlu0 %1629
        %1631 = vrot.lane.b32.xlu0 %v817, 95
        %v1632 = vpop.permute.xlu0 %1631
        %1633 = vrot.lane.b32.xlu0 %v818, 95
        %v1634 = vpop.permute.xlu0 %1633
        %1635 = vrot.lane.b32.xlu0 %v819, 95
        %v1636 = vpop.permute.xlu0 %1635
        %1637 = vrot.lane.b32.xlu0 %v820, 95
        %v1638 = vpop.permute.xlu0 %1637
        %v1639 = vsel %vm1174, %v1636, %v1638
        %v1640 = vsel %vm1174, %v1634, %v1636
        %v1641 = vsel %vm1174, %v1632, %v1634
        %v1642 = vsel %vm1174, %v1630, %v1632
        %v1643 = vsel %vm1174, %v1628, %v1630
        %v1644 = vsel %vm1174, %v1626, %v1628
        %v1645 = vsel %vm1174, %v1624, %v1626
        %v1646 = vsel %vm1174, %v1638, %v1624
        %v1647 = vmax.f32 %v1621, %v1645
        %v1648 = vmax.f32 %v1620, %v1644
        %v1649 = vmax.f32 %v1619, %v1643
        %v1650 = vmax.f32 %v1618, %v1642
        %v1651 = vmax.f32 %v1617, %v1641
        %v1652 = vmax.f32 %v1616, %v1640
        %v1653 = vmax.f32 %v1615, %v1639
        %v1654 = vmax.f32 %v1622, %v1646
        %v1655 = vmax.f32 %v1591, %v1647
        %v1656 = vmax.f32 %v1592, %v1648
        %v1657 = vmax.f32 %v1593, %v1649
        %v1658 = vmax.f32 %v1594, %v1650
        %v1659 = vmax.f32 %v1595, %v1651
        %v1660 = vmax.f32 %v1596, %v1652
        %v1661 = vmax.f32 %v1597, %v1653
        %v1662 = vmax.f32 %v1598, %v1654
        %v1664 = vsel %vm1199, %v823, 0
        %1666 = vmatpush.msra.mxu0 0.0
        %1667 = vmatpush.msra.mxu0 0.0
        %1668 = vmatpush.msra.mxu0 0.0
        %1669 = vmatpush.msra.mxu0 0.0
        %1670 = vmatpush.msra.mxu0 0.0
        %1671 = vmatpush.msra.mxu0 0.0
        %1672 = vmatpush.msra.mxu0 0.0
        %1673 = vmatpush.msra.mxu0 0.0
        %1674 = vmatpush.msra.mxu0 %v1096
        %1675 = vmatpush.msra.mxu0 %v1094
        %1676 = vmatpush.msra.mxu0 %v1092
        %1677 = vmatpush.msra.mxu0 %v1090
        %1678 = vmatpush.msra.mxu0 %v1088
        %1679 = vmatpush.msra.mxu0 %v1086
        %1680 = vmatpush.msra.mxu0 %v1084
        %1681 = vmatpush.msra.mxu0 %v1082
        %1682 = vmatmul.f32.gmra.mxu0 %v1664
        %v1683 = vpop.f32.mrf.mxu0
        %v1684 = vadd.f32 0.0, %v1683
        %1685 = vdwg.mxu0
        %1686 = vmatpush.msra.mxu0 0.0
        %1687 = vmatpush.msra.mxu0 0.0
        %1688 = vmatpush.msra.mxu0 0.0
        %1689 = vmatpush.msra.mxu0 0.0
        %1690 = vmatpush.msra.mxu0 0.0
        %1691 = vmatpush.msra.mxu0 0.0
        %1692 = vmatpush.msra.mxu0 0.0
        %1693 = vmatpush.msra.mxu0 0.0
        %1694 = vmatpush.msra.mxu0 %v1097
        %1695 = vmatpush.msra.mxu0 %v1095
        %1696 = vmatpush.msra.mxu0 %v1093
        %1697 = vmatpush.msra.mxu0 %v1091
        %1698 = vmatpush.msra.mxu0 %v1089
        %1699 = vmatpush.msra.mxu0 %v1087
        %1700 = vmatpush.msra.mxu0 %v1085
        %1701 = vmatpush.msra.mxu0 %v1083
        %1702 = vmatmul.f32.gmra.mxu0 %v1664
        %v1703 = vpop.f32.mrf.mxu0
        %v1704 = vadd.f32 0.0, %v1703
        %1705 = vdwg.mxu0
        %1706 = vmatpush.msra.mxu0 %v856
        %1707 = vmatpush.msra.mxu0 %v854
        %1708 = vmatpush.msra.mxu0 %v852
        %1709 = vmatpush.msra.mxu0 %v850
        %1710 = vmatpush.msra.mxu0 %v848
        %1711 = vmatpush.msra.mxu0 %v846
        %1712 = vmatpush.msra.mxu0 %v844
        %1713 = vmatpush.msra.mxu0 %v842
        %1714 = vmatpush.msra.mxu0 %v840
        %1715 = vmatpush.msra.mxu0 %v838
        %1716 = vmatpush.msra.mxu0 %v836
        %1717 = vmatpush.msra.mxu0 %v834
        %1718 = vmatpush.msra.mxu0 %v832
        %1719 = vmatpush.msra.mxu0 %v830
        %1720 = vmatpush.msra.mxu0 %v828
        %1721 = vmatpush.msra.mxu0 %v826
        %1722 = vmatmul.f32.gmra.mxu0 %v1655
        %v1723 = vpop.f32.mrf.mxu0
        %v1724 = vadd.f32 %v821, %v1723
        %1725 = vdwg.mxu0
        %1726 = vmatpush.msra.mxu0 %v888
        %1727 = vmatpush.msra.mxu0 %v886
        %1728 = vmatpush.msra.mxu0 %v884
        %1729 = vmatpush.msra.mxu0 %v882
        %1730 = vmatpush.msra.mxu0 %v880
        %1731 = vmatpush.msra.mxu0 %v878
        %1732 = vmatpush.msra.mxu0 %v876
        %1733 = vmatpush.msra.mxu0 %v874
        %1734 = vmatpush.msra.mxu0 %v872
        %1735 = vmatpush.msra.mxu0 %v870
        %1736 = vmatpush.msra.mxu0 %v868
        %1737 = vmatpush.msra.mxu0 %v866
        %1738 = vmatpush.msra.mxu0 %v864
        %1739 = vmatpush.msra.mxu0 %v862
        %1740 = vmatpush.msra.mxu0 %v860
        %1741 = vmatpush.msra.mxu0 %v858
        %1742 = vmatmul.f32.gmra.mxu0 %v1656
        %v1743 = vpop.f32.mrf.mxu0
        %v1744 = vadd.f32 %v1724, %v1743
        %1745 = vdwg.mxu0
        %1746 = vmatpush.msra.mxu0 %v920
        %1747 = vmatpush.msra.mxu0 %v918
        %1748 = vmatpush.msra.mxu0 %v916
        %1749 = vmatpush.msra.mxu0 %v914
        %1750 = vmatpush.msra.mxu0 %v912
        %1751 = vmatpush.msra.mxu0 %v910
        %1752 = vmatpush.msra.mxu0 %v908
        %1753 = vmatpush.msra.mxu0 %v906
        %1754 = vmatpush.msra.mxu0 %v904
        %1755 = vmatpush.msra.mxu0 %v902
        %1756 = vmatpush.msra.mxu0 %v900
        %1757 = vmatpush.msra.mxu0 %v898
        %1758 = vmatpush.msra.mxu0 %v896
        %1759 = vmatpush.msra.mxu0 %v894
        %1760 = vmatpush.msra.mxu0 %v892
        %1761 = vmatpush.msra.mxu0 %v890
        %1762 = vmatmul.f32.gmra.mxu0 %v1657
        %v1763 = vpop.f32.mrf.mxu0
        %v1764 = vadd.f32 %v1744, %v1763
        %1765 = vdwg.mxu0
        %1766 = vmatpush.msra.mxu0 %v952
        %1767 = vmatpush.msra.mxu0 %v950
        %1768 = vmatpush.msra.mxu0 %v948
        %1769 = vmatpush.msra.mxu0 %v946
        %1770 = vmatpush.msra.mxu0 %v944
        %1771 = vmatpush.msra.mxu0 %v942
        %1772 = vmatpush.msra.mxu0 %v940
        %1773 = vmatpush.msra.mxu0 %v938
        %1774 = vmatpush.msra.mxu0 %v936
        %1775 = vmatpush.msra.mxu0 %v934
        %1776 = vmatpush.msra.mxu0 %v932
        %1777 = vmatpush.msra.mxu0 %v930
        %1778 = vmatpush.msra.mxu0 %v928
        %1779 = vmatpush.msra.mxu0 %v926
        %1780 = vmatpush.msra.mxu0 %v924
        %1781 = vmatpush.msra.mxu0 %v922
        %1782 = vmatmul.f32.gmra.mxu0 %v1658
        %v1783 = vpop.f32.mrf.mxu0
        %v1784 = vadd.f32 %v1764, %v1783
        %1785 = vdwg.mxu0
        %1786 = vmatpush.msra.mxu0 %v984
        %1787 = vmatpush.msra.mxu0 %v982
        %1788 = vmatpush.msra.mxu0 %v980
        %1789 = vmatpush.msra.mxu0 %v978
        %1790 = vmatpush.msra.mxu0 %v976
        %1791 = vmatpush.msra.mxu0 %v974
        %1792 = vmatpush.msra.mxu0 %v972
        %1793 = vmatpush.msra.mxu0 %v970
        %1794 = vmatpush.msra.mxu0 %v968
        %1795 = vmatpush.msra.mxu0 %v966
        %1796 = vmatpush.msra.mxu0 %v964
        %1797 = vmatpush.msra.mxu0 %v962
        %1798 = vmatpush.msra.mxu0 %v960
        %1799 = vmatpush.msra.mxu0 %v958
        %1800 = vmatpush.msra.mxu0 %v956
        %1801 = vmatpush.msra.mxu0 %v954
        %1802 = vmatmul.f32.gmra.mxu0 %v1659
        %v1803 = vpop.f32.mrf.mxu0
        %v1804 = vadd.f32 %v1784, %v1803
        %1805 = vdwg.mxu0
        %1806 = vmatpush.msra.mxu0 %v1016
        %1807 = vmatpush.msra.mxu0 %v1014
        %1808 = vmatpush.msra.mxu0 %v1012
        %1809 = vmatpush.msra.mxu0 %v1010
        %1810 = vmatpush.msra.mxu0 %v1008
        %1811 = vmatpush.msra.mxu0 %v1006
        %1812 = vmatpush.msra.mxu0 %v1004
        %1813 = vmatpush.msra.mxu0 %v1002
        %1814 = vmatpush.msra.mxu0 %v1000
        %1815 = vmatpush.msra.mxu0 %v998
        %1816 = vmatpush.msra.mxu0 %v996
        %1817 = vmatpush.msra.mxu0 %v994
        %1818 = vmatpush.msra.mxu0 %v992
        %1819 = vmatpush.msra.mxu0 %v990
        %1820 = vmatpush.msra.mxu0 %v988
        %1821 = vmatpush.msra.mxu0 %v986
        %1822 = vmatmul.f32.gmra.mxu0 %v1660
        %v1823 = vpop.f32.mrf.mxu0
        %v1824 = vadd.f32 %v1804, %v1823
        %1825 = vdwg.mxu0
        %1826 = vmatpush.msra.mxu0 %v1048
        %1827 = vmatpush.msra.mxu0 %v1046
        %1828 = vmatpush.msra.mxu0 %v1044
        %1829 = vmatpush.msra.mxu0 %v1042
        %1830 = vmatpush.msra.mxu0 %v1040
        %1831 = vmatpush.msra.mxu0 %v1038
        %1832 = vmatpush.msra.mxu0 %v1036
        %1833 = vmatpush.msra.mxu0 %v1034
        %1834 = vmatpush.msra.mxu0 %v1032
        %1835 = vmatpush.msra.mxu0 %v1030
        %1836 = vmatpush.msra.mxu0 %v1028
        %1837 = vmatpush.msra.mxu0 %v1026
        %1838 = vmatpush.msra.mxu0 %v1024
        %1839 = vmatpush.msra.mxu0 %v1022
        %1840 = vmatpush.msra.mxu0 %v1020
        %1841 = vmatpush.msra.mxu0 %v1018
        %1842 = vmatmul.f32.gmra.mxu0 %v1661
        %v1843 = vpop.f32.mrf.mxu0
        %v1844 = vadd.f32 %v1824, %v1843
        %1845 = vdwg.mxu0
        %1846 = vmatpush.msra.mxu0 %v1080
        %1847 = vmatpush.msra.mxu0 %v1078
        %1848 = vmatpush.msra.mxu0 %v1076
        %1849 = vmatpush.msra.mxu0 %v1074
        %1850 = vmatpush.msra.mxu0 %v1072
        %1851 = vmatpush.msra.mxu0 %v1070
        %1852 = vmatpush.msra.mxu0 %v1068
        %1853 = vmatpush.msra.mxu0 %v1066
        %1854 = vmatpush.msra.mxu0 %v1064
        %1855 = vmatpush.msra.mxu0 %v1062
        %1856 = vmatpush.msra.mxu0 %v1060
        %1857 = vmatpush.msra.mxu0 %v1058
        %1858 = vmatpush.msra.mxu0 %v1056
        %1859 = vmatpush.msra.mxu0 %v1054
        %1860 = vmatpush.msra.mxu0 %v1052
        %1861 = vmatpush.msra.mxu0 %v1050
        %1862 = vmatmul.f32.gmra.mxu0 %v1662
        %v1863 = vpop.f32.mrf.mxu0
        %v1864 = vadd.f32 %v1844, %v1863
        %1865 = vdwg.mxu0
        %1866 = vmatpush.msra.mxu0 %v857
        %1867 = vmatpush.msra.mxu0 %v855
        %1868 = vmatpush.msra.mxu0 %v853
        %1869 = vmatpush.msra.mxu0 %v851
        %1870 = vmatpush.msra.mxu0 %v849
        %1871 = vmatpush.msra.mxu0 %v847
        %1872 = vmatpush.msra.mxu0 %v845
        %1873 = vmatpush.msra.mxu0 %v843
        %1874 = vmatpush.msra.mxu0 %v841
        %1875 = vmatpush.msra.mxu0 %v839
        %1876 = vmatpush.msra.mxu0 %v837
        %1877 = vmatpush.msra.mxu0 %v835
        %1878 = vmatpush.msra.mxu0 %v833
        %1879 = vmatpush.msra.mxu0 %v831
        %1880 = vmatpush.msra.mxu0 %v829
        %1881 = vmatpush.msra.mxu0 %v827
        %1882 = vmatmul.f32.gmra.mxu0 %v1655
        %v1883 = vpop.f32.mrf.mxu0
        %v1884 = vadd.f32 %v822, %v1883
        %1885 = vdwg.mxu0
        %1886 = vmatpush.msra.mxu0 %v889
        %1887 = vmatpush.msra.mxu0 %v887
        %1888 = vmatpush.msra.mxu0 %v885
        %1889 = vmatpush.msra.mxu0 %v883
        %1890 = vmatpush.msra.mxu0 %v881
        %1891 = vmatpush.msra.mxu0 %v879
        %1892 = vmatpush.msra.mxu0 %v877
        %1893 = vmatpush.msra.mxu0 %v875
        %1894 = vmatpush.msra.mxu0 %v873
        %1895 = vmatpush.msra.mxu0 %v871
        %1896 = vmatpush.msra.mxu0 %v869
        %1897 = vmatpush.msra.mxu0 %v867
        %1898 = vmatpush.msra.mxu0 %v865
        %1899 = vmatpush.msra.mxu0 %v863
        %1900 = vmatpush.msra.mxu0 %v861
        %1901 = vmatpush.msra.mxu0 %v859
        %1902 = vmatmul.f32.gmra.mxu0 %v1656
        %v1903 = vpop.f32.mrf.mxu0
        %v1904 = vadd.f32 %v1884, %v1903
        %1905 = vdwg.mxu0
        %1906 = vmatpush.msra.mxu0 %v921
        %1907 = vmatpush.msra.mxu0 %v919
        %1908 = vmatpush.msra.mxu0 %v917
        %1909 = vmatpush.msra.mxu0 %v915
        %1910 = vmatpush.msra.mxu0 %v913
        %1911 = vmatpush.msra.mxu0 %v911
        %1912 = vmatpush.msra.mxu0 %v909
        %1913 = vmatpush.msra.mxu0 %v907
        %1914 = vmatpush.msra.mxu0 %v905
        %1915 = vmatpush.msra.mxu0 %v903
        %1916 = vmatpush.msra.mxu0 %v901
        %1917 = vmatpush.msra.mxu0 %v899
        %1918 = vmatpush.msra.mxu0 %v897
        %1919 = vmatpush.msra.mxu0 %v895
        %1920 = vmatpush.msra.mxu0 %v893
        %1921 = vmatpush.msra.mxu0 %v891
        %1922 = vmatmul.f32.gmra.mxu0 %v1657
        %v1923 = vpop.f32.mrf.mxu0
        %v1924 = vadd.f32 %v1904, %v1923
        %1925 = vdwg.mxu0
        %1926 = vmatpush.msra.mxu0 %v953
        %1927 = vmatpush.msra.mxu0 %v951
        %1928 = vmatpush.msra.mxu0 %v949
        %1929 = vmatpush.msra.mxu0 %v947
        %1930 = vmatpush.msra.mxu0 %v945
        %1931 = vmatpush.msra.mxu0 %v943
        %1932 = vmatpush.msra.mxu0 %v941
        %1933 = vmatpush.msra.mxu0 %v939
        %1934 = vmatpush.msra.mxu0 %v937
        %1935 = vmatpush.msra.mxu0 %v935
        %1936 = vmatpush.msra.mxu0 %v933
        %1937 = vmatpush.msra.mxu0 %v931
        %1938 = vmatpush.msra.mxu0 %v929
        %1939 = vmatpush.msra.mxu0 %v927
        %1940 = vmatpush.msra.mxu0 %v925
        %1941 = vmatpush.msra.mxu0 %v923
        %1942 = vmatmul.f32.gmra.mxu0 %v1658
        %v1943 = vpop.f32.mrf.mxu0
        %v1944 = vadd.f32 %v1924, %v1943
        %1945 = vdwg.mxu0
        %1946 = vmatpush.msra.mxu0 %v985
        %1947 = vmatpush.msra.mxu0 %v983
        %1948 = vmatpush.msra.mxu0 %v981
        %1949 = vmatpush.msra.mxu0 %v979
        %1950 = vmatpush.msra.mxu0 %v977
        %1951 = vmatpush.msra.mxu0 %v975
        %1952 = vmatpush.msra.mxu0 %v973
        %1953 = vmatpush.msra.mxu0 %v971
        %1954 = vmatpush.msra.mxu0 %v969
        %1955 = vmatpush.msra.mxu0 %v967
        %1956 = vmatpush.msra.mxu0 %v965
        %1957 = vmatpush.msra.mxu0 %v963
        %1958 = vmatpush.msra.mxu0 %v961
        %1959 = vmatpush.msra.mxu0 %v959
        %1960 = vmatpush.msra.mxu0 %v957
        %1961 = vmatpush.msra.mxu0 %v955
        %1962 = vmatmul.f32.gmra.mxu0 %v1659
        %v1963 = vpop.f32.mrf.mxu0
        %v1964 = vadd.f32 %v1944, %v1963
        %1965 = vdwg.mxu0
        %1966 = vmatpush.msra.mxu0 %v1017
        %1967 = vmatpush.msra.mxu0 %v1015
        %1968 = vmatpush.msra.mxu0 %v1013
        %1969 = vmatpush.msra.mxu0 %v1011
        %1970 = vmatpush.msra.mxu0 %v1009
        %1971 = vmatpush.msra.mxu0 %v1007
        %1972 = vmatpush.msra.mxu0 %v1005
        %1973 = vmatpush.msra.mxu0 %v1003
        %1974 = vmatpush.msra.mxu0 %v1001
        %1975 = vmatpush.msra.mxu0 %v999
        %1976 = vmatpush.msra.mxu0 %v997
        %1977 = vmatpush.msra.mxu0 %v995
        %1978 = vmatpush.msra.mxu0 %v993
        %1979 = vmatpush.msra.mxu0 %v991
        %1980 = vmatpush.msra.mxu0 %v989
        %1981 = vmatpush.msra.mxu0 %v987
        %1982 = vmatmul.f32.gmra.mxu0 %v1660
        %v1983 = vpop.f32.mrf.mxu0
        %v1984 = vadd.f32 %v1964, %v1983
        %1985 = vdwg.mxu0
        %1986 = vmatpush.msra.mxu0 %v1049
        %1987 = vmatpush.msra.mxu0 %v1047
        %1988 = vmatpush.msra.mxu0 %v1045
        %1989 = vmatpush.msra.mxu0 %v1043
        %1990 = vmatpush.msra.mxu0 %v1041
        %1991 = vmatpush.msra.mxu0 %v1039
        %1992 = vmatpush.msra.mxu0 %v1037
        %1993 = vmatpush.msra.mxu0 %v1035
        %1994 = vmatpush.msra.mxu0 %v1033
        %1995 = vmatpush.msra.mxu0 %v1031
        %1996 = vmatpush.msra.mxu0 %v1029
        %1997 = vmatpush.msra.mxu0 %v1027
        %1998 = vmatpush.msra.mxu0 %v1025
        %1999 = vmatpush.msra.mxu0 %v1023
        %2000 = vmatpush.msra.mxu0 %v1021
        %2001 = vmatpush.msra.mxu0 %v1019
        %2002 = vmatmul.f32.gmra.mxu0 %v1661
        %v2003 = vpop.f32.mrf.mxu0
        %v2004 = vadd.f32 %v1984, %v2003
        %2005 = vdwg.mxu0
        %2006 = vmatpush.msra.mxu0 %v1081
        %2007 = vmatpush.msra.mxu0 %v1079
        %2008 = vmatpush.msra.mxu0 %v1077
        %2009 = vmatpush.msra.mxu0 %v1075
        %2010 = vmatpush.msra.mxu0 %v1073
        %2011 = vmatpush.msra.mxu0 %v1071
        %2012 = vmatpush.msra.mxu0 %v1069
        %2013 = vmatpush.msra.mxu0 %v1067
        %2014 = vmatpush.msra.mxu0 %v1065
        %2015 = vmatpush.msra.mxu0 %v1063
        %2016 = vmatpush.msra.mxu0 %v1061
        %2017 = vmatpush.msra.mxu0 %v1059
        %2018 = vmatpush.msra.mxu0 %v1057
        %2019 = vmatpush.msra.mxu0 %v1055
        %2020 = vmatpush.msra.mxu0 %v1053
        %2021 = vmatpush.msra.mxu0 %v1051
        %2022 = vmatmul.f32.gmra.mxu0 %v1662
        %v2023 = vpop.f32.mrf.mxu0
        %v2024 = vadd.f32 %v2004, %v2023
        %2025 = vdwg.mxu0
        %v2026 = vadd.f32 %v1864, %v1684
        %v2027 = vadd.f32 %v2024, %v1704
        %v2028 = vmul.f32 %v2026, 0.33333334
        %v2029 = vmul.f32 %v2027, 0.33333334
        %v2030 = vadd.s32 %v1115, 128
        %v2031 = vcvt.s32.f32 %v1115
        %v2032 = vcvt.s32.f32 %v2030
        %v2033 = vadd.f32 %v2031, 0.5
        %v2034 = vadd.f32 %v2032, 0.5
        %v2035 = vmul.f32 %v2033, 0.0625
        %v2036 = vmul.f32 %v2034, 0.0625
        %v2037 = vfloor.f32 %v2035
        %v2038 = vfloor.f32 %v2036
        %v2039 = vmul.f32 %v2037, 16.0
        %v2040 = vmul.f32 %v2038, 16.0
        %v2041 = vsub.f32 %v2031, %v2039
        %v2042 = vsub.f32 %v2032, %v2040
        %v2043 = vadd.f32 %v2041, %v824
        %v2044 = vadd.f32 %v2042, %v825
        %v2045 = vmax.f32 %v2043, 0.0
        %v2046 = vmax.f32 %v2044, 0.0
        %v2047 = vmin.f32 %v2045, 15.0
        %v2048 = vmin.f32 %v2046, 15.0
        %v2049 = vadd.f32 %v2037, %v824
        %v2050 = vadd.f32 %v2038, %v825
        %v2051 = vmax.f32 %v2049, 0.0
        %v2052 = vmax.f32 %v2050, 0.0
        %v2053 = vmin.f32 %v2051, 15.0
        %v2054 = vmin.f32 %v2052, 15.0
        %v2055 = vlaneseq
        %v2056 = vshrl.u32 %v2055, 7
        %v2057 = vadd.s32 %v2056, 8
        %v2058 = vadd.s32 %v2056, 16
        %v2059 = vadd.s32 %v2056, 24
        %v2060 = vadd.s32 %v2056, 32
        %v2061 = vadd.s32 %v2056, 40
        %v2062 = vadd.s32 %v2056, 48
        %v2063 = vadd.s32 %v2056, 56
        %v2064 = vadd.s32 %v2056, 64
        %v2065 = vadd.s32 %v2056, 72
        %v2066 = vadd.s32 %v2056, 80
        %v2067 = vadd.s32 %v2056, 88
        %v2068 = vadd.s32 %v2056, 96
        %v2069 = vadd.s32 %v2056, 104
        %v2070 = vadd.s32 %v2056, 112
        %v2071 = vadd.s32 %v2056, 120
        %v2072 = vadd.s32 %v2056, 128
        %v2073 = vadd.s32 %v2056, 136
        %v2074 = vadd.s32 %v2056, 144
        %v2075 = vadd.s32 %v2056, 152
        %v2076 = vadd.s32 %v2056, 160
        %v2077 = vadd.s32 %v2056, 168
        %v2078 = vadd.s32 %v2056, 176
        %v2079 = vadd.s32 %v2056, 184
        %v2080 = vadd.s32 %v2056, 192
        %v2081 = vadd.s32 %v2056, 200
        %v2082 = vadd.s32 %v2056, 208
        %v2083 = vadd.s32 %v2056, 216
        %v2084 = vadd.s32 %v2056, 224
        %v2085 = vadd.s32 %v2056, 232
        %v2086 = vadd.s32 %v2056, 240
        %v2087 = vadd.s32 %v2056, 248
        %v2088 = vcvt.s32.f32 %v2056
        %v2089 = vcvt.s32.f32 %v2057
        %v2090 = vcvt.s32.f32 %v2058
        %v2091 = vcvt.s32.f32 %v2059
        %v2092 = vcvt.s32.f32 %v2060
        %v2093 = vcvt.s32.f32 %v2061
        %v2094 = vcvt.s32.f32 %v2062
        %v2095 = vcvt.s32.f32 %v2063
        %v2096 = vcvt.s32.f32 %v2064
        %v2097 = vcvt.s32.f32 %v2065
        %v2098 = vcvt.s32.f32 %v2066
        %v2099 = vcvt.s32.f32 %v2067
        %v2100 = vcvt.s32.f32 %v2068
        %v2101 = vcvt.s32.f32 %v2069
        %v2102 = vcvt.s32.f32 %v2070
        %v2103 = vcvt.s32.f32 %v2071
        %v2104 = vcvt.s32.f32 %v2072
        %v2105 = vcvt.s32.f32 %v2073
        %v2106 = vcvt.s32.f32 %v2074
        %v2107 = vcvt.s32.f32 %v2075
        %v2108 = vcvt.s32.f32 %v2076
        %v2109 = vcvt.s32.f32 %v2077
        %v2110 = vcvt.s32.f32 %v2078
        %v2111 = vcvt.s32.f32 %v2079
        %v2112 = vcvt.s32.f32 %v2080
        %v2113 = vcvt.s32.f32 %v2081
        %v2114 = vcvt.s32.f32 %v2082
        %v2115 = vcvt.s32.f32 %v2083
        %v2116 = vcvt.s32.f32 %v2084
        %v2117 = vcvt.s32.f32 %v2085
        %v2118 = vcvt.s32.f32 %v2086
        %v2119 = vcvt.s32.f32 %v2087
        %v2120 = vadd.f32 %v2088, 0.5
        %v2121 = vadd.f32 %v2089, 0.5
        %v2122 = vadd.f32 %v2090, 0.5
        %v2123 = vadd.f32 %v2091, 0.5
        %v2124 = vadd.f32 %v2092, 0.5
        %v2125 = vadd.f32 %v2093, 0.5
        %v2126 = vadd.f32 %v2094, 0.5
        %v2127 = vadd.f32 %v2095, 0.5
        %v2128 = vadd.f32 %v2096, 0.5
        %v2129 = vadd.f32 %v2097, 0.5
        %v2130 = vadd.f32 %v2098, 0.5
        %v2131 = vadd.f32 %v2099, 0.5
        %v2132 = vadd.f32 %v2100, 0.5
        %v2133 = vadd.f32 %v2101, 0.5
        %v2134 = vadd.f32 %v2102, 0.5
        %v2135 = vadd.f32 %v2103, 0.5
        %v2136 = vadd.f32 %v2104, 0.5
        %v2137 = vadd.f32 %v2105, 0.5
        %v2138 = vadd.f32 %v2106, 0.5
        %v2139 = vadd.f32 %v2107, 0.5
        %v2140 = vadd.f32 %v2108, 0.5
        %v2141 = vadd.f32 %v2109, 0.5
        %v2142 = vadd.f32 %v2110, 0.5
        %v2143 = vadd.f32 %v2111, 0.5
        %v2144 = vadd.f32 %v2112, 0.5
        %v2145 = vadd.f32 %v2113, 0.5
        %v2146 = vadd.f32 %v2114, 0.5
        %v2147 = vadd.f32 %v2115, 0.5
        %v2148 = vadd.f32 %v2116, 0.5
        %v2149 = vadd.f32 %v2117, 0.5
        %v2150 = vadd.f32 %v2118, 0.5
        %v2151 = vadd.f32 %v2119, 0.5
        %v2152 = vmul.f32 %v2120, 0.0625
        %v2153 = vmul.f32 %v2121, 0.0625
        %v2154 = vmul.f32 %v2122, 0.0625
        %v2155 = vmul.f32 %v2123, 0.0625
        %v2156 = vmul.f32 %v2124, 0.0625
        %v2157 = vmul.f32 %v2125, 0.0625
        %v2158 = vmul.f32 %v2126, 0.0625
        %v2159 = vmul.f32 %v2127, 0.0625
        %v2160 = vmul.f32 %v2128, 0.0625
        %v2161 = vmul.f32 %v2129, 0.0625
        %v2162 = vmul.f32 %v2130, 0.0625
        %v2163 = vmul.f32 %v2131, 0.0625
        %v2164 = vmul.f32 %v2132, 0.0625
        %v2165 = vmul.f32 %v2133, 0.0625
        %v2166 = vmul.f32 %v2134, 0.0625
        %v2167 = vmul.f32 %v2135, 0.0625
        %v2168 = vmul.f32 %v2136, 0.0625
        %v2169 = vmul.f32 %v2137, 0.0625
        %v2170 = vmul.f32 %v2138, 0.0625
        %v2171 = vmul.f32 %v2139, 0.0625
        %v2172 = vmul.f32 %v2140, 0.0625
        %v2173 = vmul.f32 %v2141, 0.0625
        %v2174 = vmul.f32 %v2142, 0.0625
        %v2175 = vmul.f32 %v2143, 0.0625
        %v2176 = vmul.f32 %v2144, 0.0625
        %v2177 = vmul.f32 %v2145, 0.0625
        %v2178 = vmul.f32 %v2146, 0.0625
        %v2179 = vmul.f32 %v2147, 0.0625
        %v2180 = vmul.f32 %v2148, 0.0625
        %v2181 = vmul.f32 %v2149, 0.0625
        %v2182 = vmul.f32 %v2150, 0.0625
        %v2183 = vmul.f32 %v2151, 0.0625
        %v2184 = vfloor.f32 %v2152
        %v2185 = vfloor.f32 %v2153
        %v2186 = vfloor.f32 %v2154
        %v2187 = vfloor.f32 %v2155
        %v2188 = vfloor.f32 %v2156
        %v2189 = vfloor.f32 %v2157
        %v2190 = vfloor.f32 %v2158
        %v2191 = vfloor.f32 %v2159
        %v2192 = vfloor.f32 %v2160
        %v2193 = vfloor.f32 %v2161
        %v2194 = vfloor.f32 %v2162
        %v2195 = vfloor.f32 %v2163
        %v2196 = vfloor.f32 %v2164
        %v2197 = vfloor.f32 %v2165
        %v2198 = vfloor.f32 %v2166
        %v2199 = vfloor.f32 %v2167
        %v2200 = vfloor.f32 %v2168
        %v2201 = vfloor.f32 %v2169
        %v2202 = vfloor.f32 %v2170
        %v2203 = vfloor.f32 %v2171
        %v2204 = vfloor.f32 %v2172
        %v2205 = vfloor.f32 %v2173
        %v2206 = vfloor.f32 %v2174
        %v2207 = vfloor.f32 %v2175
        %v2208 = vfloor.f32 %v2176
        %v2209 = vfloor.f32 %v2177
        %v2210 = vfloor.f32 %v2178
        %v2211 = vfloor.f32 %v2179
        %v2212 = vfloor.f32 %v2180
        %v2213 = vfloor.f32 %v2181
        %v2214 = vfloor.f32 %v2182
        %v2215 = vfloor.f32 %v2183
        %v2216 = vmul.f32 %v2184, 16.0
        %v2217 = vmul.f32 %v2185, 16.0
        %v2218 = vmul.f32 %v2186, 16.0
        %v2219 = vmul.f32 %v2187, 16.0
        %v2220 = vmul.f32 %v2188, 16.0
        %v2221 = vmul.f32 %v2189, 16.0
        %v2222 = vmul.f32 %v2190, 16.0
        %v2223 = vmul.f32 %v2191, 16.0
        %v2224 = vmul.f32 %v2192, 16.0
        %v2225 = vmul.f32 %v2193, 16.0
        %v2226 = vmul.f32 %v2194, 16.0
        %v2227 = vmul.f32 %v2195, 16.0
        %v2228 = vmul.f32 %v2196, 16.0
        %v2229 = vmul.f32 %v2197, 16.0
        %v2230 = vmul.f32 %v2198, 16.0
        %v2231 = vmul.f32 %v2199, 16.0
        %v2232 = vmul.f32 %v2200, 16.0
        %v2233 = vmul.f32 %v2201, 16.0
        %v2234 = vmul.f32 %v2202, 16.0
        %v2235 = vmul.f32 %v2203, 16.0
        %v2236 = vmul.f32 %v2204, 16.0
        %v2237 = vmul.f32 %v2205, 16.0
        %v2238 = vmul.f32 %v2206, 16.0
        %v2239 = vmul.f32 %v2207, 16.0
        %v2240 = vmul.f32 %v2208, 16.0
        %v2241 = vmul.f32 %v2209, 16.0
        %v2242 = vmul.f32 %v2210, 16.0
        %v2243 = vmul.f32 %v2211, 16.0
        %v2244 = vmul.f32 %v2212, 16.0
        %v2245 = vmul.f32 %v2213, 16.0
        %v2246 = vmul.f32 %v2214, 16.0
        %v2247 = vmul.f32 %v2215, 16.0
        %v2248 = vsub.f32 %v2088, %v2216
        %v2249 = vsub.f32 %v2089, %v2217
        %v2250 = vsub.f32 %v2090, %v2218
        %v2251 = vsub.f32 %v2091, %v2219
        %v2252 = vsub.f32 %v2092, %v2220
        %v2253 = vsub.f32 %v2093, %v2221
        %v2254 = vsub.f32 %v2094, %v2222
        %v2255 = vsub.f32 %v2095, %v2223
        %v2256 = vsub.f32 %v2096, %v2224
        %v2257 = vsub.f32 %v2097, %v2225
        %v2258 = vsub.f32 %v2098, %v2226
        %v2259 = vsub.f32 %v2099, %v2227
        %v2260 = vsub.f32 %v2100, %v2228
        %v2261 = vsub.f32 %v2101, %v2229
        %v2262 = vsub.f32 %v2102, %v2230
        %v2263 = vsub.f32 %v2103, %v2231
        %v2264 = vsub.f32 %v2104, %v2232
        %v2265 = vsub.f32 %v2105, %v2233
        %v2266 = vsub.f32 %v2106, %v2234
        %v2267 = vsub.f32 %v2107, %v2235
        %v2268 = vsub.f32 %v2108, %v2236
        %v2269 = vsub.f32 %v2109, %v2237
        %v2270 = vsub.f32 %v2110, %v2238
        %v2271 = vsub.f32 %v2111, %v2239
        %v2272 = vsub.f32 %v2112, %v2240
        %v2273 = vsub.f32 %v2113, %v2241
        %v2274 = vsub.f32 %v2114, %v2242
        %v2275 = vsub.f32 %v2115, %v2243
        %v2276 = vsub.f32 %v2116, %v2244
        %v2277 = vsub.f32 %v2117, %v2245
        %v2278 = vsub.f32 %v2118, %v2246
        %v2279 = vsub.f32 %v2119, %v2247
        %v2280 = vperm.slane %v2053, 1
        %v2281 = vperm.slane %v2054, 1
        %v2282 = vsub.f32 %v2280, %v2184
        %v2283 = vsub.f32 %v2281, %v2184
        %v2284 = vsub.f32 %v2280, %v2185
        %v2285 = vsub.f32 %v2281, %v2185
        %v2286 = vsub.f32 %v2280, %v2186
        %v2287 = vsub.f32 %v2281, %v2186
        %v2288 = vsub.f32 %v2280, %v2187
        %v2289 = vsub.f32 %v2281, %v2187
        %v2290 = vsub.f32 %v2280, %v2188
        %v2291 = vsub.f32 %v2281, %v2188
        %v2292 = vsub.f32 %v2280, %v2189
        %v2293 = vsub.f32 %v2281, %v2189
        %v2294 = vsub.f32 %v2280, %v2190
        %v2295 = vsub.f32 %v2281, %v2190
        %v2296 = vsub.f32 %v2280, %v2191
        %v2297 = vsub.f32 %v2281, %v2191
        %v2298 = vsub.f32 %v2280, %v2192
        %v2299 = vsub.f32 %v2281, %v2192
        %v2300 = vsub.f32 %v2280, %v2193
        %v2301 = vsub.f32 %v2281, %v2193
        %v2302 = vsub.f32 %v2280, %v2194
        %v2303 = vsub.f32 %v2281, %v2194
        %v2304 = vsub.f32 %v2280, %v2195
        %v2305 = vsub.f32 %v2281, %v2195
        %v2306 = vsub.f32 %v2280, %v2196
        %v2307 = vsub.f32 %v2281, %v2196
        %v2308 = vsub.f32 %v2280, %v2197
        %v2309 = vsub.f32 %v2281, %v2197
        %v2310 = vsub.f32 %v2280, %v2198
        %v2311 = vsub.f32 %v2281, %v2198
        %v2312 = vsub.f32 %v2280, %v2199
        %v2313 = vsub.f32 %v2281, %v2199
        %v2314 = vsub.f32 %v2280, %v2200
        %v2315 = vsub.f32 %v2281, %v2200
        %v2316 = vsub.f32 %v2280, %v2201
        %v2317 = vsub.f32 %v2281, %v2201
        %v2318 = vsub.f32 %v2280, %v2202
        %v2319 = vsub.f32 %v2281, %v2202
        %v2320 = vsub.f32 %v2280, %v2203
        %v2321 = vsub.f32 %v2281, %v2203
        %v2322 = vsub.f32 %v2280, %v2204
        %v2323 = vsub.f32 %v2281, %v2204
        %v2324 = vsub.f32 %v2280, %v2205
        %v2325 = vsub.f32 %v2281, %v2205
        %v2326 = vsub.f32 %v2280, %v2206
        %v2327 = vsub.f32 %v2281, %v2206
        %v2328 = vsub.f32 %v2280, %v2207
        %v2329 = vsub.f32 %v2281, %v2207
        %v2330 = vsub.f32 %v2280, %v2208
        %v2331 = vsub.f32 %v2281, %v2208
        %v2332 = vsub.f32 %v2280, %v2209
        %v2333 = vsub.f32 %v2281, %v2209
        %v2334 = vsub.f32 %v2280, %v2210
        %v2335 = vsub.f32 %v2281, %v2210
        %v2336 = vsub.f32 %v2280, %v2211
        %v2337 = vsub.f32 %v2281, %v2211
        %v2338 = vsub.f32 %v2280, %v2212
        %v2339 = vsub.f32 %v2281, %v2212
        %v2340 = vsub.f32 %v2280, %v2213
        %v2341 = vsub.f32 %v2281, %v2213
        %v2342 = vsub.f32 %v2280, %v2214
        %v2343 = vsub.f32 %v2281, %v2214
        %v2344 = vsub.f32 %v2280, %v2215
        %v2345 = vsub.f32 %v2281, %v2215
        %v2346 = vand.u32 2147483647, %v2282
        %v2347 = vand.u32 2147483647, %v2283
        %v2348 = vand.u32 2147483647, %v2284
        %v2349 = vand.u32 2147483647, %v2285
        %v2350 = vand.u32 2147483647, %v2286
        %v2351 = vand.u32 2147483647, %v2287
        %v2352 = vand.u32 2147483647, %v2288
        %v2353 = vand.u32 2147483647, %v2289
        %v2354 = vand.u32 2147483647, %v2290
        %v2355 = vand.u32 2147483647, %v2291
        %v2356 = vand.u32 2147483647, %v2292
        %v2357 = vand.u32 2147483647, %v2293
        %v2358 = vand.u32 2147483647, %v2294
        %v2359 = vand.u32 2147483647, %v2295
        %v2360 = vand.u32 2147483647, %v2296
        %v2361 = vand.u32 2147483647, %v2297
        %v2362 = vand.u32 2147483647, %v2298
        %v2363 = vand.u32 2147483647, %v2299
        %v2364 = vand.u32 2147483647, %v2300
        %v2365 = vand.u32 2147483647, %v2301
        %v2366 = vand.u32 2147483647, %v2302
        %v2367 = vand.u32 2147483647, %v2303
        %v2368 = vand.u32 2147483647, %v2304
        %v2369 = vand.u32 2147483647, %v2305
        %v2370 = vand.u32 2147483647, %v2306
        %v2371 = vand.u32 2147483647, %v2307
        %v2372 = vand.u32 2147483647, %v2308
        %v2373 = vand.u32 2147483647, %v2309
        %v2374 = vand.u32 2147483647, %v2310
        %v2375 = vand.u32 2147483647, %v2311
        %v2376 = vand.u32 2147483647, %v2312
        %v2377 = vand.u32 2147483647, %v2313
        %v2378 = vand.u32 2147483647, %v2314
        %v2379 = vand.u32 2147483647, %v2315
        %v2380 = vand.u32 2147483647, %v2316
        %v2381 = vand.u32 2147483647, %v2317
        %v2382 = vand.u32 2147483647, %v2318
        %v2383 = vand.u32 2147483647, %v2319
        %v2384 = vand.u32 2147483647, %v2320
        %v2385 = vand.u32 2147483647, %v2321
        %v2386 = vand.u32 2147483647, %v2322
        %v2387 = vand.u32 2147483647, %v2323
        %v2388 = vand.u32 2147483647, %v2324
        %v2389 = vand.u32 2147483647, %v2325
        %v2390 = vand.u32 2147483647, %v2326
        %v2391 = vand.u32 2147483647, %v2327
        %v2392 = vand.u32 2147483647, %v2328
        %v2393 = vand.u32 2147483647, %v2329
        %v2394 = vand.u32 2147483647, %v2330
        %v2395 = vand.u32 2147483647, %v2331
        %v2396 = vand.u32 2147483647, %v2332
        %v2397 = vand.u32 2147483647, %v2333
        %v2398 = vand.u32 2147483647, %v2334
        %v2399 = vand.u32 2147483647, %v2335
        %v2400 = vand.u32 2147483647, %v2336
        %v2401 = vand.u32 2147483647, %v2337
        %v2402 = vand.u32 2147483647, %v2338
        %v2403 = vand.u32 2147483647, %v2339
        %v2404 = vand.u32 2147483647, %v2340
        %v2405 = vand.u32 2147483647, %v2341
        %v2406 = vand.u32 2147483647, %v2342
        %v2407 = vand.u32 2147483647, %v2343
        %v2408 = vand.u32 2147483647, %v2344
        %v2409 = vand.u32 2147483647, %v2345
        %v2410 = vsub.f32 1.0, %v2346
        %v2411 = vsub.f32 1.0, %v2347
        %v2412 = vsub.f32 1.0, %v2348
        %v2413 = vsub.f32 1.0, %v2349
        %v2414 = vsub.f32 1.0, %v2350
        %v2415 = vsub.f32 1.0, %v2351
        %v2416 = vsub.f32 1.0, %v2352
        %v2417 = vsub.f32 1.0, %v2353
        %v2418 = vsub.f32 1.0, %v2354
        %v2419 = vsub.f32 1.0, %v2355
        %v2420 = vsub.f32 1.0, %v2356
        %v2421 = vsub.f32 1.0, %v2357
        %v2422 = vsub.f32 1.0, %v2358
        %v2423 = vsub.f32 1.0, %v2359
        %v2424 = vsub.f32 1.0, %v2360
        %v2425 = vsub.f32 1.0, %v2361
        %v2426 = vsub.f32 1.0, %v2362
        %v2427 = vsub.f32 1.0, %v2363
        %v2428 = vsub.f32 1.0, %v2364
        %v2429 = vsub.f32 1.0, %v2365
        %v2430 = vsub.f32 1.0, %v2366
        %v2431 = vsub.f32 1.0, %v2367
        %v2432 = vsub.f32 1.0, %v2368
        %v2433 = vsub.f32 1.0, %v2369
        %v2434 = vsub.f32 1.0, %v2370
        %v2435 = vsub.f32 1.0, %v2371
        %v2436 = vsub.f32 1.0, %v2372
        %v2437 = vsub.f32 1.0, %v2373
        %v2438 = vsub.f32 1.0, %v2374
        %v2439 = vsub.f32 1.0, %v2375
        %v2440 = vsub.f32 1.0, %v2376
        %v2441 = vsub.f32 1.0, %v2377
        %v2442 = vsub.f32 1.0, %v2378
        %v2443 = vsub.f32 1.0, %v2379
        %v2444 = vsub.f32 1.0, %v2380
        %v2445 = vsub.f32 1.0, %v2381
        %v2446 = vsub.f32 1.0, %v2382
        %v2447 = vsub.f32 1.0, %v2383
        %v2448 = vsub.f32 1.0, %v2384
        %v2449 = vsub.f32 1.0, %v2385
        %v2450 = vsub.f32 1.0, %v2386
        %v2451 = vsub.f32 1.0, %v2387
        %v2452 = vsub.f32 1.0, %v2388
        %v2453 = vsub.f32 1.0, %v2389
        %v2454 = vsub.f32 1.0, %v2390
        %v2455 = vsub.f32 1.0, %v2391
        %v2456 = vsub.f32 1.0, %v2392
        %v2457 = vsub.f32 1.0, %v2393
        %v2458 = vsub.f32 1.0, %v2394
        %v2459 = vsub.f32 1.0, %v2395
        %v2460 = vsub.f32 1.0, %v2396
        %v2461 = vsub.f32 1.0, %v2397
        %v2462 = vsub.f32 1.0, %v2398
        %v2463 = vsub.f32 1.0, %v2399
        %v2464 = vsub.f32 1.0, %v2400
        %v2465 = vsub.f32 1.0, %v2401
        %v2466 = vsub.f32 1.0, %v2402
        %v2467 = vsub.f32 1.0, %v2403
        %v2468 = vsub.f32 1.0, %v2404
        %v2469 = vsub.f32 1.0, %v2405
        %v2470 = vsub.f32 1.0, %v2406
        %v2471 = vsub.f32 1.0, %v2407
        %v2472 = vsub.f32 1.0, %v2408
        %v2473 = vsub.f32 1.0, %v2409
        %v2474 = vmax.f32 %v2410, 0.0
        %v2475 = vmax.f32 %v2411, 0.0
        %v2476 = vmax.f32 %v2412, 0.0
        %v2477 = vmax.f32 %v2413, 0.0
        %v2478 = vmax.f32 %v2414, 0.0
        %v2479 = vmax.f32 %v2415, 0.0
        %v2480 = vmax.f32 %v2416, 0.0
        %v2481 = vmax.f32 %v2417, 0.0
        %v2482 = vmax.f32 %v2418, 0.0
        %v2483 = vmax.f32 %v2419, 0.0
        %v2484 = vmax.f32 %v2420, 0.0
        %v2485 = vmax.f32 %v2421, 0.0
        %v2486 = vmax.f32 %v2422, 0.0
        %v2487 = vmax.f32 %v2423, 0.0
        %v2488 = vmax.f32 %v2424, 0.0
        %v2489 = vmax.f32 %v2425, 0.0
        %v2490 = vmax.f32 %v2426, 0.0
        %v2491 = vmax.f32 %v2427, 0.0
        %v2492 = vmax.f32 %v2428, 0.0
        %v2493 = vmax.f32 %v2429, 0.0
        %v2494 = vmax.f32 %v2430, 0.0
        %v2495 = vmax.f32 %v2431, 0.0
        %v2496 = vmax.f32 %v2432, 0.0
        %v2497 = vmax.f32 %v2433, 0.0
        %v2498 = vmax.f32 %v2434, 0.0
        %v2499 = vmax.f32 %v2435, 0.0
        %v2500 = vmax.f32 %v2436, 0.0
        %v2501 = vmax.f32 %v2437, 0.0
        %v2502 = vmax.f32 %v2438, 0.0
        %v2503 = vmax.f32 %v2439, 0.0
        %v2504 = vmax.f32 %v2440, 0.0
        %v2505 = vmax.f32 %v2441, 0.0
        %v2506 = vmax.f32 %v2442, 0.0
        %v2507 = vmax.f32 %v2443, 0.0
        %v2508 = vmax.f32 %v2444, 0.0
        %v2509 = vmax.f32 %v2445, 0.0
        %v2510 = vmax.f32 %v2446, 0.0
        %v2511 = vmax.f32 %v2447, 0.0
        %v2512 = vmax.f32 %v2448, 0.0
        %v2513 = vmax.f32 %v2449, 0.0
        %v2514 = vmax.f32 %v2450, 0.0
        %v2515 = vmax.f32 %v2451, 0.0
        %v2516 = vmax.f32 %v2452, 0.0
        %v2517 = vmax.f32 %v2453, 0.0
        %v2518 = vmax.f32 %v2454, 0.0
        %v2519 = vmax.f32 %v2455, 0.0
        %v2520 = vmax.f32 %v2456, 0.0
        %v2521 = vmax.f32 %v2457, 0.0
        %v2522 = vmax.f32 %v2458, 0.0
        %v2523 = vmax.f32 %v2459, 0.0
        %v2524 = vmax.f32 %v2460, 0.0
        %v2525 = vmax.f32 %v2461, 0.0
        %v2526 = vmax.f32 %v2462, 0.0
        %v2527 = vmax.f32 %v2463, 0.0
        %v2528 = vmax.f32 %v2464, 0.0
        %v2529 = vmax.f32 %v2465, 0.0
        %v2530 = vmax.f32 %v2466, 0.0
        %v2531 = vmax.f32 %v2467, 0.0
        %v2532 = vmax.f32 %v2468, 0.0
        %v2533 = vmax.f32 %v2469, 0.0
        %v2534 = vmax.f32 %v2470, 0.0
        %v2535 = vmax.f32 %v2471, 0.0
        %v2536 = vmax.f32 %v2472, 0.0
        %v2537 = vmax.f32 %v2473, 0.0
        %v2538 = vperm.slane %v2047, 0
        %v2539 = vperm.slane %v2048, 0
        %v2540 = vsub.f32 %v2538, %v2248
        %v2541 = vsub.f32 %v2539, %v2248
        %v2542 = vsub.f32 %v2538, %v2249
        %v2543 = vsub.f32 %v2539, %v2249
        %v2544 = vsub.f32 %v2538, %v2250
        %v2545 = vsub.f32 %v2539, %v2250
        %v2546 = vsub.f32 %v2538, %v2251
        %v2547 = vsub.f32 %v2539, %v2251
        %v2548 = vsub.f32 %v2538, %v2252
        %v2549 = vsub.f32 %v2539, %v2252
        %v2550 = vsub.f32 %v2538, %v2253
        %v2551 = vsub.f32 %v2539, %v2253
        %v2552 = vsub.f32 %v2538, %v2254
        %v2553 = vsub.f32 %v2539, %v2254
        %v2554 = vsub.f32 %v2538, %v2255
        %v2555 = vsub.f32 %v2539, %v2255
        %v2556 = vsub.f32 %v2538, %v2256
        %v2557 = vsub.f32 %v2539, %v2256
        %v2558 = vsub.f32 %v2538, %v2257
        %v2559 = vsub.f32 %v2539, %v2257
        %v2560 = vsub.f32 %v2538, %v2258
        %v2561 = vsub.f32 %v2539, %v2258
        %v2562 = vsub.f32 %v2538, %v2259
        %v2563 = vsub.f32 %v2539, %v2259
        %v2564 = vsub.f32 %v2538, %v2260
        %v2565 = vsub.f32 %v2539, %v2260
        %v2566 = vsub.f32 %v2538, %v2261
        %v2567 = vsub.f32 %v2539, %v2261
        %v2568 = vsub.f32 %v2538, %v2262
        %v2569 = vsub.f32 %v2539, %v2262
        %v2570 = vsub.f32 %v2538, %v2263
        %v2571 = vsub.f32 %v2539, %v2263
        %v2572 = vsub.f32 %v2538, %v2264
        %v2573 = vsub.f32 %v2539, %v2264
        %v2574 = vsub.f32 %v2538, %v2265
        %v2575 = vsub.f32 %v2539, %v2265
        %v2576 = vsub.f32 %v2538, %v2266
        %v2577 = vsub.f32 %v2539, %v2266
        %v2578 = vsub.f32 %v2538, %v2267
        %v2579 = vsub.f32 %v2539, %v2267
        %v2580 = vsub.f32 %v2538, %v2268
        %v2581 = vsub.f32 %v2539, %v2268
        %v2582 = vsub.f32 %v2538, %v2269
        %v2583 = vsub.f32 %v2539, %v2269
        %v2584 = vsub.f32 %v2538, %v2270
        %v2585 = vsub.f32 %v2539, %v2270
        %v2586 = vsub.f32 %v2538, %v2271
        %v2587 = vsub.f32 %v2539, %v2271
        %v2588 = vsub.f32 %v2538, %v2272
        %v2589 = vsub.f32 %v2539, %v2272
        %v2590 = vsub.f32 %v2538, %v2273
        %v2591 = vsub.f32 %v2539, %v2273
        %v2592 = vsub.f32 %v2538, %v2274
        %v2593 = vsub.f32 %v2539, %v2274
        %v2594 = vsub.f32 %v2538, %v2275
        %v2595 = vsub.f32 %v2539, %v2275
        %v2596 = vsub.f32 %v2538, %v2276
        %v2597 = vsub.f32 %v2539, %v2276
        %v2598 = vsub.f32 %v2538, %v2277
        %v2599 = vsub.f32 %v2539, %v2277
        %v2600 = vsub.f32 %v2538, %v2278
        %v2601 = vsub.f32 %v2539, %v2278
        %v2602 = vsub.f32 %v2538, %v2279
        %v2603 = vsub.f32 %v2539, %v2279
        %v2604 = vand.u32 2147483647, %v2540
        %v2605 = vand.u32 2147483647, %v2541
        %v2606 = vand.u32 2147483647, %v2542
        %v2607 = vand.u32 2147483647, %v2543
        %v2608 = vand.u32 2147483647, %v2544
        %v2609 = vand.u32 2147483647, %v2545
        %v2610 = vand.u32 2147483647, %v2546
        %v2611 = vand.u32 2147483647, %v2547
        %v2612 = vand.u32 2147483647, %v2548
        %v2613 = vand.u32 2147483647, %v2549
        %v2614 = vand.u32 2147483647, %v2550
        %v2615 = vand.u32 2147483647, %v2551
        %v2616 = vand.u32 2147483647, %v2552
        %v2617 = vand.u32 2147483647, %v2553
        %v2618 = vand.u32 2147483647, %v2554
        %v2619 = vand.u32 2147483647, %v2555
        %v2620 = vand.u32 2147483647, %v2556
        %v2621 = vand.u32 2147483647, %v2557
        %v2622 = vand.u32 2147483647, %v2558
        %v2623 = vand.u32 2147483647, %v2559
        %v2624 = vand.u32 2147483647, %v2560
        %v2625 = vand.u32 2147483647, %v2561
        %v2626 = vand.u32 2147483647, %v2562
        %v2627 = vand.u32 2147483647, %v2563
        %v2628 = vand.u32 2147483647, %v2564
        %v2629 = vand.u32 2147483647, %v2565
        %v2630 = vand.u32 2147483647, %v2566
        %v2631 = vand.u32 2147483647, %v2567
        %v2632 = vand.u32 2147483647, %v2568
        %v2633 = vand.u32 2147483647, %v2569
        %v2634 = vand.u32 2147483647, %v2570
        %v2635 = vand.u32 2147483647, %v2571
        %v2636 = vand.u32 2147483647, %v2572
        %v2637 = vand.u32 2147483647, %v2573
        %v2638 = vand.u32 2147483647, %v2574
        %v2639 = vand.u32 2147483647, %v2575
        %v2640 = vand.u32 2147483647, %v2576
        %v2641 = vand.u32 2147483647, %v2577
        %v2642 = vand.u32 2147483647, %v2578
        %v2643 = vand.u32 2147483647, %v2579
        %v2644 = vand.u32 2147483647, %v2580
        %v2645 = vand.u32 2147483647, %v2581
        %v2646 = vand.u32 2147483647, %v2582
        %v2647 = vand.u32 2147483647, %v2583
        %v2648 = vand.u32 2147483647, %v2584
        %v2649 = vand.u32 2147483647, %v2585
        %v2650 = vand.u32 2147483647, %v2586
        %v2651 = vand.u32 2147483647, %v2587
        %v2652 = vand.u32 2147483647, %v2588
        %v2653 = vand.u32 2147483647, %v2589
        %v2654 = vand.u32 2147483647, %v2590
        %v2655 = vand.u32 2147483647, %v2591
        %v2656 = vand.u32 2147483647, %v2592
        %v2657 = vand.u32 2147483647, %v2593
        %v2658 = vand.u32 2147483647, %v2594
        %v2659 = vand.u32 2147483647, %v2595
        %v2660 = vand.u32 2147483647, %v2596
        %v2661 = vand.u32 2147483647, %v2597
        %v2662 = vand.u32 2147483647, %v2598
        %v2663 = vand.u32 2147483647, %v2599
        %v2664 = vand.u32 2147483647, %v2600
        %v2665 = vand.u32 2147483647, %v2601
        %v2666 = vand.u32 2147483647, %v2602
        %v2667 = vand.u32 2147483647, %v2603
        %v2668 = vsub.f32 1.0, %v2604
        %v2669 = vsub.f32 1.0, %v2605
        %v2670 = vsub.f32 1.0, %v2606
        %v2671 = vsub.f32 1.0, %v2607
        %v2672 = vsub.f32 1.0, %v2608
        %v2673 = vsub.f32 1.0, %v2609
        %v2674 = vsub.f32 1.0, %v2610
        %v2675 = vsub.f32 1.0, %v2611
        %v2676 = vsub.f32 1.0, %v2612
        %v2677 = vsub.f32 1.0, %v2613
        %v2678 = vsub.f32 1.0, %v2614
        %v2679 = vsub.f32 1.0, %v2615
        %v2680 = vsub.f32 1.0, %v2616
        %v2681 = vsub.f32 1.0, %v2617
        %v2682 = vsub.f32 1.0, %v2618
        %v2683 = vsub.f32 1.0, %v2619
        %v2684 = vsub.f32 1.0, %v2620
        %v2685 = vsub.f32 1.0, %v2621
        %v2686 = vsub.f32 1.0, %v2622
        %v2687 = vsub.f32 1.0, %v2623
        %v2688 = vsub.f32 1.0, %v2624
        %v2689 = vsub.f32 1.0, %v2625
        %v2690 = vsub.f32 1.0, %v2626
        %v2691 = vsub.f32 1.0, %v2627
        %v2692 = vsub.f32 1.0, %v2628
        %v2693 = vsub.f32 1.0, %v2629
        %v2694 = vsub.f32 1.0, %v2630
        %v2695 = vsub.f32 1.0, %v2631
        %v2696 = vsub.f32 1.0, %v2632
        %v2697 = vsub.f32 1.0, %v2633
        %v2698 = vsub.f32 1.0, %v2634
        %v2699 = vsub.f32 1.0, %v2635
        %v2700 = vsub.f32 1.0, %v2636
        %v2701 = vsub.f32 1.0, %v2637
        %v2702 = vsub.f32 1.0, %v2638
        %v2703 = vsub.f32 1.0, %v2639
        %v2704 = vsub.f32 1.0, %v2640
        %v2705 = vsub.f32 1.0, %v2641
        %v2706 = vsub.f32 1.0, %v2642
        %v2707 = vsub.f32 1.0, %v2643
        %v2708 = vsub.f32 1.0, %v2644
        %v2709 = vsub.f32 1.0, %v2645
        %v2710 = vsub.f32 1.0, %v2646
        %v2711 = vsub.f32 1.0, %v2647
        %v2712 = vsub.f32 1.0, %v2648
        %v2713 = vsub.f32 1.0, %v2649
        %v2714 = vsub.f32 1.0, %v2650
        %v2715 = vsub.f32 1.0, %v2651
        %v2716 = vsub.f32 1.0, %v2652
        %v2717 = vsub.f32 1.0, %v2653
        %v2718 = vsub.f32 1.0, %v2654
        %v2719 = vsub.f32 1.0, %v2655
        %v2720 = vsub.f32 1.0, %v2656
        %v2721 = vsub.f32 1.0, %v2657
        %v2722 = vsub.f32 1.0, %v2658
        %v2723 = vsub.f32 1.0, %v2659
        %v2724 = vsub.f32 1.0, %v2660
        %v2725 = vsub.f32 1.0, %v2661
        %v2726 = vsub.f32 1.0, %v2662
        %v2727 = vsub.f32 1.0, %v2663
        %v2728 = vsub.f32 1.0, %v2664
        %v2729 = vsub.f32 1.0, %v2665
        %v2730 = vsub.f32 1.0, %v2666
        %v2731 = vsub.f32 1.0, %v2667
        %v2732 = vmax.f32 %v2668, 0.0
        %v2733 = vmax.f32 %v2669, 0.0
        %v2734 = vmax.f32 %v2670, 0.0
        %v2735 = vmax.f32 %v2671, 0.0
        %v2736 = vmax.f32 %v2672, 0.0
        %v2737 = vmax.f32 %v2673, 0.0
        %v2738 = vmax.f32 %v2674, 0.0
        %v2739 = vmax.f32 %v2675, 0.0
        %v2740 = vmax.f32 %v2676, 0.0
        %v2741 = vmax.f32 %v2677, 0.0
        %v2742 = vmax.f32 %v2678, 0.0
        %v2743 = vmax.f32 %v2679, 0.0
        %v2744 = vmax.f32 %v2680, 0.0
        %v2745 = vmax.f32 %v2681, 0.0
        %v2746 = vmax.f32 %v2682, 0.0
        %v2747 = vmax.f32 %v2683, 0.0
        %v2748 = vmax.f32 %v2684, 0.0
        %v2749 = vmax.f32 %v2685, 0.0
        %v2750 = vmax.f32 %v2686, 0.0
        %v2751 = vmax.f32 %v2687, 0.0
        %v2752 = vmax.f32 %v2688, 0.0
        %v2753 = vmax.f32 %v2689, 0.0
        %v2754 = vmax.f32 %v2690, 0.0
        %v2755 = vmax.f32 %v2691, 0.0
        %v2756 = vmax.f32 %v2692, 0.0
        %v2757 = vmax.f32 %v2693, 0.0
        %v2758 = vmax.f32 %v2694, 0.0
        %v2759 = vmax.f32 %v2695, 0.0
        %v2760 = vmax.f32 %v2696, 0.0
        %v2761 = vmax.f32 %v2697, 0.0
        %v2762 = vmax.f32 %v2698, 0.0
        %v2763 = vmax.f32 %v2699, 0.0
        %v2764 = vmax.f32 %v2700, 0.0
        %v2765 = vmax.f32 %v2701, 0.0
        %v2766 = vmax.f32 %v2702, 0.0
        %v2767 = vmax.f32 %v2703, 0.0
        %v2768 = vmax.f32 %v2704, 0.0
        %v2769 = vmax.f32 %v2705, 0.0
        %v2770 = vmax.f32 %v2706, 0.0
        %v2771 = vmax.f32 %v2707, 0.0
        %v2772 = vmax.f32 %v2708, 0.0
        %v2773 = vmax.f32 %v2709, 0.0
        %v2774 = vmax.f32 %v2710, 0.0
        %v2775 = vmax.f32 %v2711, 0.0
        %v2776 = vmax.f32 %v2712, 0.0
        %v2777 = vmax.f32 %v2713, 0.0
        %v2778 = vmax.f32 %v2714, 0.0
        %v2779 = vmax.f32 %v2715, 0.0
        %v2780 = vmax.f32 %v2716, 0.0
        %v2781 = vmax.f32 %v2717, 0.0
        %v2782 = vmax.f32 %v2718, 0.0
        %v2783 = vmax.f32 %v2719, 0.0
        %v2784 = vmax.f32 %v2720, 0.0
        %v2785 = vmax.f32 %v2721, 0.0
        %v2786 = vmax.f32 %v2722, 0.0
        %v2787 = vmax.f32 %v2723, 0.0
        %v2788 = vmax.f32 %v2724, 0.0
        %v2789 = vmax.f32 %v2725, 0.0
        %v2790 = vmax.f32 %v2726, 0.0
        %v2791 = vmax.f32 %v2727, 0.0
        %v2792 = vmax.f32 %v2728, 0.0
        %v2793 = vmax.f32 %v2729, 0.0
        %v2794 = vmax.f32 %v2730, 0.0
        %v2795 = vmax.f32 %v2731, 0.0
        %v2796 = vmul.f32 %v2474, %v2732
        %v2797 = vmul.f32 %v2475, %v2733
        %v2798 = vmul.f32 %v2476, %v2734
        %v2799 = vmul.f32 %v2477, %v2735
        %v2800 = vmul.f32 %v2478, %v2736
        %v2801 = vmul.f32 %v2479, %v2737
        %v2802 = vmul.f32 %v2480, %v2738
        %v2803 = vmul.f32 %v2481, %v2739
        %v2804 = vmul.f32 %v2482, %v2740
        %v2805 = vmul.f32 %v2483, %v2741
        %v2806 = vmul.f32 %v2484, %v2742
        %v2807 = vmul.f32 %v2485, %v2743
        %v2808 = vmul.f32 %v2486, %v2744
        %v2809 = vmul.f32 %v2487, %v2745
        %v2810 = vmul.f32 %v2488, %v2746
        %v2811 = vmul.f32 %v2489, %v2747
        %v2812 = vmul.f32 %v2490, %v2748
        %v2813 = vmul.f32 %v2491, %v2749
        %v2814 = vmul.f32 %v2492, %v2750
        %v2815 = vmul.f32 %v2493, %v2751
        %v2816 = vmul.f32 %v2494, %v2752
        %v2817 = vmul.f32 %v2495, %v2753
        %v2818 = vmul.f32 %v2496, %v2754
        %v2819 = vmul.f32 %v2497, %v2755
        %v2820 = vmul.f32 %v2498, %v2756
        %v2821 = vmul.f32 %v2499, %v2757
        %v2822 = vmul.f32 %v2500, %v2758
        %v2823 = vmul.f32 %v2501, %v2759
        %v2824 = vmul.f32 %v2502, %v2760
        %v2825 = vmul.f32 %v2503, %v2761
        %v2826 = vmul.f32 %v2504, %v2762
        %v2827 = vmul.f32 %v2505, %v2763
        %v2828 = vmul.f32 %v2506, %v2764
        %v2829 = vmul.f32 %v2507, %v2765
        %v2830 = vmul.f32 %v2508, %v2766
        %v2831 = vmul.f32 %v2509, %v2767
        %v2832 = vmul.f32 %v2510, %v2768
        %v2833 = vmul.f32 %v2511, %v2769
        %v2834 = vmul.f32 %v2512, %v2770
        %v2835 = vmul.f32 %v2513, %v2771
        %v2836 = vmul.f32 %v2514, %v2772
        %v2837 = vmul.f32 %v2515, %v2773
        %v2838 = vmul.f32 %v2516, %v2774
        %v2839 = vmul.f32 %v2517, %v2775
        %v2840 = vmul.f32 %v2518, %v2776
        %v2841 = vmul.f32 %v2519, %v2777
        %v2842 = vmul.f32 %v2520, %v2778
        %v2843 = vmul.f32 %v2521, %v2779
        %v2844 = vmul.f32 %v2522, %v2780
        %v2845 = vmul.f32 %v2523, %v2781
        %v2846 = vmul.f32 %v2524, %v2782
        %v2847 = vmul.f32 %v2525, %v2783
        %v2848 = vmul.f32 %v2526, %v2784
        %v2849 = vmul.f32 %v2527, %v2785
        %v2850 = vmul.f32 %v2528, %v2786
        %v2851 = vmul.f32 %v2529, %v2787
        %v2852 = vmul.f32 %v2530, %v2788
        %v2853 = vmul.f32 %v2531, %v2789
        %v2854 = vmul.f32 %v2532, %v2790
        %v2855 = vmul.f32 %v2533, %v2791
        %v2856 = vmul.f32 %v2534, %v2792
        %v2857 = vmul.f32 %v2535, %v2793
        %v2858 = vmul.f32 %v2536, %v2794
        %v2859 = vmul.f32 %v2537, %v2795
        %v2860 = vpack.c.bf16 %v2798, %v2796
        %v2861 = vpack.c.bf16 %v2799, %v2797
        %v2862 = vpack.c.bf16 %v2802, %v2800
        %v2863 = vpack.c.bf16 %v2803, %v2801
        %v2864 = vpack.c.bf16 %v2806, %v2804
        %v2865 = vpack.c.bf16 %v2807, %v2805
        %v2866 = vpack.c.bf16 %v2810, %v2808
        %v2867 = vpack.c.bf16 %v2811, %v2809
        %v2868 = vpack.c.bf16 %v2814, %v2812
        %v2869 = vpack.c.bf16 %v2815, %v2813
        %v2870 = vpack.c.bf16 %v2818, %v2816
        %v2871 = vpack.c.bf16 %v2819, %v2817
        %v2872 = vpack.c.bf16 %v2822, %v2820
        %v2873 = vpack.c.bf16 %v2823, %v2821
        %v2874 = vpack.c.bf16 %v2826, %v2824
        %v2875 = vpack.c.bf16 %v2827, %v2825
        %v2876 = vpack.c.bf16 %v2830, %v2828
        %v2877 = vpack.c.bf16 %v2831, %v2829
        %v2878 = vpack.c.bf16 %v2834, %v2832
        %v2879 = vpack.c.bf16 %v2835, %v2833
        %v2880 = vpack.c.bf16 %v2838, %v2836
        %v2881 = vpack.c.bf16 %v2839, %v2837
        %v2882 = vpack.c.bf16 %v2842, %v2840
        %v2883 = vpack.c.bf16 %v2843, %v2841
        %v2884 = vpack.c.bf16 %v2846, %v2844
        %v2885 = vpack.c.bf16 %v2847, %v2845
        %v2886 = vpack.c.bf16 %v2850, %v2848
        %v2887 = vpack.c.bf16 %v2851, %v2849
        %v2888 = vpack.c.bf16 %v2854, %v2852
        %v2889 = vpack.c.bf16 %v2855, %v2853
        %v2890 = vpack.c.bf16 %v2858, %v2856
        %v2891 = vpack.c.bf16 %v2859, %v2857
        %v2892 = vpack.c.bf16 %v2028, %v2028
        %v2893 = vpack.c.bf16 %v2029, %v2029
        %2894 = vmatpush.bf16.msra.mxu0 %v2874
        %2895 = vmatpush.bf16.msra.mxu0 %v2872
        %2896 = vmatpush.bf16.msra.mxu0 %v2870
        %2897 = vmatpush.bf16.msra.mxu0 %v2868
        %2898 = vmatpush.bf16.msra.mxu0 %v2866
        %2899 = vmatpush.bf16.msra.mxu0 %v2864
        %2900 = vmatpush.bf16.msra.mxu0 %v2862
        %2901 = vmatpush.bf16.msra.mxu0 %v2860
        %2902 = vmatmul.bf16.gmra.mxu0 %v2892
        %v2903 = vpop.f32.mrf.mxu0
        %v2904 = vadd.f32 0.0, %v2903
        %v2905 = vpop.f32.mrf.mxu0
        %2906 = vdwg.mxu0
        %2907 = vmatpush.bf16.msra.mxu0 %v2890
        %2908 = vmatpush.bf16.msra.mxu0 %v2888
        %2909 = vmatpush.bf16.msra.mxu0 %v2886
        %2910 = vmatpush.bf16.msra.mxu0 %v2884
        %2911 = vmatpush.bf16.msra.mxu0 %v2882
        %2912 = vmatpush.bf16.msra.mxu0 %v2880
        %2913 = vmatpush.bf16.msra.mxu0 %v2878
        %2914 = vmatpush.bf16.msra.mxu0 %v2876
        %2915 = vmatmul.bf16.gmra.mxu0 %v2893
        %v2916 = vpop.f32.mrf.mxu0
        %v2917 = vadd.f32 %v2904, %v2916
        %v2918 = vpop.f32.mrf.mxu0
        %2919 = vdwg.mxu0
        %2920 = vmatpush.bf16.msra.mxu0 %v2875
        %2921 = vmatpush.bf16.msra.mxu0 %v2873
        %2922 = vmatpush.bf16.msra.mxu0 %v2871
        %2923 = vmatpush.bf16.msra.mxu0 %v2869
        %2924 = vmatpush.bf16.msra.mxu0 %v2867
        %2925 = vmatpush.bf16.msra.mxu0 %v2865
        %2926 = vmatpush.bf16.msra.mxu0 %v2863
        %2927 = vmatpush.bf16.msra.mxu0 %v2861
        %2928 = vmatmul.bf16.gmra.mxu0 %v2892
        %v2929 = vpop.f32.mrf.mxu0
        %v2930 = vadd.f32 0.0, %v2929
        %v2931 = vpop.f32.mrf.mxu0
        %2932 = vdwg.mxu0
        %2933 = vmatpush.bf16.msra.mxu0 %v2891
        %2934 = vmatpush.bf16.msra.mxu0 %v2889
        %2935 = vmatpush.bf16.msra.mxu0 %v2887
        %2936 = vmatpush.bf16.msra.mxu0 %v2885
        %2937 = vmatpush.bf16.msra.mxu0 %v2883
        %2938 = vmatpush.bf16.msra.mxu0 %v2881
        %2939 = vmatpush.bf16.msra.mxu0 %v2879
        %2940 = vmatpush.bf16.msra.mxu0 %v2877
        %2941 = vmatmul.bf16.gmra.mxu0 %v2893
        %v2942 = vpop.f32.mrf.mxu0
        %v2943 = vadd.f32 %v2930, %v2942
        %v2944 = vpop.f32.mrf.mxu0
        %2945 = vdwg.mxu0
        %v2946 = vpack.c.bf16 %v2917, %v1565
        %v2947 = vpack.c.bf16 %v2943, %v1566
        %v2948 = vpack.c.bf16 %v824, %v824
        %v2949 = vpack.c.bf16 %v825, %v825
        %v2950 = vld [vmem:[%s12] sm:$0x1]
        %vm2951 = vcmask 195584
        %v2953 = vsel %vm2951, %v2950, 0
        %vm2955 = vcmask 1043456
        %v2957 = vsel %vm2955, %v2948, 0
        %v2960 = vsel %vm2955, %v2949, 0
        %2962 = vmatpush.bf16.msra.mxu0 0
        %2963 = vmatpush.bf16.msra.mxu0 0
        %2964 = vmatpush.bf16.msra.mxu0 0
        %2965 = vmatpush.bf16.msra.mxu0 0
        %2966 = vmatpush.bf16.msra.mxu0 0
        %2967 = vmatpush.bf16.msra.mxu0 0
        %2968 = vmatpush.bf16.msra.mxu0 %v2957
        %2969 = vmatpush.bf16.msra.mxu0 %v2946
        %2970 = vmatmul.bf16.gmra.mxu0 %v2953
        %v2971 = vpop.f32.mrf.mxu0
        %v2972 = vadd.f32 0.0, %v2971
        %v2973 = vpop.f32.mrf.mxu0
        %2974 = vdwg.mxu0
        %2975 = vmatpush.bf16.msra.mxu0 0
        %2976 = vmatpush.bf16.msra.mxu0 0
        %2977 = vmatpush.bf16.msra.mxu0 0
        %2978 = vmatpush.bf16.msra.mxu0 0
        %2979 = vmatpush.bf16.msra.mxu0 0
        %2980 = vmatpush.bf16.msra.mxu0 0
        %2981 = vmatpush.bf16.msra.mxu0 %v2960
        %2982 = vmatpush.bf16.msra.mxu0 %v2947
        %2983 = vmatmul.bf16.gmra.mxu0 %v2953
        %v2984 = vpop.f32.mrf.mxu0
        %v2985 = vadd.f32 0.0, %v2984
        %v2986 = vpop.f32.mrf.mxu0
        %2987 = vdwg.mxu0
        %v2988 = vadd.f32 %v824, %v2972
        %v2989 = vadd.f32 %v825, %v2985
        %v2990 = vld [vmem:[%s13] sm:$0x3]
        %2992 = vset.pattern.permute.xlu0 0
        %2993 = vperm.xlu0 %2992, %v2990
        %v2994 = vpop.permute.xlu0 %2993
        %v2996 = vadd.f32 %v2988, %v2994
        %v2997 = vadd.f32 %v2989, %v2994
        %v2998 = vadd.f32 %v2041, %v2996
        %v2999 = vadd.f32 %v2042, %v2997
        %v3000 = vmax.f32 %v2998, 0.0
        %v3001 = vmax.f32 %v2999, 0.0
        %v3002 = vmin.f32 %v3000, 15.0
        %v3003 = vmin.f32 %v3001, 15.0
        %v3004 = vadd.f32 %v2037, %v2996
        %v3005 = vadd.f32 %v2038, %v2997
        %v3006 = vmax.f32 %v3004, 0.0
        %v3007 = vmax.f32 %v3005, 0.0
        %v3008 = vmin.f32 %v3006, 15.0
        %v3009 = vmin.f32 %v3007, 15.0
        %v3010 = vperm.slane %v3008, 1
        %v3011 = vperm.slane %v3009, 1
        %v3012 = vsub.f32 %v3010, %v2184
        %v3013 = vsub.f32 %v3011, %v2184
        %v3014 = vsub.f32 %v3010, %v2185
        %v3015 = vsub.f32 %v3011, %v2185
        %v3016 = vsub.f32 %v3010, %v2186
        %v3017 = vsub.f32 %v3011, %v2186
        %v3018 = vsub.f32 %v3010, %v2187
        %v3019 = vsub.f32 %v3011, %v2187
        %v3020 = vsub.f32 %v3010, %v2188
        %v3021 = vsub.f32 %v3011, %v2188
        %v3022 = vsub.f32 %v3010, %v2189
        %v3023 = vsub.f32 %v3011, %v2189
        %v3024 = vsub.f32 %v3010, %v2190
        %v3025 = vsub.f32 %v3011, %v2190
        %v3026 = vsub.f32 %v3010, %v2191
        %v3027 = vsub.f32 %v3011, %v2191
        %v3028 = vsub.f32 %v3010, %v2192
        %v3029 = vsub.f32 %v3011, %v2192
        %v3030 = vsub.f32 %v3010, %v2193
        %v3031 = vsub.f32 %v3011, %v2193
        %v3032 = vsub.f32 %v3010, %v2194
        %v3033 = vsub.f32 %v3011, %v2194
        %v3034 = vsub.f32 %v3010, %v2195
        %v3035 = vsub.f32 %v3011, %v2195
        %v3036 = vsub.f32 %v3010, %v2196
        %v3037 = vsub.f32 %v3011, %v2196
        %v3038 = vsub.f32 %v3010, %v2197
        %v3039 = vsub.f32 %v3011, %v2197
        %v3040 = vsub.f32 %v3010, %v2198
        %v3041 = vsub.f32 %v3011, %v2198
        %v3042 = vsub.f32 %v3010, %v2199
        %v3043 = vsub.f32 %v3011, %v2199
        %v3044 = vsub.f32 %v3010, %v2200
        %v3045 = vsub.f32 %v3011, %v2200
        %v3046 = vsub.f32 %v3010, %v2201
        %v3047 = vsub.f32 %v3011, %v2201
        %v3048 = vsub.f32 %v3010, %v2202
        %v3049 = vsub.f32 %v3011, %v2202
        %v3050 = vsub.f32 %v3010, %v2203
        %v3051 = vsub.f32 %v3011, %v2203
        %v3052 = vsub.f32 %v3010, %v2204
        %v3053 = vsub.f32 %v3011, %v2204
        %v3054 = vsub.f32 %v3010, %v2205
        %v3055 = vsub.f32 %v3011, %v2205
        %v3056 = vsub.f32 %v3010, %v2206
        %v3057 = vsub.f32 %v3011, %v2206
        %v3058 = vsub.f32 %v3010, %v2207
        %v3059 = vsub.f32 %v3011, %v2207
        %v3060 = vsub.f32 %v3010, %v2208
        %v3061 = vsub.f32 %v3011, %v2208
        %v3062 = vsub.f32 %v3010, %v2209
        %v3063 = vsub.f32 %v3011, %v2209
        %v3064 = vsub.f32 %v3010, %v2210
        %v3065 = vsub.f32 %v3011, %v2210
        %v3066 = vsub.f32 %v3010, %v2211
        %v3067 = vsub.f32 %v3011, %v2211
        %v3068 = vsub.f32 %v3010, %v2212
        %v3069 = vsub.f32 %v3011, %v2212
        %v3070 = vsub.f32 %v3010, %v2213
        %v3071 = vsub.f32 %v3011, %v2213
        %v3072 = vsub.f32 %v3010, %v2214
        %v3073 = vsub.f32 %v3011, %v2214
        %v3074 = vsub.f32 %v3010, %v2215
        %v3075 = vsub.f32 %v3011, %v2215
        %v3076 = vand.u32 2147483647, %v3012
        %v3077 = vand.u32 2147483647, %v3013
        %v3078 = vand.u32 2147483647, %v3014
        %v3079 = vand.u32 2147483647, %v3015
        %v3080 = vand.u32 2147483647, %v3016
        %v3081 = vand.u32 2147483647, %v3017
        %v3082 = vand.u32 2147483647, %v3018
        %v3083 = vand.u32 2147483647, %v3019
        %v3084 = vand.u32 2147483647, %v3020
        %v3085 = vand.u32 2147483647, %v3021
        %v3086 = vand.u32 2147483647, %v3022
        %v3087 = vand.u32 2147483647, %v3023
        %v3088 = vand.u32 2147483647, %v3024
        %v3089 = vand.u32 2147483647, %v3025
        %v3090 = vand.u32 2147483647, %v3026
        %v3091 = vand.u32 2147483647, %v3027
        %v3092 = vand.u32 2147483647, %v3028
        %v3093 = vand.u32 2147483647, %v3029
        %v3094 = vand.u32 2147483647, %v3030
        %v3095 = vand.u32 2147483647, %v3031
        %v3096 = vand.u32 2147483647, %v3032
        %v3097 = vand.u32 2147483647, %v3033
        %v3098 = vand.u32 2147483647, %v3034
        %v3099 = vand.u32 2147483647, %v3035
        %v3100 = vand.u32 2147483647, %v3036
        %v3101 = vand.u32 2147483647, %v3037
        %v3102 = vand.u32 2147483647, %v3038
        %v3103 = vand.u32 2147483647, %v3039
        %v3104 = vand.u32 2147483647, %v3040
        %v3105 = vand.u32 2147483647, %v3041
        %v3106 = vand.u32 2147483647, %v3042
        %v3107 = vand.u32 2147483647, %v3043
        %v3108 = vand.u32 2147483647, %v3044
        %v3109 = vand.u32 2147483647, %v3045
        %v3110 = vand.u32 2147483647, %v3046
        %v3111 = vand.u32 2147483647, %v3047
        %v3112 = vand.u32 2147483647, %v3048
        %v3113 = vand.u32 2147483647, %v3049
        %v3114 = vand.u32 2147483647, %v3050
        %v3115 = vand.u32 2147483647, %v3051
        %v3116 = vand.u32 2147483647, %v3052
        %v3117 = vand.u32 2147483647, %v3053
        %v3118 = vand.u32 2147483647, %v3054
        %v3119 = vand.u32 2147483647, %v3055
        %v3120 = vand.u32 2147483647, %v3056
        %v3121 = vand.u32 2147483647, %v3057
        %v3122 = vand.u32 2147483647, %v3058
        %v3123 = vand.u32 2147483647, %v3059
        %v3124 = vand.u32 2147483647, %v3060
        %v3125 = vand.u32 2147483647, %v3061
        %v3126 = vand.u32 2147483647, %v3062
        %v3127 = vand.u32 2147483647, %v3063
        %v3128 = vand.u32 2147483647, %v3064
        %v3129 = vand.u32 2147483647, %v3065
        %v3130 = vand.u32 2147483647, %v3066
        %v3131 = vand.u32 2147483647, %v3067
        %v3132 = vand.u32 2147483647, %v3068
        %v3133 = vand.u32 2147483647, %v3069
        %v3134 = vand.u32 2147483647, %v3070
        %v3135 = vand.u32 2147483647, %v3071
        %v3136 = vand.u32 2147483647, %v3072
        %v3137 = vand.u32 2147483647, %v3073
        %v3138 = vand.u32 2147483647, %v3074
        %v3139 = vand.u32 2147483647, %v3075
        %v3140 = vsub.f32 1.0, %v3076
        %v3141 = vsub.f32 1.0, %v3077
        %v3142 = vsub.f32 1.0, %v3078
        %v3143 = vsub.f32 1.0, %v3079
        %v3144 = vsub.f32 1.0, %v3080
        %v3145 = vsub.f32 1.0, %v3081
        %v3146 = vsub.f32 1.0, %v3082
        %v3147 = vsub.f32 1.0, %v3083
        %v3148 = vsub.f32 1.0, %v3084
        %v3149 = vsub.f32 1.0, %v3085
        %v3150 = vsub.f32 1.0, %v3086
        %v3151 = vsub.f32 1.0, %v3087
        %v3152 = vsub.f32 1.0, %v3088
        %v3153 = vsub.f32 1.0, %v3089
        %v3154 = vsub.f32 1.0, %v3090
        %v3155 = vsub.f32 1.0, %v3091
        %v3156 = vsub.f32 1.0, %v3092
        %v3157 = vsub.f32 1.0, %v3093
        %v3158 = vsub.f32 1.0, %v3094
        %v3159 = vsub.f32 1.0, %v3095
        %v3160 = vsub.f32 1.0, %v3096
        %v3161 = vsub.f32 1.0, %v3097
        %v3162 = vsub.f32 1.0, %v3098
        %v3163 = vsub.f32 1.0, %v3099
        %v3164 = vsub.f32 1.0, %v3100
        %v3165 = vsub.f32 1.0, %v3101
        %v3166 = vsub.f32 1.0, %v3102
        %v3167 = vsub.f32 1.0, %v3103
        %v3168 = vsub.f32 1.0, %v3104
        %v3169 = vsub.f32 1.0, %v3105
        %v3170 = vsub.f32 1.0, %v3106
        %v3171 = vsub.f32 1.0, %v3107
        %v3172 = vsub.f32 1.0, %v3108
        %v3173 = vsub.f32 1.0, %v3109
        %v3174 = vsub.f32 1.0, %v3110
        %v3175 = vsub.f32 1.0, %v3111
        %v3176 = vsub.f32 1.0, %v3112
        %v3177 = vsub.f32 1.0, %v3113
        %v3178 = vsub.f32 1.0, %v3114
        %v3179 = vsub.f32 1.0, %v3115
        %v3180 = vsub.f32 1.0, %v3116
        %v3181 = vsub.f32 1.0, %v3117
        %v3182 = vsub.f32 1.0, %v3118
        %v3183 = vsub.f32 1.0, %v3119
        %v3184 = vsub.f32 1.0, %v3120
        %v3185 = vsub.f32 1.0, %v3121
        %v3186 = vsub.f32 1.0, %v3122
        %v3187 = vsub.f32 1.0, %v3123
        %v3188 = vsub.f32 1.0, %v3124
        %v3189 = vsub.f32 1.0, %v3125
        %v3190 = vsub.f32 1.0, %v3126
        %v3191 = vsub.f32 1.0, %v3127
        %v3192 = vsub.f32 1.0, %v3128
        %v3193 = vsub.f32 1.0, %v3129
        %v3194 = vsub.f32 1.0, %v3130
        %v3195 = vsub.f32 1.0, %v3131
        %v3196 = vsub.f32 1.0, %v3132
        %v3197 = vsub.f32 1.0, %v3133
        %v3198 = vsub.f32 1.0, %v3134
        %v3199 = vsub.f32 1.0, %v3135
        %v3200 = vsub.f32 1.0, %v3136
        %v3201 = vsub.f32 1.0, %v3137
        %v3202 = vsub.f32 1.0, %v3138
        %v3203 = vsub.f32 1.0, %v3139
        %v3204 = vmax.f32 %v3140, 0.0
        %v3205 = vmax.f32 %v3141, 0.0
        %v3206 = vmax.f32 %v3142, 0.0
        %v3207 = vmax.f32 %v3143, 0.0
        %v3208 = vmax.f32 %v3144, 0.0
        %v3209 = vmax.f32 %v3145, 0.0
        %v3210 = vmax.f32 %v3146, 0.0
        %v3211 = vmax.f32 %v3147, 0.0
        %v3212 = vmax.f32 %v3148, 0.0
        %v3213 = vmax.f32 %v3149, 0.0
        %v3214 = vmax.f32 %v3150, 0.0
        %v3215 = vmax.f32 %v3151, 0.0
        %v3216 = vmax.f32 %v3152, 0.0
        %v3217 = vmax.f32 %v3153, 0.0
        %v3218 = vmax.f32 %v3154, 0.0
        %v3219 = vmax.f32 %v3155, 0.0
        %v3220 = vmax.f32 %v3156, 0.0
        %v3221 = vmax.f32 %v3157, 0.0
        %v3222 = vmax.f32 %v3158, 0.0
        %v3223 = vmax.f32 %v3159, 0.0
        %v3224 = vmax.f32 %v3160, 0.0
        %v3225 = vmax.f32 %v3161, 0.0
        %v3226 = vmax.f32 %v3162, 0.0
        %v3227 = vmax.f32 %v3163, 0.0
        %v3228 = vmax.f32 %v3164, 0.0
        %v3229 = vmax.f32 %v3165, 0.0
        %v3230 = vmax.f32 %v3166, 0.0
        %v3231 = vmax.f32 %v3167, 0.0
        %v3232 = vmax.f32 %v3168, 0.0
        %v3233 = vmax.f32 %v3169, 0.0
        %v3234 = vmax.f32 %v3170, 0.0
        %v3235 = vmax.f32 %v3171, 0.0
        %v3236 = vmax.f32 %v3172, 0.0
        %v3237 = vmax.f32 %v3173, 0.0
        %v3238 = vmax.f32 %v3174, 0.0
        %v3239 = vmax.f32 %v3175, 0.0
        %v3240 = vmax.f32 %v3176, 0.0
        %v3241 = vmax.f32 %v3177, 0.0
        %v3242 = vmax.f32 %v3178, 0.0
        %v3243 = vmax.f32 %v3179, 0.0
        %v3244 = vmax.f32 %v3180, 0.0
        %v3245 = vmax.f32 %v3181, 0.0
        %v3246 = vmax.f32 %v3182, 0.0
        %v3247 = vmax.f32 %v3183, 0.0
        %v3248 = vmax.f32 %v3184, 0.0
        %v3249 = vmax.f32 %v3185, 0.0
        %v3250 = vmax.f32 %v3186, 0.0
        %v3251 = vmax.f32 %v3187, 0.0
        %v3252 = vmax.f32 %v3188, 0.0
        %v3253 = vmax.f32 %v3189, 0.0
        %v3254 = vmax.f32 %v3190, 0.0
        %v3255 = vmax.f32 %v3191, 0.0
        %v3256 = vmax.f32 %v3192, 0.0
        %v3257 = vmax.f32 %v3193, 0.0
        %v3258 = vmax.f32 %v3194, 0.0
        %v3259 = vmax.f32 %v3195, 0.0
        %v3260 = vmax.f32 %v3196, 0.0
        %v3261 = vmax.f32 %v3197, 0.0
        %v3262 = vmax.f32 %v3198, 0.0
        %v3263 = vmax.f32 %v3199, 0.0
        %v3264 = vmax.f32 %v3200, 0.0
        %v3265 = vmax.f32 %v3201, 0.0
        %v3266 = vmax.f32 %v3202, 0.0
        %v3267 = vmax.f32 %v3203, 0.0
        %v3268 = vperm.slane %v3002, 0
        %v3269 = vperm.slane %v3003, 0
        %v3270 = vsub.f32 %v3268, %v2248
        %v3271 = vsub.f32 %v3269, %v2248
        %v3272 = vsub.f32 %v3268, %v2249
        %v3273 = vsub.f32 %v3269, %v2249
        %v3274 = vsub.f32 %v3268, %v2250
        %v3275 = vsub.f32 %v3269, %v2250
        %v3276 = vsub.f32 %v3268, %v2251
        %v3277 = vsub.f32 %v3269, %v2251
        %v3278 = vsub.f32 %v3268, %v2252
        %v3279 = vsub.f32 %v3269, %v2252
        %v3280 = vsub.f32 %v3268, %v2253
        %v3281 = vsub.f32 %v3269, %v2253
        %v3282 = vsub.f32 %v3268, %v2254
        %v3283 = vsub.f32 %v3269, %v2254
        %v3284 = vsub.f32 %v3268, %v2255
        %v3285 = vsub.f32 %v3269, %v2255
        %v3286 = vsub.f32 %v3268, %v2256
        %v3287 = vsub.f32 %v3269, %v2256
        %v3288 = vsub.f32 %v3268, %v2257
        %v3289 = vsub.f32 %v3269, %v2257
        %v3290 = vsub.f32 %v3268, %v2258
        %v3291 = vsub.f32 %v3269, %v2258
        %v3292 = vsub.f32 %v3268, %v2259
        %v3293 = vsub.f32 %v3269, %v2259
        %v3294 = vsub.f32 %v3268, %v2260
        %v3295 = vsub.f32 %v3269, %v2260
        %v3296 = vsub.f32 %v3268, %v2261
        %v3297 = vsub.f32 %v3269, %v2261
        %v3298 = vsub.f32 %v3268, %v2262
        %v3299 = vsub.f32 %v3269, %v2262
        %v3300 = vsub.f32 %v3268, %v2263
        %v3301 = vsub.f32 %v3269, %v2263
        %v3302 = vsub.f32 %v3268, %v2264
        %v3303 = vsub.f32 %v3269, %v2264
        %v3304 = vsub.f32 %v3268, %v2265
        %v3305 = vsub.f32 %v3269, %v2265
        %v3306 = vsub.f32 %v3268, %v2266
        %v3307 = vsub.f32 %v3269, %v2266
        %v3308 = vsub.f32 %v3268, %v2267
        %v3309 = vsub.f32 %v3269, %v2267
        %v3310 = vsub.f32 %v3268, %v2268
        %v3311 = vsub.f32 %v3269, %v2268
        %v3312 = vsub.f32 %v3268, %v2269
        %v3313 = vsub.f32 %v3269, %v2269
        %v3314 = vsub.f32 %v3268, %v2270
        %v3315 = vsub.f32 %v3269, %v2270
        %v3316 = vsub.f32 %v3268, %v2271
        %v3317 = vsub.f32 %v3269, %v2271
        %v3318 = vsub.f32 %v3268, %v2272
        %v3319 = vsub.f32 %v3269, %v2272
        %v3320 = vsub.f32 %v3268, %v2273
        %v3321 = vsub.f32 %v3269, %v2273
        %v3322 = vsub.f32 %v3268, %v2274
        %v3323 = vsub.f32 %v3269, %v2274
        %v3324 = vsub.f32 %v3268, %v2275
        %v3325 = vsub.f32 %v3269, %v2275
        %v3326 = vsub.f32 %v3268, %v2276
        %v3327 = vsub.f32 %v3269, %v2276
        %v3328 = vsub.f32 %v3268, %v2277
        %v3329 = vsub.f32 %v3269, %v2277
        %v3330 = vsub.f32 %v3268, %v2278
        %v3331 = vsub.f32 %v3269, %v2278
        %v3332 = vsub.f32 %v3268, %v2279
        %v3333 = vsub.f32 %v3269, %v2279
        %v3334 = vand.u32 2147483647, %v3270
        %v3335 = vand.u32 2147483647, %v3271
        %v3336 = vand.u32 2147483647, %v3272
        %v3337 = vand.u32 2147483647, %v3273
        %v3338 = vand.u32 2147483647, %v3274
        %v3339 = vand.u32 2147483647, %v3275
        %v3340 = vand.u32 2147483647, %v3276
        %v3341 = vand.u32 2147483647, %v3277
        %v3342 = vand.u32 2147483647, %v3278
        %v3343 = vand.u32 2147483647, %v3279
        %v3344 = vand.u32 2147483647, %v3280
        %v3345 = vand.u32 2147483647, %v3281
        %v3346 = vand.u32 2147483647, %v3282
        %v3347 = vand.u32 2147483647, %v3283
        %v3348 = vand.u32 2147483647, %v3284
        %v3349 = vand.u32 2147483647, %v3285
        %v3350 = vand.u32 2147483647, %v3286
        %v3351 = vand.u32 2147483647, %v3287
        %v3352 = vand.u32 2147483647, %v3288
        %v3353 = vand.u32 2147483647, %v3289
        %v3354 = vand.u32 2147483647, %v3290
        %v3355 = vand.u32 2147483647, %v3291
        %v3356 = vand.u32 2147483647, %v3292
        %v3357 = vand.u32 2147483647, %v3293
        %v3358 = vand.u32 2147483647, %v3294
        %v3359 = vand.u32 2147483647, %v3295
        %v3360 = vand.u32 2147483647, %v3296
        %v3361 = vand.u32 2147483647, %v3297
        %v3362 = vand.u32 2147483647, %v3298
        %v3363 = vand.u32 2147483647, %v3299
        %v3364 = vand.u32 2147483647, %v3300
        %v3365 = vand.u32 2147483647, %v3301
        %v3366 = vand.u32 2147483647, %v3302
        %v3367 = vand.u32 2147483647, %v3303
        %v3368 = vand.u32 2147483647, %v3304
        %v3369 = vand.u32 2147483647, %v3305
        %v3370 = vand.u32 2147483647, %v3306
        %v3371 = vand.u32 2147483647, %v3307
        %v3372 = vand.u32 2147483647, %v3308
        %v3373 = vand.u32 2147483647, %v3309
        %v3374 = vand.u32 2147483647, %v3310
        %v3375 = vand.u32 2147483647, %v3311
        %v3376 = vand.u32 2147483647, %v3312
        %v3377 = vand.u32 2147483647, %v3313
        %v3378 = vand.u32 2147483647, %v3314
        %v3379 = vand.u32 2147483647, %v3315
        %v3380 = vand.u32 2147483647, %v3316
        %v3381 = vand.u32 2147483647, %v3317
        %v3382 = vand.u32 2147483647, %v3318
        %v3383 = vand.u32 2147483647, %v3319
        %v3384 = vand.u32 2147483647, %v3320
        %v3385 = vand.u32 2147483647, %v3321
        %v3386 = vand.u32 2147483647, %v3322
        %v3387 = vand.u32 2147483647, %v3323
        %v3388 = vand.u32 2147483647, %v3324
        %v3389 = vand.u32 2147483647, %v3325
        %v3390 = vand.u32 2147483647, %v3326
        %v3391 = vand.u32 2147483647, %v3327
        %v3392 = vand.u32 2147483647, %v3328
        %v3393 = vand.u32 2147483647, %v3329
        %v3394 = vand.u32 2147483647, %v3330
        %v3395 = vand.u32 2147483647, %v3331
        %v3396 = vand.u32 2147483647, %v3332
        %v3397 = vand.u32 2147483647, %v3333
        %v3398 = vsub.f32 1.0, %v3334
        %v3399 = vsub.f32 1.0, %v3335
        %v3400 = vsub.f32 1.0, %v3336
        %v3401 = vsub.f32 1.0, %v3337
        %v3402 = vsub.f32 1.0, %v3338
        %v3403 = vsub.f32 1.0, %v3339
        %v3404 = vsub.f32 1.0, %v3340
        %v3405 = vsub.f32 1.0, %v3341
        %v3406 = vsub.f32 1.0, %v3342
        %v3407 = vsub.f32 1.0, %v3343
        %v3408 = vsub.f32 1.0, %v3344
        %v3409 = vsub.f32 1.0, %v3345
        %v3410 = vsub.f32 1.0, %v3346
        %v3411 = vsub.f32 1.0, %v3347
        %v3412 = vsub.f32 1.0, %v3348
        %v3413 = vsub.f32 1.0, %v3349
        %v3414 = vsub.f32 1.0, %v3350
        %v3415 = vsub.f32 1.0, %v3351
        %v3416 = vsub.f32 1.0, %v3352
        %v3417 = vsub.f32 1.0, %v3353
        %v3418 = vsub.f32 1.0, %v3354
        %v3419 = vsub.f32 1.0, %v3355
        %v3420 = vsub.f32 1.0, %v3356
        %v3421 = vsub.f32 1.0, %v3357
        %v3422 = vsub.f32 1.0, %v3358
        %v3423 = vsub.f32 1.0, %v3359
        %v3424 = vsub.f32 1.0, %v3360
        %v3425 = vsub.f32 1.0, %v3361
        %v3426 = vsub.f32 1.0, %v3362
        %v3427 = vsub.f32 1.0, %v3363
        %v3428 = vsub.f32 1.0, %v3364
        %v3429 = vsub.f32 1.0, %v3365
        %v3430 = vsub.f32 1.0, %v3366
        %v3431 = vsub.f32 1.0, %v3367
        %v3432 = vsub.f32 1.0, %v3368
        %v3433 = vsub.f32 1.0, %v3369
        %v3434 = vsub.f32 1.0, %v3370
        %v3435 = vsub.f32 1.0, %v3371
        %v3436 = vsub.f32 1.0, %v3372
        %v3437 = vsub.f32 1.0, %v3373
        %v3438 = vsub.f32 1.0, %v3374
        %v3439 = vsub.f32 1.0, %v3375
        %v3440 = vsub.f32 1.0, %v3376
        %v3441 = vsub.f32 1.0, %v3377
        %v3442 = vsub.f32 1.0, %v3378
        %v3443 = vsub.f32 1.0, %v3379
        %v3444 = vsub.f32 1.0, %v3380
        %v3445 = vsub.f32 1.0, %v3381
        %v3446 = vsub.f32 1.0, %v3382
        %v3447 = vsub.f32 1.0, %v3383
        %v3448 = vsub.f32 1.0, %v3384
        %v3449 = vsub.f32 1.0, %v3385
        %v3450 = vsub.f32 1.0, %v3386
        %v3451 = vsub.f32 1.0, %v3387
        %v3452 = vsub.f32 1.0, %v3388
        %v3453 = vsub.f32 1.0, %v3389
        %v3454 = vsub.f32 1.0, %v3390
        %v3455 = vsub.f32 1.0, %v3391
        %v3456 = vsub.f32 1.0, %v3392
        %v3457 = vsub.f32 1.0, %v3393
        %v3458 = vsub.f32 1.0, %v3394
        %v3459 = vsub.f32 1.0, %v3395
        %v3460 = vsub.f32 1.0, %v3396
        %v3461 = vsub.f32 1.0, %v3397
        %v3462 = vmax.f32 %v3398, 0.0
        %v3463 = vmax.f32 %v3399, 0.0
        %v3464 = vmax.f32 %v3400, 0.0
        %v3465 = vmax.f32 %v3401, 0.0
        %v3466 = vmax.f32 %v3402, 0.0
        %v3467 = vmax.f32 %v3403, 0.0
        %v3468 = vmax.f32 %v3404, 0.0
        %v3469 = vmax.f32 %v3405, 0.0
        %v3470 = vmax.f32 %v3406, 0.0
        %v3471 = vmax.f32 %v3407, 0.0
        %v3472 = vmax.f32 %v3408, 0.0
        %v3473 = vmax.f32 %v3409, 0.0
        %v3474 = vmax.f32 %v3410, 0.0
        %v3475 = vmax.f32 %v3411, 0.0
        %v3476 = vmax.f32 %v3412, 0.0
        %v3477 = vmax.f32 %v3413, 0.0
        %v3478 = vmax.f32 %v3414, 0.0
        %v3479 = vmax.f32 %v3415, 0.0
        %v3480 = vmax.f32 %v3416, 0.0
        %v3481 = vmax.f32 %v3417, 0.0
        %v3482 = vmax.f32 %v3418, 0.0
        %v3483 = vmax.f32 %v3419, 0.0
        %v3484 = vmax.f32 %v3420, 0.0
        %v3485 = vmax.f32 %v3421, 0.0
        %v3486 = vmax.f32 %v3422, 0.0
        %v3487 = vmax.f32 %v3423, 0.0
        %v3488 = vmax.f32 %v3424, 0.0
        %v3489 = vmax.f32 %v3425, 0.0
        %v3490 = vmax.f32 %v3426, 0.0
        %v3491 = vmax.f32 %v3427, 0.0
        %v3492 = vmax.f32 %v3428, 0.0
        %v3493 = vmax.f32 %v3429, 0.0
        %v3494 = vmax.f32 %v3430, 0.0
        %v3495 = vmax.f32 %v3431, 0.0
        %v3496 = vmax.f32 %v3432, 0.0
        %v3497 = vmax.f32 %v3433, 0.0
        %v3498 = vmax.f32 %v3434, 0.0
        %v3499 = vmax.f32 %v3435, 0.0
        %v3500 = vmax.f32 %v3436, 0.0
        %v3501 = vmax.f32 %v3437, 0.0
        %v3502 = vmax.f32 %v3438, 0.0
        %v3503 = vmax.f32 %v3439, 0.0
        %v3504 = vmax.f32 %v3440, 0.0
        %v3505 = vmax.f32 %v3441, 0.0
        %v3506 = vmax.f32 %v3442, 0.0
        %v3507 = vmax.f32 %v3443, 0.0
        %v3508 = vmax.f32 %v3444, 0.0
        %v3509 = vmax.f32 %v3445, 0.0
        %v3510 = vmax.f32 %v3446, 0.0
        %v3511 = vmax.f32 %v3447, 0.0
        %v3512 = vmax.f32 %v3448, 0.0
        %v3513 = vmax.f32 %v3449, 0.0
        %v3514 = vmax.f32 %v3450, 0.0
        %v3515 = vmax.f32 %v3451, 0.0
        %v3516 = vmax.f32 %v3452, 0.0
        %v3517 = vmax.f32 %v3453, 0.0
        %v3518 = vmax.f32 %v3454, 0.0
        %v3519 = vmax.f32 %v3455, 0.0
        %v3520 = vmax.f32 %v3456, 0.0
        %v3521 = vmax.f32 %v3457, 0.0
        %v3522 = vmax.f32 %v3458, 0.0
        %v3523 = vmax.f32 %v3459, 0.0
        %v3524 = vmax.f32 %v3460, 0.0
        %v3525 = vmax.f32 %v3461, 0.0
        %v3526 = vmul.f32 %v3204, %v3462
        %v3527 = vmul.f32 %v3205, %v3463
        %v3528 = vmul.f32 %v3206, %v3464
        %v3529 = vmul.f32 %v3207, %v3465
        %v3530 = vmul.f32 %v3208, %v3466
        %v3531 = vmul.f32 %v3209, %v3467
        %v3532 = vmul.f32 %v3210, %v3468
        %v3533 = vmul.f32 %v3211, %v3469
        %v3534 = vmul.f32 %v3212, %v3470
        %v3535 = vmul.f32 %v3213, %v3471
        %v3536 = vmul.f32 %v3214, %v3472
        %v3537 = vmul.f32 %v3215, %v3473
        %v3538 = vmul.f32 %v3216, %v3474
        %v3539 = vmul.f32 %v3217, %v3475
        %v3540 = vmul.f32 %v3218, %v3476
        %v3541 = vmul.f32 %v3219, %v3477
        %v3542 = vmul.f32 %v3220, %v3478
        %v3543 = vmul.f32 %v3221, %v3479
        %v3544 = vmul.f32 %v3222, %v3480
        %v3545 = vmul.f32 %v3223, %v3481
        %v3546 = vmul.f32 %v3224, %v3482
        %v3547 = vmul.f32 %v3225, %v3483
        %v3548 = vmul.f32 %v3226, %v3484
        %v3549 = vmul.f32 %v3227, %v3485
        %v3550 = vmul.f32 %v3228, %v3486
        %v3551 = vmul.f32 %v3229, %v3487
        %v3552 = vmul.f32 %v3230, %v3488
        %v3553 = vmul.f32 %v3231, %v3489
        %v3554 = vmul.f32 %v3232, %v3490
        %v3555 = vmul.f32 %v3233, %v3491
        %v3556 = vmul.f32 %v3234, %v3492
        %v3557 = vmul.f32 %v3235, %v3493
        %v3558 = vmul.f32 %v3236, %v3494
        %v3559 = vmul.f32 %v3237, %v3495
        %v3560 = vmul.f32 %v3238, %v3496
        %v3561 = vmul.f32 %v3239, %v3497
        %v3562 = vmul.f32 %v3240, %v3498
        %v3563 = vmul.f32 %v3241, %v3499
        %v3564 = vmul.f32 %v3242, %v3500
        %v3565 = vmul.f32 %v3243, %v3501
        %v3566 = vmul.f32 %v3244, %v3502
        %v3567 = vmul.f32 %v3245, %v3503
        %v3568 = vmul.f32 %v3246, %v3504
        %v3569 = vmul.f32 %v3247, %v3505
        %v3570 = vmul.f32 %v3248, %v3506
        %v3571 = vmul.f32 %v3249, %v3507
        %v3572 = vmul.f32 %v3250, %v3508
        %v3573 = vmul.f32 %v3251, %v3509
        %v3574 = vmul.f32 %v3252, %v3510
        %v3575 = vmul.f32 %v3253, %v3511
        %v3576 = vmul.f32 %v3254, %v3512
        %v3577 = vmul.f32 %v3255, %v3513
        %v3578 = vmul.f32 %v3256, %v3514
        %v3579 = vmul.f32 %v3257, %v3515
        %v3580 = vmul.f32 %v3258, %v3516
        %v3581 = vmul.f32 %v3259, %v3517
        %v3582 = vmul.f32 %v3260, %v3518
        %v3583 = vmul.f32 %v3261, %v3519
        %v3584 = vmul.f32 %v3262, %v3520
        %v3585 = vmul.f32 %v3263, %v3521
        %v3586 = vmul.f32 %v3264, %v3522
        %v3587 = vmul.f32 %v3265, %v3523
        %v3588 = vmul.f32 %v3266, %v3524
        %v3589 = vmul.f32 %v3267, %v3525
        %v3590 = vpack.c.bf16 %v3528, %v3526
        %v3591 = vpack.c.bf16 %v3529, %v3527
        %v3592 = vpack.c.bf16 %v3532, %v3530
        %v3593 = vpack.c.bf16 %v3533, %v3531
        %v3594 = vpack.c.bf16 %v3536, %v3534
        %v3595 = vpack.c.bf16 %v3537, %v3535
        %v3596 = vpack.c.bf16 %v3540, %v3538
        %v3597 = vpack.c.bf16 %v3541, %v3539
        %v3598 = vpack.c.bf16 %v3544, %v3542
        %v3599 = vpack.c.bf16 %v3545, %v3543
        %v3600 = vpack.c.bf16 %v3548, %v3546
        %v3601 = vpack.c.bf16 %v3549, %v3547
        %v3602 = vpack.c.bf16 %v3552, %v3550
        %v3603 = vpack.c.bf16 %v3553, %v3551
        %v3604 = vpack.c.bf16 %v3556, %v3554
        %v3605 = vpack.c.bf16 %v3557, %v3555
        %v3606 = vpack.c.bf16 %v3560, %v3558
        %v3607 = vpack.c.bf16 %v3561, %v3559
        %v3608 = vpack.c.bf16 %v3564, %v3562
        %v3609 = vpack.c.bf16 %v3565, %v3563
        %v3610 = vpack.c.bf16 %v3568, %v3566
        %v3611 = vpack.c.bf16 %v3569, %v3567
        %v3612 = vpack.c.bf16 %v3572, %v3570
        %v3613 = vpack.c.bf16 %v3573, %v3571
        %v3614 = vpack.c.bf16 %v3576, %v3574
        %v3615 = vpack.c.bf16 %v3577, %v3575
        %v3616 = vpack.c.bf16 %v3580, %v3578
        %v3617 = vpack.c.bf16 %v3581, %v3579
        %v3618 = vpack.c.bf16 %v3584, %v3582
        %v3619 = vpack.c.bf16 %v3585, %v3583
        %v3620 = vpack.c.bf16 %v3588, %v3586
        %v3621 = vpack.c.bf16 %v3589, %v3587
        %v3622 = vpack.c.bf16 %v2917, %v2917
        %v3623 = vpack.c.bf16 %v2943, %v2943
        %3624 = vmatpush.bf16.msra.mxu0 %v3604
        %3625 = vmatpush.bf16.msra.mxu0 %v3602
        %3626 = vmatpush.bf16.msra.mxu0 %v3600
        %3627 = vmatpush.bf16.msra.mxu0 %v3598
        %3628 = vmatpush.bf16.msra.mxu0 %v3596
        %3629 = vmatpush.bf16.msra.mxu0 %v3594
        %3630 = vmatpush.bf16.msra.mxu0 %v3592
        %3631 = vmatpush.bf16.msra.mxu0 %v3590
        %3632 = vmatmul.bf16.gmra.mxu0 %v3622
        %v3633 = vpop.f32.mrf.mxu0
        %v3634 = vadd.f32 0.0, %v3633
        %v3635 = vpop.f32.mrf.mxu0
        %3636 = vdwg.mxu0
        %3637 = vmatpush.bf16.msra.mxu0 %v3620
        %3638 = vmatpush.bf16.msra.mxu0 %v3618
        %3639 = vmatpush.bf16.msra.mxu0 %v3616
        %3640 = vmatpush.bf16.msra.mxu0 %v3614
        %3641 = vmatpush.bf16.msra.mxu0 %v3612
        %3642 = vmatpush.bf16.msra.mxu0 %v3610
        %3643 = vmatpush.bf16.msra.mxu0 %v3608
        %3644 = vmatpush.bf16.msra.mxu0 %v3606
        %3645 = vmatmul.bf16.gmra.mxu0 %v3623
        %v3646 = vpop.f32.mrf.mxu0
        %v3647 = vadd.f32 %v3634, %v3646
        %v3648 = vpop.f32.mrf.mxu0
        %3649 = vdwg.mxu0
        %3650 = vmatpush.bf16.msra.mxu0 %v3605
        %3651 = vmatpush.bf16.msra.mxu0 %v3603
        %3652 = vmatpush.bf16.msra.mxu0 %v3601
        %3653 = vmatpush.bf16.msra.mxu0 %v3599
        %3654 = vmatpush.bf16.msra.mxu0 %v3597
        %3655 = vmatpush.bf16.msra.mxu0 %v3595
        %3656 = vmatpush.bf16.msra.mxu0 %v3593
        %3657 = vmatpush.bf16.msra.mxu0 %v3591
        %3658 = vmatmul.bf16.gmra.mxu0 %v3622
        %v3659 = vpop.f32.mrf.mxu0
        %v3660 = vadd.f32 0.0, %v3659
        %v3661 = vpop.f32.mrf.mxu0
        %3662 = vdwg.mxu0
        %3663 = vmatpush.bf16.msra.mxu0 %v3621
        %3664 = vmatpush.bf16.msra.mxu0 %v3619
        %3665 = vmatpush.bf16.msra.mxu0 %v3617
        %3666 = vmatpush.bf16.msra.mxu0 %v3615
        %3667 = vmatpush.bf16.msra.mxu0 %v3613
        %3668 = vmatpush.bf16.msra.mxu0 %v3611
        %3669 = vmatpush.bf16.msra.mxu0 %v3609
        %3670 = vmatpush.bf16.msra.mxu0 %v3607
        %3671 = vmatmul.bf16.gmra.mxu0 %v3623
        %v3672 = vpop.f32.mrf.mxu0
        %v3673 = vadd.f32 %v3660, %v3672
        %v3674 = vpop.f32.mrf.mxu0
        %3675 = vdwg.mxu0
        %v3676 = vpack.c.bf16 %v3647, %v1565
        %v3677 = vpack.c.bf16 %v3673, %v1566
        %v3678 = vld [vmem:[%s14] sm:$0xf]
        %v3679 = vld [vmem:[%s15] sm:$0xff]
        %3681 = vset.pattern.permute.xlu0 0
        %3682 = vperm.xlu0 %3681, %v3679
        %v3683 = vpop.permute.xlu0 %3682
        %vm3685 = vcmask 130048
        %v3687 = vsel %vm3685, %v3678, 0
        %3689 = vmatpush.bf16.msra.mxu0 0
        %3690 = vmatpush.bf16.msra.mxu0 0
        %3691 = vmatpush.bf16.msra.mxu0 0
        %3692 = vmatpush.bf16.msra.mxu0 0
        %3693 = vmatpush.bf16.msra.mxu0 0
        %3694 = vmatpush.bf16.msra.mxu0 0
        %3695 = vmatpush.bf16.msra.mxu0 0
        %3696 = vmatpush.bf16.msra.mxu0 %v3676
        %3697 = vmatmul.bf16.gmra.mxu0 %v3687
        %v3698 = vpop.f32.mrf.mxu0
        %v3699 = vadd.f32 %v3683, %v3698
        %v3700 = vpop.f32.mrf.mxu0
        %3701 = vdwg.mxu0
        %3702 = vmatpush.bf16.msra.mxu0 0
        %3703 = vmatpush.bf16.msra.mxu0 0
        %3704 = vmatpush.bf16.msra.mxu0 0
        %3705 = vmatpush.bf16.msra.mxu0 0
        %3706 = vmatpush.bf16.msra.mxu0 0
        %3707 = vmatpush.bf16.msra.mxu0 0
        %3708 = vmatpush.bf16.msra.mxu0 0
        %3709 = vmatpush.bf16.msra.mxu0 %v3677
        %3710 = vmatmul.bf16.gmra.mxu0 %v3687
        %v3711 = vpop.f32.mrf.mxu0
        %v3712 = vadd.f32 %v3683, %v3711
        %v3713 = vpop.f32.mrf.mxu0
        %3714 = vdwg.mxu0
        %v3715 = vmax.f32 %v3699, 0.0
        %v3716 = vmax.f32 %v3712, 0.0
        %3717 = vrot.lane.b32.xlu0 %v3715, 17
        %v3718 = vpop.permute.xlu0 %3717
        %3719 = vrot.lane.b32.xlu0 %v3716, 17
        %v3720 = vpop.permute.xlu0 %3719
        %vm3721 = vcmp.lt.s32.totalorder %v1115, 17
        %v3722 = vsel %vm3721, %v3718, %v3720
        %v3723 = vsel %vm3721, %v3720, %v3718
        %3724 = vrot.lane.b32.xlu0 %v3715, 16
        %v3725 = vpop.permute.xlu0 %3724
        %3726 = vrot.lane.b32.xlu0 %v3716, 16
        %v3727 = vpop.permute.xlu0 %3726
        %vm3728 = vcmp.lt.s32.totalorder %v1115, 16
        %v3729 = vsel %vm3728, %v3725, %v3727
        %v3730 = vsel %vm3728, %v3727, %v3725
        %3731 = vrot.lane.b32.xlu0 %v3715, 15
        %v3732 = vpop.permute.xlu0 %3731
        %3733 = vrot.lane.b32.xlu0 %v3716, 15
        %v3734 = vpop.permute.xlu0 %3733
        %vm3735 = vcmp.lt.s32.totalorder %v1115, 15
        %v3736 = vsel %vm3735, %v3732, %v3734
        %v3737 = vsel %vm3735, %v3734, %v3732
        %3738 = vrot.lane.b32.xlu0 %v3715, 1
        %v3739 = vpop.permute.xlu0 %3738
        %3740 = vrot.lane.b32.xlu0 %v3716, 1
        %v3741 = vpop.permute.xlu0 %3740
        %vm3742 = vcmp.lt.s32.totalorder %v1115, 1
        %v3743 = vsel %vm3742, %v3739, %v3741
        %v3744 = vsel %vm3742, %v3741, %v3739
        %3745 = vrot.lane.b32.xlu0 %v3715, 127
        %v3746 = vpop.permute.xlu0 %3745
        %3747 = vrot.lane.b32.xlu0 %v3716, 127
        %v3748 = vpop.permute.xlu0 %3747
        %v3749 = vsel %vm1116, %v3746, %v3748
        %v3750 = vsel %vm1116, %v3748, %v3746
        %3751 = vrot.lane.b32.xlu0 %v3715, 113
        %v3752 = vpop.permute.xlu0 %3751
        %3753 = vrot.lane.b32.xlu0 %v3716, 113
        %v3754 = vpop.permute.xlu0 %3753
        %vm3755 = vcmp.lt.s32.totalorder %v1115, 113
        %v3756 = vsel %vm3755, %v3752, %v3754
        %v3757 = vsel %vm3755, %v3754, %v3752
        %3758 = vrot.lane.b32.xlu0 %v3715, 112
        %v3759 = vpop.permute.xlu0 %3758
        %3760 = vrot.lane.b32.xlu0 %v3716, 112
        %v3761 = vpop.permute.xlu0 %3760
        %vm3762 = vcmp.lt.s32.totalorder %v1115, 112
        %v3763 = vsel %vm3762, %v3759, %v3761
        %v3764 = vsel %vm3762, %v3761, %v3759
        %3765 = vrot.lane.b32.xlu0 %v3715, 111
        %v3766 = vpop.permute.xlu0 %3765
        %3767 = vrot.lane.b32.xlu0 %v3716, 111
        %v3768 = vpop.permute.xlu0 %3767
        %vm3769 = vcmp.lt.s32.totalorder %v1115, 111
        %v3770 = vsel %vm3769, %v3766, %v3768
        %v3771 = vsel %vm3769, %v3768, %v3766
        %v3772 = vld [vmem:[%s11] sm:$0xff]
        %v3773 = vld [vmem:[%s11 + $0x8] sm:$0xff]
        %v3774 = vld [vmem:[%s11 + $0x10] sm:$0xff]
        %v3775 = vld [vmem:[%s11 + $0x18] sm:$0xff]
        %v3776 = vld [vmem:[%s11 + $0x20] sm:$0xff]
        %v3777 = vld [vmem:[%s11 + $0x28] sm:$0xff]
        %v3778 = vld [vmem:[%s11 + $0x30] sm:$0xff]
        %v3779 = vld [vmem:[%s11 + $0x38] sm:$0xff]
        %v3780 = vld [vmem:[%s11 + $0x40] sm:$0xff]
        %v3781 = vld [vmem:[%s11 + $0x48] sm:$0xff]
        %v3782 = vld [vmem:[%s11 + $0x50] sm:$0xff]
        %v3783 = vld [vmem:[%s11 + $0x58] sm:$0xff]
        %v3784 = vld [vmem:[%s11 + $0x60] sm:$0xff]
        %v3785 = vld [vmem:[%s11 + $0x68] sm:$0xff]
        %v3786 = vld [vmem:[%s11 + $0x70] sm:$0xff]
        %v3787 = vld [vmem:[%s11 + $0x78] sm:$0xff]
        %v3788 = vld [vmem:[%s11 + $0x80] sm:$0xff]
        %v3789 = vld [vmem:[%s11 + $0x88] sm:$0xff]
        %v3790 = vmul.f32 %v3723, %v3772
        %v3791 = vmul.f32 %v3722, %v3773
        %v3792 = vmul.f32 %v3730, %v3774
        %v3793 = vmul.f32 %v3729, %v3775
        %v3794 = vmul.f32 %v3737, %v3776
        %v3795 = vmul.f32 %v3736, %v3777
        %v3796 = vmul.f32 %v3744, %v3778
        %v3797 = vmul.f32 %v3743, %v3779
        %v3798 = vmul.f32 %v3715, %v3780
        %v3799 = vmul.f32 %v3716, %v3781
        %v3800 = vmul.f32 %v3749, %v3782
        %v3801 = vmul.f32 %v3750, %v3783
        %v3802 = vmul.f32 %v3756, %v3784
        %v3803 = vmul.f32 %v3757, %v3785
        %v3804 = vmul.f32 %v3763, %v3786
        %v3805 = vmul.f32 %v3764, %v3787
        %v3806 = vmul.f32 %v3770, %v3788
        %v3807 = vmul.f32 %v3771, %v3789
        %v3808 = vpack.c.bf16 %v3792, %v3790
        %v3809 = vpack.c.bf16 %v3793, %v3791
        %v3810 = vpack.c.bf16 %v3796, %v3794
        %v3811 = vpack.c.bf16 %v3797, %v3795
        %v3812 = vpack.c.bf16 %v3800, %v3798
        %v3813 = vpack.c.bf16 %v3801, %v3799
        %v3814 = vpack.c.bf16 %v3804, %v3802
        %v3815 = vpack.c.bf16 %v3805, %v3803
        %v3816 = vpack.c.bf16 %v3806, %v3806
        %v3817 = vpack.c.bf16 %v3807, %v3807
        %v3818 = vld [vmem:[%s16] sm:$0xf]
        %v3819 = vld [vmem:[%s17] sm:$0xff]
        %3821 = vset.pattern.permute.xlu0 0
        %3822 = vperm.xlu0 %3821, %v3819
        %v3823 = vpop.permute.xlu0 %3822
        %vm3825 = vcmask 588800
        %v3827 = vsel %vm3825, %v3818, 0
        %v3830 = vsel %vm2955, %v3816, 0
        %v3833 = vsel %vm2955, %v3817, 0
        %3835 = vmatpush.bf16.msra.mxu0 0
        %3836 = vmatpush.bf16.msra.mxu0 0
        %3837 = vmatpush.bf16.msra.mxu0 0
        %3838 = vmatpush.bf16.msra.mxu0 %v3830
        %3839 = vmatpush.bf16.msra.mxu0 %v3814
        %3840 = vmatpush.bf16.msra.mxu0 %v3812
        %3841 = vmatpush.bf16.msra.mxu0 %v3810
        %3842 = vmatpush.bf16.msra.mxu0 %v3808
        %3843 = vmatmul.bf16.gmra.mxu0 %v3827
        %v3844 = vpop.f32.mrf.mxu0
        %v3845 = vadd.f32 %v3823, %v3844
        %v3846 = vpop.f32.mrf.mxu0
        %3847 = vdwg.mxu0
        %3848 = vmatpush.bf16.msra.mxu0 0
        %3849 = vmatpush.bf16.msra.mxu0 0
        %3850 = vmatpush.bf16.msra.mxu0 0
        %3851 = vmatpush.bf16.msra.mxu0 %v3833
        %3852 = vmatpush.bf16.msra.mxu0 %v3815
        %3853 = vmatpush.bf16.msra.mxu0 %v3813
        %3854 = vmatpush.bf16.msra.mxu0 %v3811
        %3855 = vmatpush.bf16.msra.mxu0 %v3809
        %3856 = vmatmul.bf16.gmra.mxu0 %v3827
        %v3857 = vpop.f32.mrf.mxu0
        %v3858 = vadd.f32 %v3823, %v3857
        %v3859 = vpop.f32.mrf.mxu0
        %3860 = vdwg.mxu0
        %v3861 = vmax.f32 %v3845, 0.0
        %v3862 = vmax.f32 %v3858, 0.0
        %v3863 = vadd.f32 %v3861, %v810
        %v3864 = vadd.f32 %v3862, %v811
        %3865 = vst [vmem:[%s796] sm:$0xff] %v3863
        %3866 = vst [vmem:[%s796 + $0x8] sm:$0xff] %v3864
        %v3867 = vld [vmem:[#allocation4] sm:$0xff]
        %v3868 = vld [vmem:[#allocation4 + $0x8] sm:$0xff]
        %v3869 = vld [vmem:[#allocation4 + $0x10] sm:$0xff]
        %v3870 = vld [vmem:[#allocation4 + $0x18] sm:$0xff]
        %v3871 = vld [vmem:[#allocation4 + $0x20] sm:$0xff]
        %v3872 = vld [vmem:[#allocation4 + $0x28] sm:$0xff]
        %v3873 = vld [vmem:[#allocation4 + $0x30] sm:$0xff]
        %v3874 = vld [vmem:[#allocation4 + $0x38] sm:$0xff]
        %v3875 = vld [vmem:[#allocation4 + $0x40] sm:$0xff]
        %v3876 = vld [vmem:[#allocation4 + $0x48] sm:$0xff]
        %v3877 = vld [vmem:[#allocation4 + $0x50] sm:$0xff]
        %v3878 = vld [vmem:[#allocation4 + $0x58] sm:$0xff]
        %v3879 = vld [vmem:[#allocation4 + $0x60] sm:$0xff]
        %v3880 = vld [vmem:[#allocation4 + $0x68] sm:$0xff]
        %v3881 = vld [vmem:[#allocation4 + $0x70] sm:$0xff]
        %v3882 = vld [vmem:[#allocation4 + $0x78] sm:$0xff]
        %v3883 = vld [vmem:[#allocation4 + $0x80] sm:$0xff]
        %v3884 = vld [vmem:[#allocation4 + $0x88] sm:$0xff]
        %v3885 = vld [vmem:[#allocation4 + $0x90] sm:$0xff]
        %v3886 = vld [vmem:[#allocation4 + $0x98] sm:$0xff]
        %v3887 = vld [vmem:[#allocation4 + $0xa0] sm:$0xff]
        %v3888 = vld [vmem:[#allocation4 + $0xa8] sm:$0xff]
        %v3889 = vld [vmem:[#allocation4 + $0xb0] sm:$0xff]
        %v3890 = vld [vmem:[#allocation4 + $0xb8] sm:$0xff]
        %v3891 = vld [vmem:[#allocation4 + $0xc0] sm:$0xff]
        %v3892 = vld [vmem:[#allocation4 + $0xc8] sm:$0xff]
        %v3893 = vld [vmem:[#allocation4 + $0xd0] sm:$0xff]
        %v3894 = vld [vmem:[#allocation4 + $0xd8] sm:$0xff]
        %v3895 = vld [vmem:[#allocation4 + $0xe0] sm:$0xff]
        %v3896 = vld [vmem:[#allocation4 + $0xe8] sm:$0xff]
        %v3897 = vld [vmem:[#allocation4 + $0xf0] sm:$0xff]
        %v3898 = vld [vmem:[#allocation4 + $0xf8] sm:$0xff]
        %v3899 = vld [vmem:[#allocation4 + $0x100] sm:$0xff]
        %v3900 = vld [vmem:[#allocation4 + $0x108] sm:$0xff]
        %v3901 = vld [vmem:[#allocation4 + $0x110] sm:$0xff]
        %v3902 = vld [vmem:[#allocation4 + $0x118] sm:$0xff]
        %v3903 = vld [vmem:[#allocation4 + $0x120] sm:$0xff]
        %v3904 = vld [vmem:[#allocation4 + $0x128] sm:$0xff]
        %v3905 = vld [vmem:[#allocation4 + $0x130] sm:$0xff]
        %v3906 = vld [vmem:[#allocation4 + $0x138] sm:$0xff]
        %v3907 = vld [vmem:[#allocation4 + $0x140] sm:$0xff]
        %v3908 = vld [vmem:[#allocation4 + $0x148] sm:$0xff]
        %v3909 = vld [vmem:[#allocation4 + $0x150] sm:$0xff]
        %v3910 = vld [vmem:[#allocation4 + $0x158] sm:$0xff]
        %v3911 = vld [vmem:[#allocation4 + $0x160] sm:$0xff]
        %v3912 = vld [vmem:[#allocation4 + $0x168] sm:$0xff]
        %v3913 = vld [vmem:[#allocation4 + $0x170] sm:$0xff]
        %v3914 = vld [vmem:[#allocation4 + $0x178] sm:$0xff]
        %v3915 = vld [vmem:[#allocation4 + $0x180] sm:$0xff]
        %v3916 = vld [vmem:[#allocation4 + $0x188] sm:$0xff]
        %v3917 = vld [vmem:[#allocation4 + $0x190] sm:$0xff]
        %v3918 = vld [vmem:[#allocation4 + $0x198] sm:$0xff]
        %v3919 = vld [vmem:[#allocation4 + $0x1a0] sm:$0xff]
        %v3920 = vld [vmem:[#allocation4 + $0x1a8] sm:$0xff]
        %v3921 = vld [vmem:[#allocation4 + $0x1b0] sm:$0xff]
        %v3922 = vld [vmem:[#allocation4 + $0x1b8] sm:$0xff]
        %v3923 = vld [vmem:[#allocation4 + $0x1c0] sm:$0xff]
        %v3924 = vld [vmem:[#allocation4 + $0x1c8] sm:$0xff]
        %v3925 = vld [vmem:[#allocation4 + $0x1d0] sm:$0xff]
        %v3926 = vld [vmem:[#allocation4 + $0x1d8] sm:$0xff]
        %v3927 = vld [vmem:[#allocation4 + $0x1e0] sm:$0xff]
        %v3928 = vld [vmem:[#allocation4 + $0x1e8] sm:$0xff]
        %v3929 = vld [vmem:[#allocation4 + $0x1f0] sm:$0xff]
        %v3930 = vld [vmem:[#allocation4 + $0x1f8] sm:$0xff]
        %v3931 = vld [vmem:[#allocation4 + $0x200] sm:$0xff]
        %v3932 = vld [vmem:[#allocation4 + $0x208] sm:$0xff]
        %v3933 = vld [vmem:[#allocation4 + $0x210] sm:$0xff]
        %v3934 = vld [vmem:[#allocation4 + $0x218] sm:$0xff]
        %v3935 = vld [vmem:[#allocation4 + $0x220] sm:$0xff]
        %v3936 = vld [vmem:[#allocation4 + $0x228] sm:$0xff]
        %v3937 = vld [vmem:[#allocation4 + $0x230] sm:$0xff]
        %v3938 = vld [vmem:[#allocation4 + $0x238] sm:$0xff]
        %v3939 = vld [vmem:[#allocation4 + $0x240] sm:$0xff]
        %v3940 = vld [vmem:[#allocation4 + $0x248] sm:$0xff]
        %v3941 = vld [vmem:[#allocation4 + $0x250] sm:$0xff]
        %v3942 = vld [vmem:[#allocation4 + $0x258] sm:$0xff]
        %v3943 = vld [vmem:[#allocation4 + $0x260] sm:$0xff]
        %v3944 = vld [vmem:[#allocation4 + $0x268] sm:$0xff]
        %v3945 = vld [vmem:[#allocation4 + $0x270] sm:$0xff]
        %v3946 = vld [vmem:[#allocation4 + $0x278] sm:$0xff]
        %v3947 = vld [vmem:[#allocation4 + $0x280] sm:$0xff]
        %v3948 = vld [vmem:[#allocation4 + $0x288] sm:$0xff]
        %v3949 = vld [vmem:[#allocation4 + $0x290] sm:$0xff]
        %v3950 = vld [vmem:[#allocation4 + $0x298] sm:$0xff]
        %v3951 = vld [vmem:[#allocation4 + $0x2a0] sm:$0xff]
        %v3952 = vld [vmem:[#allocation4 + $0x2a8] sm:$0xff]
        %v3953 = vld [vmem:[#allocation4 + $0x2b0] sm:$0xff]
        %v3954 = vld [vmem:[#allocation4 + $0x2b8] sm:$0xff]
        %v3955 = vld [vmem:[#allocation4 + $0x2c0] sm:$0xff]
        %v3956 = vld [vmem:[#allocation4 + $0x2c8] sm:$0xff]
        %v3957 = vld [vmem:[#allocation4 + $0x2d0] sm:$0xff]
        %v3958 = vld [vmem:[#allocation4 + $0x2d8] sm:$0xff]
        %v3959 = vld [vmem:[#allocation4 + $0x2e0] sm:$0xff]
        %v3960 = vld [vmem:[#allocation4 + $0x2e8] sm:$0xff]
        %v3961 = vld [vmem:[#allocation4 + $0x2f0] sm:$0xff]
        %v3962 = vld [vmem:[#allocation4 + $0x2f8] sm:$0xff]
        %v3963 = vld [vmem:[#allocation4 + $0x300] sm:$0xff]
        %v3964 = vld [vmem:[#allocation4 + $0x308] sm:$0xff]
        %v3965 = vld [vmem:[#allocation4 + $0x310] sm:$0xff]
        %v3966 = vld [vmem:[#allocation4 + $0x318] sm:$0xff]
        %v3967 = vld [vmem:[#allocation4 + $0x320] sm:$0xff]
        %v3968 = vld [vmem:[#allocation4 + $0x328] sm:$0xff]
        %v3969 = vld [vmem:[#allocation4 + $0x330] sm:$0xff]
        %v3970 = vld [vmem:[#allocation4 + $0x338] sm:$0xff]
        %v3971 = vld [vmem:[#allocation4 + $0x340] sm:$0xff]
        %v3972 = vld [vmem:[#allocation4 + $0x348] sm:$0xff]
        %v3973 = vld [vmem:[#allocation4 + $0x350] sm:$0xff]
        %v3974 = vld [vmem:[#allocation4 + $0x358] sm:$0xff]
        %v3975 = vld [vmem:[#allocation4 + $0x360] sm:$0xff]
        %v3976 = vld [vmem:[#allocation4 + $0x368] sm:$0xff]
        %v3977 = vld [vmem:[#allocation4 + $0x370] sm:$0xff]
        %v3978 = vld [vmem:[#allocation4 + $0x378] sm:$0xff]
        %v3979 = vld [vmem:[#allocation4 + $0x380] sm:$0xff]
        %v3980 = vld [vmem:[#allocation4 + $0x388] sm:$0xff]
        %v3981 = vld [vmem:[#allocation4 + $0x390] sm:$0xff]
        %v3982 = vld [vmem:[#allocation4 + $0x398] sm:$0xff]
        %v3983 = vld [vmem:[#allocation4 + $0x3a0] sm:$0xff]
        %v3984 = vld [vmem:[#allocation4 + $0x3a8] sm:$0xff]
        %v3985 = vld [vmem:[#allocation4 + $0x3b0] sm:$0xff]
        %v3986 = vld [vmem:[#allocation4 + $0x3b8] sm:$0xff]
        %v3987 = vld [vmem:[#allocation4 + $0x3c0] sm:$0xff]
        %v3988 = vld [vmem:[#allocation4 + $0x3c8] sm:$0xff]
        %v3989 = vld [vmem:[#allocation4 + $0x3d0] sm:$0xff]
        %v3990 = vld [vmem:[#allocation4 + $0x3d8] sm:$0xff]
        %v3991 = vld [vmem:[#allocation4 + $0x3e0] sm:$0xff]
        %v3992 = vld [vmem:[#allocation4 + $0x3e8] sm:$0xff]
        %v3993 = vld [vmem:[#allocation4 + $0x3f0] sm:$0xff]
        %v3994 = vld [vmem:[#allocation4 + $0x3f8] sm:$0xff]
        %v3995 = vld [vmem:[#allocation4 + $0x400] sm:$0xff]
        %v3996 = vld [vmem:[#allocation4 + $0x408] sm:$0xff]
        %v3997 = vld [vmem:[#allocation4 + $0x410] sm:$0xff]
        %v3998 = vld [vmem:[#allocation4 + $0x418] sm:$0xff]
        %v3999 = vld [vmem:[#allocation4 + $0x420] sm:$0xff]
        %v4000 = vld [vmem:[#allocation4 + $0x428] sm:$0xff]
        %v4001 = vld [vmem:[#allocation4 + $0x430] sm:$0xff]
        %v4002 = vld [vmem:[#allocation4 + $0x438] sm:$0xff]
        %v4003 = vld [vmem:[#allocation4 + $0x440] sm:$0xff]
        %v4004 = vld [vmem:[#allocation4 + $0x448] sm:$0xff]
        %v4005 = vld [vmem:[#allocation4 + $0x450] sm:$0xff]
        %v4006 = vld [vmem:[#allocation4 + $0x458] sm:$0xff]
        %v4007 = vld [vmem:[#allocation4 + $0x460] sm:$0xff]
        %v4008 = vld [vmem:[#allocation4 + $0x468] sm:$0xff]
        %v4009 = vld [vmem:[#allocation4 + $0x470] sm:$0xff]
        %v4010 = vld [vmem:[#allocation4 + $0x478] sm:$0xff]
        %v4011 = vld [vmem:[#allocation4 + $0x480] sm:$0xff]
        %v4012 = vld [vmem:[#allocation4 + $0x488] sm:$0xff]
        %v4013 = vld [vmem:[#allocation4 + $0x490] sm:$0xff]
        %v4014 = vld [vmem:[#allocation4 + $0x498] sm:$0xff]
        %v4015 = vld [vmem:[#allocation4 + $0x4a0] sm:$0xff]
        %v4016 = vld [vmem:[#allocation4 + $0x4a8] sm:$0xff]
        %v4017 = vld [vmem:[#allocation4 + $0x4b0] sm:$0xff]
        %v4018 = vld [vmem:[#allocation4 + $0x4b8] sm:$0xff]
        %v4019 = vld [vmem:[#allocation4 + $0x4c0] sm:$0xff]
        %v4020 = vld [vmem:[#allocation4 + $0x4c8] sm:$0xff]
        %v4021 = vld [vmem:[#allocation4 + $0x4d0] sm:$0xff]
        %v4022 = vld [vmem:[#allocation4 + $0x4d8] sm:$0xff]
        %v4023 = vld [vmem:[#allocation4 + $0x4e0] sm:$0xff]
        %v4024 = vld [vmem:[#allocation4 + $0x4e8] sm:$0xff]
        %v4025 = vld [vmem:[#allocation4 + $0x4f0] sm:$0xff]
        %v4026 = vld [vmem:[#allocation4 + $0x4f8] sm:$0xff]
        %v4027 = vld [vmem:[#allocation4 + $0x500] sm:$0xff]
        %v4028 = vld [vmem:[#allocation4 + $0x508] sm:$0xff]
        %v4029 = vld [vmem:[#allocation4 + $0x510] sm:$0xff]
        %v4030 = vld [vmem:[#allocation4 + $0x518] sm:$0xff]
        %v4031 = vld [vmem:[#allocation4 + $0x520] sm:$0xff]
        %v4032 = vld [vmem:[#allocation4 + $0x528] sm:$0xff]
        %v4033 = vld [vmem:[#allocation4 + $0x530] sm:$0xff]
        %v4034 = vld [vmem:[#allocation4 + $0x538] sm:$0xff]
        %v4035 = vld [vmem:[#allocation4 + $0x540] sm:$0xff]
        %v4036 = vld [vmem:[#allocation4 + $0x548] sm:$0xff]
        %v4037 = vld [vmem:[#allocation4 + $0x550] sm:$0xff]
        %v4038 = vld [vmem:[#allocation4 + $0x558] sm:$0xff]
        %v4039 = vld [vmem:[#allocation4 + $0x560] sm:$0xff]
        %v4040 = vld [vmem:[#allocation4 + $0x568] sm:$0xff]
        %v4041 = vld [vmem:[#allocation4 + $0x570] sm:$0xff]
        %v4042 = vld [vmem:[#allocation4 + $0x578] sm:$0xff]
        %v4043 = vld [vmem:[#allocation4 + $0x580] sm:$0xff]
        %v4044 = vld [vmem:[#allocation4 + $0x588] sm:$0xff]
        %v4045 = vld [vmem:[#allocation4 + $0x590] sm:$0xff]
        %v4046 = vld [vmem:[#allocation4 + $0x598] sm:$0xff]
        %v4047 = vld [vmem:[#allocation4 + $0x5a0] sm:$0xff]
        %v4048 = vld [vmem:[#allocation4 + $0x5a8] sm:$0xff]
        %v4049 = vld [vmem:[#allocation4 + $0x5b0] sm:$0xff]
        %v4050 = vld [vmem:[#allocation4 + $0x5b8] sm:$0xff]
        %v4051 = vld [vmem:[#allocation4 + $0x5c0] sm:$0xff]
        %v4052 = vld [vmem:[#allocation4 + $0x5c8] sm:$0xff]
        %v4053 = vld [vmem:[#allocation4 + $0x5d0] sm:$0xff]
        %v4054 = vld [vmem:[#allocation4 + $0x5d8] sm:$0xff]
        %v4055 = vld [vmem:[#allocation4 + $0x5e0] sm:$0xff]
        %v4056 = vld [vmem:[#allocation4 + $0x5e8] sm:$0xff]
        %v4057 = vld [vmem:[#allocation4 + $0x5f0] sm:$0xff]
        %v4058 = vld [vmem:[#allocation4 + $0x5f8] sm:$0xff]
        %v4059 = vld [vmem:[#allocation4 + $0x600] sm:$0xff]
        %v4060 = vld [vmem:[#allocation4 + $0x608] sm:$0xff]
        %v4061 = vld [vmem:[#allocation4 + $0x610] sm:$0xff]
        %v4062 = vld [vmem:[#allocation4 + $0x618] sm:$0xff]
        %v4063 = vld [vmem:[#allocation4 + $0x620] sm:$0xff]
        %v4064 = vld [vmem:[#allocation4 + $0x628] sm:$0xff]
        %v4065 = vld [vmem:[#allocation4 + $0x630] sm:$0xff]
        %v4066 = vld [vmem:[#allocation4 + $0x638] sm:$0xff]
        %v4067 = vld [vmem:[#allocation4 + $0x640] sm:$0xff]
        %v4068 = vld [vmem:[#allocation4 + $0x648] sm:$0xff]
        %v4069 = vld [vmem:[#allocation4 + $0x650] sm:$0xff]
        %v4070 = vld [vmem:[#allocation4 + $0x658] sm:$0xff]
        %v4071 = vld [vmem:[#allocation4 + $0x660] sm:$0xff]
        %v4072 = vld [vmem:[#allocation4 + $0x668] sm:$0xff]
        %v4073 = vld [vmem:[#allocation4 + $0x670] sm:$0xff]
        %v4074 = vld [vmem:[#allocation4 + $0x678] sm:$0xff]
        %v4075 = vld [vmem:[#allocation4 + $0x680] sm:$0xff]
        %v4076 = vld [vmem:[#allocation4 + $0x688] sm:$0xff]
        %v4077 = vld [vmem:[#allocation4 + $0x690] sm:$0xff]
        %v4078 = vld [vmem:[#allocation4 + $0x698] sm:$0xff]
        %v4079 = vld [vmem:[#allocation4 + $0x6a0] sm:$0xff]
        %v4080 = vld [vmem:[#allocation4 + $0x6a8] sm:$0xff]
        %v4081 = vld [vmem:[#allocation4 + $0x6b0] sm:$0xff]
        %v4082 = vld [vmem:[#allocation4 + $0x6b8] sm:$0xff]
        %v4083 = vld [vmem:[#allocation4 + $0x6c0] sm:$0xff]
        %v4084 = vld [vmem:[#allocation4 + $0x6c8] sm:$0xff]
        %v4085 = vld [vmem:[#allocation4 + $0x6d0] sm:$0xff]
        %v4086 = vld [vmem:[#allocation4 + $0x6d8] sm:$0xff]
        %v4087 = vld [vmem:[#allocation4 + $0x6e0] sm:$0xff]
        %v4088 = vld [vmem:[#allocation4 + $0x6e8] sm:$0xff]
        %v4089 = vld [vmem:[#allocation4 + $0x6f0] sm:$0xff]
        %v4090 = vld [vmem:[#allocation4 + $0x6f8] sm:$0xff]
        %v4091 = vld [vmem:[#allocation4 + $0x700] sm:$0xff]
        %v4092 = vld [vmem:[#allocation4 + $0x708] sm:$0xff]
        %v4093 = vld [vmem:[#allocation4 + $0x710] sm:$0xff]
        %v4094 = vld [vmem:[#allocation4 + $0x718] sm:$0xff]
        %v4095 = vld [vmem:[#allocation4 + $0x720] sm:$0xff]
        %v4096 = vld [vmem:[#allocation4 + $0x728] sm:$0xff]
        %v4097 = vld [vmem:[#allocation4 + $0x730] sm:$0xff]
        %v4098 = vld [vmem:[#allocation4 + $0x738] sm:$0xff]
        %v4099 = vld [vmem:[#allocation4 + $0x740] sm:$0xff]
        %v4100 = vld [vmem:[#allocation4 + $0x748] sm:$0xff]
        %v4101 = vld [vmem:[#allocation4 + $0x750] sm:$0xff]
        %v4102 = vld [vmem:[#allocation4 + $0x758] sm:$0xff]
        %v4103 = vld [vmem:[#allocation4 + $0x760] sm:$0xff]
        %v4104 = vld [vmem:[#allocation4 + $0x768] sm:$0xff]
        %v4105 = vld [vmem:[#allocation4 + $0x770] sm:$0xff]
        %v4106 = vld [vmem:[#allocation4 + $0x778] sm:$0xff]
        %v4107 = vld [vmem:[#allocation4 + $0x780] sm:$0xff]
        %v4108 = vld [vmem:[#allocation4 + $0x788] sm:$0xff]
        %v4109 = vld [vmem:[#allocation4 + $0x790] sm:$0xff]
        %v4110 = vld [vmem:[#allocation4 + $0x798] sm:$0xff]
        %v4111 = vld [vmem:[#allocation4 + $0x7a0] sm:$0xff]
        %v4112 = vld [vmem:[#allocation4 + $0x7a8] sm:$0xff]
        %v4113 = vld [vmem:[#allocation4 + $0x7b0] sm:$0xff]
        %v4114 = vld [vmem:[#allocation4 + $0x7b8] sm:$0xff]
        %v4115 = vld [vmem:[#allocation4 + $0x7c0] sm:$0xff]
        %v4116 = vld [vmem:[#allocation4 + $0x7c8] sm:$0xff]
        %v4117 = vld [vmem:[#allocation4 + $0x7d0] sm:$0xff]
        %v4118 = vld [vmem:[#allocation4 + $0x7d8] sm:$0xff]
        %v4119 = vld [vmem:[#allocation4 + $0x7e0] sm:$0xff]
        %v4120 = vld [vmem:[#allocation4 + $0x7e8] sm:$0xff]
        %v4121 = vld [vmem:[#allocation4 + $0x7f0] sm:$0xff]
        %v4122 = vld [vmem:[#allocation4 + $0x7f8] sm:$0xff]
        %4123 = vmatpush.msra.mxu0 %v3987
        %4124 = vmatpush.msra.mxu0 %v3979
        %4125 = vmatpush.msra.mxu0 %v3971
        %4126 = vmatpush.msra.mxu0 %v3963
        %4127 = vmatpush.msra.mxu0 %v3955
        %4128 = vmatpush.msra.mxu0 %v3947
        %4129 = vmatpush.msra.mxu0 %v3939
        %4130 = vmatpush.msra.mxu0 %v3931
        %4131 = vmatpush.msra.mxu0 %v3923
        %4132 = vmatpush.msra.mxu0 %v3915
        %4133 = vmatpush.msra.mxu0 %v3907
        %4134 = vmatpush.msra.mxu0 %v3899
        %4135 = vmatpush.msra.mxu0 %v3891
        %4136 = vmatpush.msra.mxu0 %v3883
        %4137 = vmatpush.msra.mxu0 %v3875
        %4138 = vmatpush.msra.mxu0 %v3867
        %4139 = vmatmul.f32.gmra.mxu0 %v3861
        %v4140 = vpop.f32.mrf.mxu0
        %v4141 = vadd.f32 %v802, %v4140
        %4142 = vdwg.mxu0
        %4143 = vmatpush.msra.mxu0 %v4115
        %4144 = vmatpush.msra.mxu0 %v4107
        %4145 = vmatpush.msra.mxu0 %v4099
        %4146 = vmatpush.msra.mxu0 %v4091
        %4147 = vmatpush.msra.mxu0 %v4083
        %4148 = vmatpush.msra.mxu0 %v4075
        %4149 = vmatpush.msra.mxu0 %v4067
        %4150 = vmatpush.msra.mxu0 %v4059
        %4151 = vmatpush.msra.mxu0 %v4051
        %4152 = vmatpush.msra.mxu0 %v4043
        %4153 = vmatpush.msra.mxu0 %v4035
        %4154 = vmatpush.msra.mxu0 %v4027
        %4155 = vmatpush.msra.mxu0 %v4019
        %4156 = vmatpush.msra.mxu0 %v4011
        %4157 = vmatpush.msra.mxu0 %v4003
        %4158 = vmatpush.msra.mxu0 %v3995
        %4159 = vmatmul.f32.gmra.mxu0 %v3862
        %v4160 = vpop.f32.mrf.mxu0
        %v4161 = vadd.f32 %v4141, %v4160
        %4162 = vdwg.mxu0
        %4163 = vmatpush.msra.mxu0 %v3988
        %4164 = vmatpush.msra.mxu0 %v3980
        %4165 = vmatpush.msra.mxu0 %v3972
        %4166 = vmatpush.msra.mxu0 %v3964
        %4167 = vmatpush.msra.mxu0 %v3956
        %4168 = vmatpush.msra.mxu0 %v3948
        %4169 = vmatpush.msra.mxu0 %v3940
        %4170 = vmatpush.msra.mxu0 %v3932
        %4171 = vmatpush.msra.mxu0 %v3924
        %4172 = vmatpush.msra.mxu0 %v3916
        %4173 = vmatpush.msra.mxu0 %v3908
        %4174 = vmatpush.msra.mxu0 %v3900
        %4175 = vmatpush.msra.mxu0 %v3892
        %4176 = vmatpush.msra.mxu0 %v3884
        %4177 = vmatpush.msra.mxu0 %v3876
        %4178 = vmatpush.msra.mxu0 %v3868
        %4179 = vmatmul.f32.gmra.mxu0 %v3861
        %v4180 = vpop.f32.mrf.mxu0
        %v4181 = vadd.f32 %v803, %v4180
        %4182 = vdwg.mxu0
        %4183 = vmatpush.msra.mxu0 %v4116
        %4184 = vmatpush.msra.mxu0 %v4108
        %4185 = vmatpush.msra.mxu0 %v4100
        %4186 = vmatpush.msra.mxu0 %v4092
        %4187 = vmatpush.msra.mxu0 %v4084
        %4188 = vmatpush.msra.mxu0 %v4076
        %4189 = vmatpush.msra.mxu0 %v4068
        %4190 = vmatpush.msra.mxu0 %v4060
        %4191 = vmatpush.msra.mxu0 %v4052
        %4192 = vmatpush.msra.mxu0 %v4044
        %4193 = vmatpush.msra.mxu0 %v4036
        %4194 = vmatpush.msra.mxu0 %v4028
        %4195 = vmatpush.msra.mxu0 %v4020
        %4196 = vmatpush.msra.mxu0 %v4012
        %4197 = vmatpush.msra.mxu0 %v4004
        %4198 = vmatpush.msra.mxu0 %v3996
        %4199 = vmatmul.f32.gmra.mxu0 %v3862
        %v4200 = vpop.f32.mrf.mxu0
        %v4201 = vadd.f32 %v4181, %v4200
        %4202 = vdwg.mxu0
        %4203 = vmatpush.msra.mxu0 %v3989
        %4204 = vmatpush.msra.mxu0 %v3981
        %4205 = vmatpush.msra.mxu0 %v3973
        %4206 = vmatpush.msra.mxu0 %v3965
        %4207 = vmatpush.msra.mxu0 %v3957
        %4208 = vmatpush.msra.mxu0 %v3949
        %4209 = vmatpush.msra.mxu0 %v3941
        %4210 = vmatpush.msra.mxu0 %v3933
        %4211 = vmatpush.msra.mxu0 %v3925
        %4212 = vmatpush.msra.mxu0 %v3917
        %4213 = vmatpush.msra.mxu0 %v3909
        %4214 = vmatpush.msra.mxu0 %v3901
        %4215 = vmatpush.msra.mxu0 %v3893
        %4216 = vmatpush.msra.mxu0 %v3885
        %4217 = vmatpush.msra.mxu0 %v3877
        %4218 = vmatpush.msra.mxu0 %v3869
        %4219 = vmatmul.f32.gmra.mxu0 %v3861
        %v4220 = vpop.f32.mrf.mxu0
        %v4221 = vadd.f32 %v804, %v4220
        %4222 = vdwg.mxu0
        %4223 = vmatpush.msra.mxu0 %v4117
        %4224 = vmatpush.msra.mxu0 %v4109
        %4225 = vmatpush.msra.mxu0 %v4101
        %4226 = vmatpush.msra.mxu0 %v4093
        %4227 = vmatpush.msra.mxu0 %v4085
        %4228 = vmatpush.msra.mxu0 %v4077
        %4229 = vmatpush.msra.mxu0 %v4069
        %4230 = vmatpush.msra.mxu0 %v4061
        %4231 = vmatpush.msra.mxu0 %v4053
        %4232 = vmatpush.msra.mxu0 %v4045
        %4233 = vmatpush.msra.mxu0 %v4037
        %4234 = vmatpush.msra.mxu0 %v4029
        %4235 = vmatpush.msra.mxu0 %v4021
        %4236 = vmatpush.msra.mxu0 %v4013
        %4237 = vmatpush.msra.mxu0 %v4005
        %4238 = vmatpush.msra.mxu0 %v3997
        %4239 = vmatmul.f32.gmra.mxu0 %v3862
        %v4240 = vpop.f32.mrf.mxu0
        %v4241 = vadd.f32 %v4221, %v4240
        %4242 = vdwg.mxu0
        %4243 = vmatpush.msra.mxu0 %v3990
        %4244 = vmatpush.msra.mxu0 %v3982
        %4245 = vmatpush.msra.mxu0 %v3974
        %4246 = vmatpush.msra.mxu0 %v3966
        %4247 = vmatpush.msra.mxu0 %v3958
        %4248 = vmatpush.msra.mxu0 %v3950
        %4249 = vmatpush.msra.mxu0 %v3942
        %4250 = vmatpush.msra.mxu0 %v3934
        %4251 = vmatpush.msra.mxu0 %v3926
        %4252 = vmatpush.msra.mxu0 %v3918
        %4253 = vmatpush.msra.mxu0 %v3910
        %4254 = vmatpush.msra.mxu0 %v3902
        %4255 = vmatpush.msra.mxu0 %v3894
        %4256 = vmatpush.msra.mxu0 %v3886
        %4257 = vmatpush.msra.mxu0 %v3878
        %4258 = vmatpush.msra.mxu0 %v3870
        %4259 = vmatmul.f32.gmra.mxu0 %v3861
        %v4260 = vpop.f32.mrf.mxu0
        %v4261 = vadd.f32 %v805, %v4260
        %4262 = vdwg.mxu0
        %4263 = vmatpush.msra.mxu0 %v4118
        %4264 = vmatpush.msra.mxu0 %v4110
        %4265 = vmatpush.msra.mxu0 %v4102
        %4266 = vmatpush.msra.mxu0 %v4094
        %4267 = vmatpush.msra.mxu0 %v4086
        %4268 = vmatpush.msra.mxu0 %v4078
        %4269 = vmatpush.msra.mxu0 %v4070
        %4270 = vmatpush.msra.mxu0 %v4062
        %4271 = vmatpush.msra.mxu0 %v4054
        %4272 = vmatpush.msra.mxu0 %v4046
        %4273 = vmatpush.msra.mxu0 %v4038
        %4274 = vmatpush.msra.mxu0 %v4030
        %4275 = vmatpush.msra.mxu0 %v4022
        %4276 = vmatpush.msra.mxu0 %v4014
        %4277 = vmatpush.msra.mxu0 %v4006
        %4278 = vmatpush.msra.mxu0 %v3998
        %4279 = vmatmul.f32.gmra.mxu0 %v3862
        %v4280 = vpop.f32.mrf.mxu0
        %v4281 = vadd.f32 %v4261, %v4280
        %4282 = vdwg.mxu0
        %4283 = vmatpush.msra.mxu0 %v3991
        %4284 = vmatpush.msra.mxu0 %v3983
        %4285 = vmatpush.msra.mxu0 %v3975
        %4286 = vmatpush.msra.mxu0 %v3967
        %4287 = vmatpush.msra.mxu0 %v3959
        %4288 = vmatpush.msra.mxu0 %v3951
        %4289 = vmatpush.msra.mxu0 %v3943
        %4290 = vmatpush.msra.mxu0 %v3935
        %4291 = vmatpush.msra.mxu0 %v3927
        %4292 = vmatpush.msra.mxu0 %v3919
        %4293 = vmatpush.msra.mxu0 %v3911
        %4294 = vmatpush.msra.mxu0 %v3903
        %4295 = vmatpush.msra.mxu0 %v3895
        %4296 = vmatpush.msra.mxu0 %v3887
        %4297 = vmatpush.msra.mxu0 %v3879
        %4298 = vmatpush.msra.mxu0 %v3871
        %4299 = vmatmul.f32.gmra.mxu0 %v3861
        %v4300 = vpop.f32.mrf.mxu0
        %v4301 = vadd.f32 %v806, %v4300
        %4302 = vdwg.mxu0
        %4303 = vmatpush.msra.mxu0 %v4119
        %4304 = vmatpush.msra.mxu0 %v4111
        %4305 = vmatpush.msra.mxu0 %v4103
        %4306 = vmatpush.msra.mxu0 %v4095
        %4307 = vmatpush.msra.mxu0 %v4087
        %4308 = vmatpush.msra.mxu0 %v4079
        %4309 = vmatpush.msra.mxu0 %v4071
        %4310 = vmatpush.msra.mxu0 %v4063
        %4311 = vmatpush.msra.mxu0 %v4055
        %4312 = vmatpush.msra.mxu0 %v4047
        %4313 = vmatpush.msra.mxu0 %v4039
        %4314 = vmatpush.msra.mxu0 %v4031
        %4315 = vmatpush.msra.mxu0 %v4023
        %4316 = vmatpush.msra.mxu0 %v4015
        %4317 = vmatpush.msra.mxu0 %v4007
        %4318 = vmatpush.msra.mxu0 %v3999
        %4319 = vmatmul.f32.gmra.mxu0 %v3862
        %v4320 = vpop.f32.mrf.mxu0
        %v4321 = vadd.f32 %v4301, %v4320
        %4322 = vdwg.mxu0
        %4323 = vmatpush.msra.mxu0 %v3992
        %4324 = vmatpush.msra.mxu0 %v3984
        %4325 = vmatpush.msra.mxu0 %v3976
        %4326 = vmatpush.msra.mxu0 %v3968
        %4327 = vmatpush.msra.mxu0 %v3960
        %4328 = vmatpush.msra.mxu0 %v3952
        %4329 = vmatpush.msra.mxu0 %v3944
        %4330 = vmatpush.msra.mxu0 %v3936
        %4331 = vmatpush.msra.mxu0 %v3928
        %4332 = vmatpush.msra.mxu0 %v3920
        %4333 = vmatpush.msra.mxu0 %v3912
        %4334 = vmatpush.msra.mxu0 %v3904
        %4335 = vmatpush.msra.mxu0 %v3896
        %4336 = vmatpush.msra.mxu0 %v3888
        %4337 = vmatpush.msra.mxu0 %v3880
        %4338 = vmatpush.msra.mxu0 %v3872
        %4339 = vmatmul.f32.gmra.mxu0 %v3861
        %v4340 = vpop.f32.mrf.mxu0
        %v4341 = vadd.f32 %v807, %v4340
        %4342 = vdwg.mxu0
        %4343 = vmatpush.msra.mxu0 %v4120
        %4344 = vmatpush.msra.mxu0 %v4112
        %4345 = vmatpush.msra.mxu0 %v4104
        %4346 = vmatpush.msra.mxu0 %v4096
        %4347 = vmatpush.msra.mxu0 %v4088
        %4348 = vmatpush.msra.mxu0 %v4080
        %4349 = vmatpush.msra.mxu0 %v4072
        %4350 = vmatpush.msra.mxu0 %v4064
        %4351 = vmatpush.msra.mxu0 %v4056
        %4352 = vmatpush.msra.mxu0 %v4048
        %4353 = vmatpush.msra.mxu0 %v4040
        %4354 = vmatpush.msra.mxu0 %v4032
        %4355 = vmatpush.msra.mxu0 %v4024
        %4356 = vmatpush.msra.mxu0 %v4016
        %4357 = vmatpush.msra.mxu0 %v4008
        %4358 = vmatpush.msra.mxu0 %v4000
        %4359 = vmatmul.f32.gmra.mxu0 %v3862
        %v4360 = vpop.f32.mrf.mxu0
        %v4361 = vadd.f32 %v4341, %v4360
        %4362 = vdwg.mxu0
        %4363 = vmatpush.msra.mxu0 %v3993
        %4364 = vmatpush.msra.mxu0 %v3985
        %4365 = vmatpush.msra.mxu0 %v3977
        %4366 = vmatpush.msra.mxu0 %v3969
        %4367 = vmatpush.msra.mxu0 %v3961
        %4368 = vmatpush.msra.mxu0 %v3953
        %4369 = vmatpush.msra.mxu0 %v3945
        %4370 = vmatpush.msra.mxu0 %v3937
        %4371 = vmatpush.msra.mxu0 %v3929
        %4372 = vmatpush.msra.mxu0 %v3921
        %4373 = vmatpush.msra.mxu0 %v3913
        %4374 = vmatpush.msra.mxu0 %v3905
        %4375 = vmatpush.msra.mxu0 %v3897
        %4376 = vmatpush.msra.mxu0 %v3889
        %4377 = vmatpush.msra.mxu0 %v3881
        %4378 = vmatpush.msra.mxu0 %v3873
        %4379 = vmatmul.f32.gmra.mxu0 %v3861
        %v4380 = vpop.f32.mrf.mxu0
        %v4381 = vadd.f32 %v808, %v4380
        %4382 = vdwg.mxu0
        %4383 = vmatpush.msra.mxu0 %v4121
        %4384 = vmatpush.msra.mxu0 %v4113
        %4385 = vmatpush.msra.mxu0 %v4105
        %4386 = vmatpush.msra.mxu0 %v4097
        %4387 = vmatpush.msra.mxu0 %v4089
        %4388 = vmatpush.msra.mxu0 %v4081
        %4389 = vmatpush.msra.mxu0 %v4073
        %4390 = vmatpush.msra.mxu0 %v4065
        %4391 = vmatpush.msra.mxu0 %v4057
        %4392 = vmatpush.msra.mxu0 %v4049
        %4393 = vmatpush.msra.mxu0 %v4041
        %4394 = vmatpush.msra.mxu0 %v4033
        %4395 = vmatpush.msra.mxu0 %v4025
        %4396 = vmatpush.msra.mxu0 %v4017
        %4397 = vmatpush.msra.mxu0 %v4009
        %4398 = vmatpush.msra.mxu0 %v4001
        %4399 = vmatmul.f32.gmra.mxu0 %v3862
        %v4400 = vpop.f32.mrf.mxu0
        %v4401 = vadd.f32 %v4381, %v4400
        %4402 = vdwg.mxu0
        %4403 = vmatpush.msra.mxu0 %v3994
        %4404 = vmatpush.msra.mxu0 %v3986
        %4405 = vmatpush.msra.mxu0 %v3978
        %4406 = vmatpush.msra.mxu0 %v3970
        %4407 = vmatpush.msra.mxu0 %v3962
        %4408 = vmatpush.msra.mxu0 %v3954
        %4409 = vmatpush.msra.mxu0 %v3946
        %4410 = vmatpush.msra.mxu0 %v3938
        %4411 = vmatpush.msra.mxu0 %v3930
        %4412 = vmatpush.msra.mxu0 %v3922
        %4413 = vmatpush.msra.mxu0 %v3914
        %4414 = vmatpush.msra.mxu0 %v3906
        %4415 = vmatpush.msra.mxu0 %v3898
        %4416 = vmatpush.msra.mxu0 %v3890
        %4417 = vmatpush.msra.mxu0 %v3882
        %4418 = vmatpush.msra.mxu0 %v3874
        %4419 = vmatmul.f32.gmra.mxu0 %v3861
        %v4420 = vpop.f32.mrf.mxu0
        %v4421 = vadd.f32 %v809, %v4420
        %4422 = vdwg.mxu0
        %4423 = vmatpush.msra.mxu0 %v4122
        %4424 = vmatpush.msra.mxu0 %v4114
        %4425 = vmatpush.msra.mxu0 %v4106
        %4426 = vmatpush.msra.mxu0 %v4098
        %4427 = vmatpush.msra.mxu0 %v4090
        %4428 = vmatpush.msra.mxu0 %v4082
        %4429 = vmatpush.msra.mxu0 %v4074
        %4430 = vmatpush.msra.mxu0 %v4066
        %4431 = vmatpush.msra.mxu0 %v4058
        %4432 = vmatpush.msra.mxu0 %v4050
        %4433 = vmatpush.msra.mxu0 %v4042
        %4434 = vmatpush.msra.mxu0 %v4034
        %4435 = vmatpush.msra.mxu0 %v4026
        %4436 = vmatpush.msra.mxu0 %v4018
        %4437 = vmatpush.msra.mxu0 %v4010
        %4438 = vmatpush.msra.mxu0 %v4002
        %4439 = vmatmul.f32.gmra.mxu0 %v3862
        %v4440 = vpop.f32.mrf.mxu0
        %v4441 = vadd.f32 %v4421, %v4440
        %4442 = vdwg.mxu0
        %4443 = vst [vmem:[%s791] sm:$0xff] %v4161
        %4444 = vst [vmem:[%s791 + $0x8] sm:$0xff] %v4201
        %4445 = vst [vmem:[%s791 + $0x10] sm:$0xff] %v4241
        %4446 = vst [vmem:[%s791 + $0x18] sm:$0xff] %v4281
        %4447 = vst [vmem:[%s791 + $0x20] sm:$0xff] %v4321
        %4448 = vst [vmem:[%s791 + $0x28] sm:$0xff] %v4361
        %4449 = vst [vmem:[%s791 + $0x30] sm:$0xff] %v4401
        %4450 = vst [vmem:[%s791 + $0x38] sm:$0xff] %v4441
        %4451 = vrot.lane.b32.xlu0 %v3861, 127
        %v4452 = vpop.permute.xlu0 %4451
        %4453 = vrot.lane.b32.xlu0 %v3862, 127
        %v4454 = vpop.permute.xlu0 %4453
        %v4455 = vsel %vm1116, %v4452, %v4454
        %v4456 = vsel %vm1116, %v4454, %v4452
        %v4457 = vmax.f32 %v3861, %v4455
        %v4458 = vmax.f32 %v3862, %v4456
        %4459 = vrot.lane.b32.xlu0 %v3861, 112
        %v4460 = vpop.permute.xlu0 %4459
        %4461 = vrot.lane.b32.xlu0 %v3862, 112
        %v4462 = vpop.permute.xlu0 %4461
        %v4463 = vsel %vm3762, %v4460, %v4462
        %v4464 = vsel %vm3762, %v4462, %v4460
        %4465 = vrot.lane.b32.xlu0 %v3861, 111
        %v4466 = vpop.permute.xlu0 %4465
        %4467 = vrot.lane.b32.xlu0 %v3862, 111
        %v4468 = vpop.permute.xlu0 %4467
        %v4469 = vsel %vm3769, %v4466, %v4468
        %v4470 = vsel %vm3769, %v4468, %v4466
        %v4471 = vmax.f32 %v4463, %v4469
        %v4472 = vmax.f32 %v4464, %v4470
        %v4473 = vmax.f32 %v4457, %v4471
        %v4474 = vmax.f32 %v4458, %v4472
        %v4475 = vld [vmem:[%s10] sm:$0xff]
        %v4476 = vld [vmem:[%s10 + $0x8] sm:$0xff]
        %v4477 = vld [vmem:[%s10 + $0x10] sm:$0xff]
        %v4478 = vld [vmem:[%s10 + $0x18] sm:$0xff]
        %v4479 = vld [vmem:[%s10 + $0x20] sm:$0xff]
        %v4480 = vld [vmem:[%s10 + $0x28] sm:$0xff]
        %v4481 = vld [vmem:[%s10 + $0x30] sm:$0xff]
        %v4482 = vld [vmem:[%s10 + $0x38] sm:$0xff]
        %v4483 = vld [vmem:[%s10 + $0x40] sm:$0xff]
        %v4484 = vld [vmem:[%s10 + $0x48] sm:$0xff]
        %v4485 = vld [vmem:[%s10 + $0x50] sm:$0xff]
        %v4486 = vld [vmem:[%s10 + $0x58] sm:$0xff]
        %v4487 = vld [vmem:[%s10 + $0x60] sm:$0xff]
        %v4488 = vld [vmem:[%s10 + $0x68] sm:$0xff]
        %v4489 = vld [vmem:[%s10 + $0x70] sm:$0xff]
        %v4490 = vld [vmem:[%s10 + $0x78] sm:$0xff]
        %v4491 = vld [vmem:[%s10 + $0x80] sm:$0xff]
        %v4492 = vld [vmem:[%s10 + $0x88] sm:$0xff]
        %v4493 = vld [vmem:[%s10 + $0x90] sm:$0xff]
        %v4494 = vld [vmem:[%s10 + $0x98] sm:$0xff]
        %v4495 = vld [vmem:[%s10 + $0xa0] sm:$0xff]
        %v4496 = vld [vmem:[%s10 + $0xa8] sm:$0xff]
        %v4497 = vld [vmem:[%s10 + $0xb0] sm:$0xff]
        %v4498 = vld [vmem:[%s10 + $0xb8] sm:$0xff]
        %v4499 = vld [vmem:[%s10 + $0xc0] sm:$0xff]
        %v4500 = vld [vmem:[%s10 + $0xc8] sm:$0xff]
        %v4501 = vld [vmem:[%s10 + $0xd0] sm:$0xff]
        %v4502 = vld [vmem:[%s10 + $0xd8] sm:$0xff]
        %v4503 = vld [vmem:[%s10 + $0xe0] sm:$0xff]
        %v4504 = vld [vmem:[%s10 + $0xe8] sm:$0xff]
        %v4505 = vld [vmem:[%s10 + $0xf0] sm:$0xff]
        %v4506 = vld [vmem:[%s10 + $0xf8] sm:$0xff]
        %4507 = vmatpush.msra.mxu0 %v4490
        %4508 = vmatpush.msra.mxu0 %v4489
        %4509 = vmatpush.msra.mxu0 %v4488
        %4510 = vmatpush.msra.mxu0 %v4487
        %4511 = vmatpush.msra.mxu0 %v4486
        %4512 = vmatpush.msra.mxu0 %v4485
        %4513 = vmatpush.msra.mxu0 %v4484
        %4514 = vmatpush.msra.mxu0 %v4483
        %4515 = vmatpush.msra.mxu0 %v4482
        %4516 = vmatpush.msra.mxu0 %v4481
        %4517 = vmatpush.msra.mxu0 %v4480
        %4518 = vmatpush.msra.mxu0 %v4479
        %4519 = vmatpush.msra.mxu0 %v4478
        %4520 = vmatpush.msra.mxu0 %v4477
        %4521 = vmatpush.msra.mxu0 %v4476
        %4522 = vmatpush.msra.mxu0 %v4475
        %4523 = vmatmul.f32.gmra.mxu0 %v4473
        %v4524 = vpop.f32.mrf.mxu0
        %v4525 = vadd.f32 %v812, %v4524
        %4526 = vdwg.mxu0
        %4527 = vmatpush.msra.mxu0 %v4506
        %4528 = vmatpush.msra.mxu0 %v4505
        %4529 = vmatpush.msra.mxu0 %v4504
        %4530 = vmatpush.msra.mxu0 %v4503
        %4531 = vmatpush.msra.mxu0 %v4502
        %4532 = vmatpush.msra.mxu0 %v4501
        %4533 = vmatpush.msra.mxu0 %v4500
        %4534 = vmatpush.msra.mxu0 %v4499
        %4535 = vmatpush.msra.mxu0 %v4498
        %4536 = vmatpush.msra.mxu0 %v4497
        %4537 = vmatpush.msra.mxu0 %v4496
        %4538 = vmatpush.msra.mxu0 %v4495
        %4539 = vmatpush.msra.mxu0 %v4494
        %4540 = vmatpush.msra.mxu0 %v4493
        %4541 = vmatpush.msra.mxu0 %v4492
        %4542 = vmatpush.msra.mxu0 %v4491
        %4543 = vmatmul.f32.gmra.mxu0 %v4474
        %v4544 = vpop.f32.mrf.mxu0
        %v4545 = vadd.f32 %v4525, %v4544
        %4546 = vdwg.mxu0
        %4547 = vst.msk [vmem:[%s800] sm:$0xff] %vm1199, %v4545
        %p4548 = scmp.lt.s32.totalorder %s34, 1
        %s4549 = scalar_select %p4548, %s34, 1
        %s4550 = smul.addr %s4549, 8
        %s4551 = smul.addr %s4550, 8
        %s4552 = scalar_lea.vmem %s18, %s4551
        %p4553 = scmp.lt.s32.totalorder %s34, 1
        %s4554 = scalar_select %p4553, %s34, 1
        %s4555 = smul.addr %s4554, 2
        %s4556 = smul.addr %s4555, 8
        %s4557 = scalar_lea.vmem %s19, %s4556
        %p4558 = scmp.lt.s32.totalorder %s34, 1
        %s4559 = scalar_select %p4558, %s34, 1
        %s4560 = smul.addr %s4559, 8
        %s4561 = scalar_lea.vmem %s20, %s4560
        // Predicated region
        $region101: #{bfp_tcea_forward.1} parent=91 // pred_check
          %p4562 = pneg %p465
        $region102: #{bfp_tcea_forward.1} parent=91 // pred_check_branch
          %4564 = sbr.rel (%p4562) target = $region104
        $region103: #{bfp_tcea_forward.1} parent=91 // pred_region
          _
        $region104: #{bfp_tcea_forward.1} parent=91 // pred_fallthru
          _
        // Predicated region
        $region105: #{bfp_tcea_forward.1} parent=91 // pred_check
          %p4565 = pneg %p491
        $region106: #{bfp_tcea_forward.1} parent=91 // pred_check_branch
          %4567 = sbr.rel (%p4565) target = $region108
        $region107: #{bfp_tcea_forward.1} parent=91 // pred_region
          _
        $region108: #{bfp_tcea_forward.1} parent=91 // pred_fallthru
          _
        // Predicated region
        $region109: #{bfp_tcea_forward.1} parent=91 // pred_check
          %p4568 = pneg %p517
        $region110: #{bfp_tcea_forward.1} parent=91 // pred_check_branch
          %4570 = sbr.rel (%p4568) target = $region112
        $region111: #{bfp_tcea_forward.1} parent=91 // pred_region
          _
        $region112: #{bfp_tcea_forward.1} parent=91 // pred_fallthru
          _
      $region92: #{bfp_tcea_forward.1} parent=5 // pred_fallthru
        _
      %p4571 = scmp.le.s32.totalorder 2, %s29
      // Predicated region
      $region113: #{bfp_tcea_forward.1} parent=5 // pred_check
        %p4572 = pneg %p4571
      $region114: #{bfp_tcea_forward.1} parent=5 // pred_check_branch
        %4574 = sbr.rel (%p4572) target = $region116
      $region115: #{bfp_tcea_forward.1} parent=5 // pred_region
        %s4575 = ssub.s32 %s29, 2
        // Predicated region
        $region117: #{bfp_tcea_forward.1} parent=115 // pred_check
          %p4576 = pneg %p471
        $region118: #{bfp_tcea_forward.1} parent=115 // pred_check_branch
          %4578 = sbr.rel (%p4576) target = $region120
        $region119: #{bfp_tcea_forward.1} parent=115 // pred_region
          %p4579 = scmp.lt.s32.totalorder %s35, 1
          %s4580 = scalar_select %p4579, %s35, 1
          %s4581 = smul.addr %s4580, 8
          %s4582 = smul.addr %s4581, 8
          %s4583 = scalar_lea.vmem %s18, %s4582
        $region120: #{bfp_tcea_forward.1} parent=115 // pred_fallthru
          _
        // Predicated region
        $region121: #{bfp_tcea_forward.1} parent=115 // pred_check
          %p4584 = pneg %p497
        $region122: #{bfp_tcea_forward.1} parent=115 // pred_check_branch
          %4586 = sbr.rel (%p4584) target = $region124
        $region123: #{bfp_tcea_forward.1} parent=115 // pred_region
          %p4587 = scmp.lt.s32.totalorder %s35, 1
          %s4588 = scalar_select %p4587, %s35, 1
          %s4589 = smul.addr %s4588, 2
          %s4590 = smul.addr %s4589, 8
          %s4591 = scalar_lea.vmem %s19, %s4590
        $region124: #{bfp_tcea_forward.1} parent=115 // pred_fallthru
          _
        // Predicated region
        $region125: #{bfp_tcea_forward.1} parent=115 // pred_check
          %p4592 = pneg %p523
        $region126: #{bfp_tcea_forward.1} parent=115 // pred_check_branch
          %4594 = sbr.rel (%p4592) target = $region128
        $region127: #{bfp_tcea_forward.1} parent=115 // pred_region
          %p4595 = scmp.lt.s32.totalorder %s35, 1
          %s4596 = scalar_select %p4595, %s35, 1
          %s4597 = smul.addr %s4596, 8
          %s4598 = scalar_lea.vmem %s20, %s4597
        $region128: #{bfp_tcea_forward.1} parent=115 // pred_fallthru
          _
      $region116: #{bfp_tcea_forward.1} parent=5 // pred_fallthru
        _
    $region6: #{bfp_tcea_forward.1} parent=1 // loop_footer
      %s33 = sadd.s32 1, %s29
    $region7: #{bfp_tcea_forward.1} parent=1 // loop_footer_branch
      %28 = sbr.rel target = $region3
    $region8: #{bfp_tcea_forward.1} parent=1 // loop_exit
      _
    %4599 = vsyncpa [#allocation3], 1
    %s4600 = scalar_lea.sflag [#allocation3], 1
    %4601 = vsyncpa %s4600, 1
    %4602 = vsyncpa [#allocation5], 1

</llo_original>
